<compile_context>
chip_gen: v7x
topology: tpu7x:2x2x1
jax: 0.10.0
libtpu: 0.0.40
codegen_flags: <defaults>
</compile_context>

<pallas_src>
import functools

import jax
import jax.numpy as jnp
from jax.experimental import pallas as pl
from jax.experimental.pallas import tpu as pltpu

CONFIG = {"image_size": 16, "num_classes": 10}

# MXU input dtype (accumulation is always f32).  jnp.float32 => bit-exact f32 forward pass.
COMPUTE_DTYPE = jnp.bfloat16


# ----------------------------------------------------------------------------
# In-kernel helpers
# ----------------------------------------------------------------------------
def _conv3x3_relu(xp, w_ref, b_ref, H, W):
    """3x3 'same' conv on an already zero-padded (H+2, W+2, Cin) value, as one im2col matmul,
    followed by bias + ReLU.  w_ref: (9*Cin, Cout) [rows ordered (dy, dx, cin)], b_ref: (1, Cout)."""
    cols = [xp[dy:dy + H, dx:dx + W, :] for dy in range(3) for dx in range(3)]
    patches = jnp.concatenate(cols, axis=-1)                      # (H, W, 9*Cin)
    y = jax.lax.dot_general(
        patches.astype(w_ref.dtype), w_ref[...],
        dimension_numbers=(((2,), (0,)), ((), ())),
        preferred_element_type=jnp.float32)                       # (H, W, Cout) f32
    y = y + b_ref[0][None, None, :]
    return jnp.maximum(y, 0.0)


def _maxpool2x2(src_ref, H, W, C):
    """2x2 / stride-2 max pool reading an (H, W, C) VMEM ref.
    W (sublane) axis pooled with strided ref reads; H (leading) axis with a free reshape split."""
    a = jnp.maximum(src_ref[:, pl.ds(0, W // 2, stride=2), :],
                    src_ref[:, pl.ds(1, W // 2, stride=2), :])    # (H, W/2, C)
    a = a.reshape(H // 2, 2, W // 2, C)                           # leading-dim split only (free)
    return a.max(axis=1)                                          # (H/2, W/2, C)


# ----------------------------------------------------------------------------
# Fused kernel: one batch element per grid step, everything stays in VMEM.
# ----------------------------------------------------------------------------
def fused_cnn_kernel(x_ref, w1_ref, b1_ref, w2_ref, b2_ref,
                     fw1_ref, fb1_ref, fw2_ref, fb2_ref,
                     out_ref,
                     pad1_ref, c1_ref, pad2_ref, c2_ref,
                     *, image_size):
    H = image_size
    H2, H4 = H // 2, H // 4

    # ---- conv1 (3 -> 16) + ReLU + maxpool2 ---------------------------------
    pad1_ref[...] = jnp.zeros_like(pad1_ref)                      # padding = 1 (in-kernel)
    pad1_ref[1:H + 1, 1:H + 1, :] = x_ref[0]
    y1 = _conv3x3_relu(pad1_ref[...], w1_ref, b1_ref, H, H)       # (H, H, 16) f32
    c1_ref[...] = y1
    p1 = _maxpool2x2(c1_ref, H, H, 16)                            # (H/2, H/2, 16)

    # ---- conv2 (16 -> 32) + ReLU + maxpool2 --------------------------------
    pad2_ref[...] = jnp.zeros_like(pad2_ref)
    pad2_ref[1:H2 + 1, 1:H2 + 1, :] = p1
    y2 = _conv3x3_relu(pad2_ref[...], w2_ref, b2_ref, H2, H2)     # (H/2, H/2, 32) f32
    c2_ref[...] = y2
    p2 = _maxpool2x2(c2_ref, H2, H2, 32)                          # (H/4, H/4, 32)

    # ---- flatten in (h, w, c) order (fc1_w rows were pre-permuted to match) -
    flat = jnp.concatenate(
        [p2[i, j:j + 1, :] for i in range(H4) for j in range(H4)], axis=-1)   # (1, 32*H4*H4)

    # ---- fc1 + ReLU, fc2 (both kept in VMEM / vregs) ------------------------
    h1 = jnp.dot(flat.astype(fw1_ref.dtype), fw1_ref[...],
                 preferred_element_type=jnp.float32) + fb1_ref[...]
    h1 = jnp.maximum(h1, 0.0)                                     # (1, 128)
    logits = jnp.dot(h1.astype(fw2_ref.dtype), fw2_ref[...],
                     preferred_element_type=jnp.float32) + fb2_ref[...]       # (1, num_classes)
    out_ref[0] = logits.astype(out_ref.dtype)


# ----------------------------------------------------------------------------
# Wrapper: one pallas_call for the whole network.
# ----------------------------------------------------------------------------
def _cnn_forward_impl(params, x_nchw, *, image_size, num_classes):
    N = x_nchw.shape[0]
    H = image_size
    H2, H4 = H // 2, H // 4
    feat = 32 * H4 * H4

    # The only remaining XLA-side layout op: NCHW -> NHWC of the raw input (~6 KB).
    x_nhwc = jnp.transpose(x_nchw, (0, 2, 3, 1)).astype(jnp.float32)

    flops = 2 * N * (H * H * 16 * 27 + H2 * H2 * 32 * 144 + feat * 128 + 128 * num_classes)
    bytes_accessed = (x_nhwc.size * 4
                      + sum(int(v.size) * v.dtype.itemsize for v in params.values())
                      + N * num_classes * 4)

    kernel = functools.partial(fused_cnn_kernel, image_size=H)

    out3 = pl.pallas_call(
        kernel,
        out_shape=jax.ShapeDtypeStruct((N, 1, num_classes), jnp.float32),
        grid=(N,),
        in_specs=[
            pl.BlockSpec((1, H, H, 3), lambda n: (n, 0, 0, 0)),       # x (NHWC)
            pl.BlockSpec((27, 16), lambda n: (0, 0)),                 # conv1 im2col weight
            pl.BlockSpec((1, 16), lambda n: (0, 0)),                  # conv1 bias
            pl.BlockSpec((144, 32), lambda n: (0, 0)),                # conv2 im2col weight
            pl.BlockSpec((1, 32), lambda n: (0, 0)),                  # conv2 bias
            pl.BlockSpec((feat, 128), lambda n: (0, 0)),              # fc1 weight (rows in h,w,c order)
            pl.BlockSpec((1, 128), lambda n: (0, 0)),                 # fc1 bias
            pl.BlockSpec((128, num_classes), lambda n: (0, 0)),       # fc2 weight
            pl.BlockSpec((1, num_classes), lambda n: (0, 0)),         # fc2 bias
        ],
        out_specs=pl.BlockSpec((1, 1, num_classes), lambda n: (n, 0, 0)),
        scratch_shapes=[
            pltpu.VMEM((H + 2, H + 2, 3), jnp.float32),               # padded conv1 input
            pltpu.VMEM((H, H, 16), jnp.float32),                      # conv1 output (pre-pool)
            pltpu.VMEM((H2 + 2, H2 + 2, 16), jnp.float32),            # padded conv2 input
            pltpu.VMEM((H2, H2, 32), jnp.float32),                    # conv2 output (pre-pool)
        ],
        compiler_params=pltpu.CompilerParams(dimension_semantics=("parallel",)),
        cost_estimate=pl.CostEstimate(flops=flops, transcendentals=0,
                                      bytes_accessed=bytes_accessed),
    )(x_nhwc,
      params["conv1_w"], params["conv1_b"],
      params["conv2_w"], params["conv2_b"],
      params["fc1_w"], params["fc1_b"],
      params["fc2_w"], params["fc2_b"])

    return out3[:, 0, :]


@jax.jit
def cnn_forward(params, x_nchw):
    return _cnn_forward_impl(params, x_nchw,
                             image_size=CONFIG["image_size"],
                             num_classes=CONFIG["num_classes"])


# ----------------------------------------------------------------------------
# Parameters: PyTorch-layout init + one-time (zero-runtime-cost) repack.
# ----------------------------------------------------------------------------
def init_params_torch_layout(key, image_size=16, num_classes=10):
    """Deterministic params in native PyTorch layouts (OIHW convs, (out,in) linears)."""
    ks = jax.random.split(key, 8)
    feat = 32 * (image_size // 4) * (image_size // 4)

    def uni(k, shape, fan_in):
        bound = 1.0 / jnp.sqrt(fan_in)
        return jax.random.uniform(k, shape, jnp.float32, -bound, bound)

    return {
        "conv1_w": uni(ks[0], (16, 3, 3, 3), 3 * 9),
        "conv1_b": uni(ks[1], (16,), 3 * 9),
        "conv2_w": uni(ks[2], (32, 16, 3, 3), 16 * 9),
        "conv2_b": uni(ks[3], (32,), 16 * 9),
        "fc1_w": uni(ks[4], (128, feat), feat),
        "fc1_b": uni(ks[5], (128,), feat),
        "fc2_w": uni(ks[6], (num_classes, 128), 128),
        "fc2_b": uni(ks[7], (num_classes,), 128),
    }


def prepare_params(pt, image_size=16, num_classes=10, compute_dtype=COMPUTE_DTYPE):
    """One-time repack of PyTorch-layout params into the kernel's layouts.
    This folds the conv HWIO reordering, the im2col flattening, and nn.Flatten()'s
    (c, h, w) ordering into the weights, so the runtime kernel needs no permutes."""
    H4 = image_size // 4
    feat = 32 * H4 * H4

    def conv_to_im2col(w_oihw):                  # (Cout, Cin, 3, 3) -> (9*Cin, Cout), rows (dy, dx, cin)
        cout, cin = w_oihw.shape[0], w_oihw.shape[1]
        return jnp.transpose(w_oihw, (2, 3, 1, 0)).reshape(9 * cin, cout).astype(compute_dtype)

    # nn.Flatten() flattens (c, h, w); the kernel flattens (h, w, c) -> permute fc1 rows once.
    fw1 = jnp.transpose(pt["fc1_w"], (1, 0))                         # (feat, 128), rows in (c, h, w)
    fw1 = fw1.reshape(32, H4, H4, 128).transpose(1, 2, 0, 3).reshape(feat, 128)

    return {
        "conv1_w": conv_to_im2col(pt["conv1_w"]),
        "conv1_b": pt["conv1_b"].reshape(1, 16).astype(jnp.float32),
        "conv2_w": conv_to_im2col(pt["conv2_w"]),
        "conv2_b": pt["conv2_b"].reshape(1, 32).astype(jnp.float32),
        "fc1_w": fw1.astype(compute_dtype),
        "fc1_b": pt["fc1_b"].reshape(1, 128).astype(jnp.float32),
        "fc2_w": jnp.transpose(pt["fc2_w"], (1, 0)).astype(compute_dtype),
        "fc2_b": pt["fc2_b"].reshape(1, num_classes).astype(jnp.float32),
    }


if __name__ == "__main__":
    key = jax.random.PRNGKey(0)
    pkey, xkey = jax.random.split(key)

    pt_params = init_params_torch_layout(pkey, CONFIG["image_size"], CONFIG["num_classes"])
    params = prepare_params(pt_params, CONFIG["image_size"], CONFIG["num_classes"])

    x = jax.random.normal(
        xkey, (2, 3, CONFIG["image_size"], CONFIG["image_size"]), dtype=jnp.float32)

    out = cnn_forward(params, x)
    jax.block_until_ready(out)

    assert out.shape == (2, CONFIG["num_classes"])
    assert bool(jnp.isfinite(out).all())
    print("KERNEL_OK")
</pallas_src>

<mosaic_0001>
module attributes {stable_mosaic.version = 11 : i64} {
  func.func @fused_cnn_kernel(%arg0: i32, %arg1: memref<1x16x16x3xf32, #tpu.memory_space<vmem>>, %arg2: memref<27x16xbf16, #tpu.memory_space<vmem>>, %arg3: memref<1x16xf32, #tpu.memory_space<vmem>>, %arg4: memref<144x32xbf16, #tpu.memory_space<vmem>>, %arg5: memref<1x32xf32, #tpu.memory_space<vmem>>, %arg6: memref<512x128xbf16, #tpu.memory_space<vmem>>, %arg7: memref<1x128xf32, #tpu.memory_space<vmem>>, %arg8: memref<128x10xbf16, #tpu.memory_space<vmem>>, %arg9: memref<1x10xf32, #tpu.memory_space<vmem>>, %arg10: memref<1x1x10xf32, #tpu.memory_space<vmem>>, %arg11: memref<18x18x3xf32, #tpu.memory_space<vmem>>, %arg12: memref<16x16x16xf32, #tpu.memory_space<vmem>>, %arg13: memref<10x10x16xf32, #tpu.memory_space<vmem>>, %arg14: memref<8x8x32xf32, #tpu.memory_space<vmem>>) attributes {dimension_semantics = [#tpu.dimension_semantics<parallel>], iteration_bounds = array<i64: 2>, scalar_prefetch = 0 : i64, scratch_operands = 4 : i64, tpu.core_type = #tpu.core_type<tc>, window_params = [{transform_indices = @transform_0, window_bounds = array<i64: 1, 16, 16, 3>}, {pipeline_mode = #tpu.pipeline_mode<synchronous>, transform_indices = @transform_1, window_bounds = array<i64: 27, 16>}, {pipeline_mode = #tpu.pipeline_mode<synchronous>, transform_indices = @transform_2, window_bounds = array<i64: 1, 16>}, {pipeline_mode = #tpu.pipeline_mode<synchronous>, transform_indices = @transform_3, window_bounds = array<i64: 144, 32>}, {pipeline_mode = #tpu.pipeline_mode<synchronous>, transform_indices = @transform_4, window_bounds = array<i64: 1, 32>}, {pipeline_mode = #tpu.pipeline_mode<synchronous>, transform_indices = @transform_5, window_bounds = array<i64: 512, 128>}, {pipeline_mode = #tpu.pipeline_mode<synchronous>, transform_indices = @transform_6, window_bounds = array<i64: 1, 128>}, {pipeline_mode = #tpu.pipeline_mode<synchronous>, transform_indices = @transform_7, window_bounds = array<i64: 128, 10>}, {pipeline_mode = #tpu.pipeline_mode<synchronous>, transform_indices = @transform_8, window_bounds = array<i64: 1, 10>}, {transform_indices = @transform_9, window_bounds = array<i64: 1, 1, 10>}]} {
    %cst = arith.constant 0.000000e+00 : f32
    %0 = vector.broadcast %cst : f32 to vector<18x18x3xf32>
    %c0 = arith.constant 0 : index
    %c0_0 = arith.constant 0 : index
    %c0_1 = arith.constant 0 : index
    %1 = vector.load %arg11[%c0, %c0_0, %c0_1] : memref<18x18x3xf32, #tpu.memory_space<vmem>>, vector<18x18x3xf32>
    tpu.vector_store %arg11[%c0, %c0_0, %c0_1], %0 {strides = array<i32>} : memref<18x18x3xf32, #tpu.memory_space<vmem>>, vector<18x18x3xf32>,
    %c0_2 = arith.constant 0 : index
    %c0_3 = arith.constant 0 : index
    %c0_4 = arith.constant 0 : index
    %c0_5 = arith.constant 0 : index
    %2 = vector.load %arg1[%c0_2, %c0_3, %c0_4, %c0_5] : memref<1x16x16x3xf32, #tpu.memory_space<vmem>>, vector<1x16x16x3xf32>
    %3 = vector.shape_cast %2 : vector<1x16x16x3xf32> to vector<16x16x3xf32>
    %c1 = arith.constant 1 : index
    %c1_6 = arith.constant 1 : index
    %c0_7 = arith.constant 0 : index
    %4 = vector.load %arg11[%c1, %c1_6, %c0_7] : memref<18x18x3xf32, #tpu.memory_space<vmem>>, vector<16x16x3xf32>
    tpu.vector_store %arg11[%c1, %c1_6, %c0_7], %3 {strides = array<i32>} : memref<18x18x3xf32, #tpu.memory_space<vmem>>, vector<16x16x3xf32>,
    %c0_8 = arith.constant 0 : index
    %c0_9 = arith.constant 0 : index
    %c0_10 = arith.constant 0 : index
    %5 = vector.load %arg11[%c0_8, %c0_9, %c0_10] : memref<18x18x3xf32, #tpu.memory_space<vmem>>, vector<18x18x3xf32>
    %6 = vector.extract_strided_slice %5 {offsets = [0, 0, 0], sizes = [16, 16, 3], strides = [1, 1, 1]} : vector<18x18x3xf32> to vector<16x16x3xf32>
    %7 = vector.extract_strided_slice %5 {offsets = [0, 1, 0], sizes = [16, 16, 3], strides = [1, 1, 1]} : vector<18x18x3xf32> to vector<16x16x3xf32>
    %8 = vector.extract_strided_slice %5 {offsets = [0, 2, 0], sizes = [16, 16, 3], strides = [1, 1, 1]} : vector<18x18x3xf32> to vector<16x16x3xf32>
    %9 = vector.extract_strided_slice %5 {offsets = [1, 0, 0], sizes = [16, 16, 3], strides = [1, 1, 1]} : vector<18x18x3xf32> to vector<16x16x3xf32>
    %10 = vector.extract_strided_slice %5 {offsets = [1, 1, 0], sizes = [16, 16, 3], strides = [1, 1, 1]} : vector<18x18x3xf32> to vector<16x16x3xf32>
    %11 = vector.extract_strided_slice %5 {offsets = [1, 2, 0], sizes = [16, 16, 3], strides = [1, 1, 1]} : vector<18x18x3xf32> to vector<16x16x3xf32>
    %12 = vector.extract_strided_slice %5 {offsets = [2, 0, 0], sizes = [16, 16, 3], strides = [1, 1, 1]} : vector<18x18x3xf32> to vector<16x16x3xf32>
    %13 = vector.extract_strided_slice %5 {offsets = [2, 1, 0], sizes = [16, 16, 3], strides = [1, 1, 1]} : vector<18x18x3xf32> to vector<16x16x3xf32>
    %14 = vector.extract_strided_slice %5 {offsets = [2, 2, 0], sizes = [16, 16, 3], strides = [1, 1, 1]} : vector<18x18x3xf32> to vector<16x16x3xf32>
    %15 = tpu.concatenate %6, %7, %8, %9, %10, %11, %12, %13, %14 in 2 : vector<16x16x3xf32>, vector<16x16x3xf32>, vector<16x16x3xf32>, vector<16x16x3xf32>, vector<16x16x3xf32>, vector<16x16x3xf32>, vector<16x16x3xf32>, vector<16x16x3xf32>, vector<16x16x3xf32> -> vector<16x16x27xf32>
    %16 = arith.truncf %15 : vector<16x16x27xf32> to vector<16x16x27xbf16>
    %c0_11 = arith.constant 0 : index
    %c0_12 = arith.constant 0 : index
    %17 = vector.load %arg2[%c0_11, %c0_12] : memref<27x16xbf16, #tpu.memory_space<vmem>>, vector<27x16xbf16>
    %cst_13 = arith.constant dense<0.000000e+00> : vector<16x16x16xf32>
    %18 = tpu.matmul %16, %17, %cst_13 {dimension_numbers = #tpu.dot_dimension_numbers<[2], [0], [0, 1], [1], [0, 0, 0, 1, 1, 1], [], []>} : vector<16x16x27xbf16>, vector<27x16xbf16>, vector<16x16x16xf32> -> vector<16x16x16xf32>
    %c0_14 = arith.constant 0 : index
    %c0_15 = arith.constant 0 : index
    %19 = vector.load %arg3[%c0_14, %c0_15] : memref<1x16xf32, #tpu.memory_space<vmem>>, vector<1x16xf32>
    %20 = vector.shape_cast %19 : vector<1x16xf32> to vector<16xf32>
    %21 = vector.shape_cast %20 : vector<16xf32> to vector<1x1x16xf32>
    %22 = vector.broadcast %21 : vector<1x1x16xf32> to vector<16x16x16xf32>
    %23 = arith.addf %18, %22 : vector<16x16x16xf32>
    %cst_16 = arith.constant 0.000000e+00 : f32
    %24 = vector.broadcast %cst_16 : f32 to vector<16x16x16xf32>
    %25 = arith.maximumf %23, %24 : vector<16x16x16xf32>
    %c0_17 = arith.constant 0 : index
    %c0_18 = arith.constant 0 : index
    %c0_19 = arith.constant 0 : index
    %26 = vector.load %arg12[%c0_17, %c0_18, %c0_19] : memref<16x16x16xf32, #tpu.memory_space<vmem>>, vector<16x16x16xf32>
    tpu.vector_store %arg12[%c0_17, %c0_18, %c0_19], %25 {strides = array<i32>} : memref<16x16x16xf32, #tpu.memory_space<vmem>>, vector<16x16x16xf32>,
    %c0_20 = arith.constant 0 : index
    %c0_21 = arith.constant 0 : index
    %c0_22 = arith.constant 0 : index
    %27 = tpu.strided_load %arg12[%c0_20, %c0_21, %c0_22] {strides = array<i32: 1, 2, 1>} : memref<16x16x16xf32, #tpu.memory_space<vmem>>, vector<16x8x16xf32>
    %c0_23 = arith.constant 0 : index
    %c1_24 = arith.constant 1 : index
    %c0_25 = arith.constant 0 : index
    %28 = tpu.strided_load %arg12[%c0_23, %c1_24, %c0_25] {strides = array<i32: 1, 2, 1>} : memref<16x16x16xf32, #tpu.memory_space<vmem>>, vector<16x8x16xf32>
    %29 = arith.maximumf %27, %28 : vector<16x8x16xf32>
    %30 = vector.shape_cast %29 : vector<16x8x16xf32> to vector<8x2x8x16xf32>
    %cst_26 = arith.constant dense<0xFF800000> : vector<8x8x16xf32>
    %31 = vector.multi_reduction <maximumf>, %30, %cst_26 [1] : vector<8x2x8x16xf32> to vector<8x8x16xf32>
    %cst_27 = arith.constant 0.000000e+00 : f32
    %32 = vector.broadcast %cst_27 : f32 to vector<10x10x16xf32>
    %c0_28 = arith.constant 0 : index
    %c0_29 = arith.constant 0 : index
    %c0_30 = arith.constant 0 : index
    %33 = vector.load %arg13[%c0_28, %c0_29, %c0_30] : memref<10x10x16xf32, #tpu.memory_space<vmem>>, vector<10x10x16xf32>
    tpu.vector_store %arg13[%c0_28, %c0_29, %c0_30], %32 {strides = array<i32>} : memref<10x10x16xf32, #tpu.memory_space<vmem>>, vector<10x10x16xf32>,
    %c1_31 = arith.constant 1 : index
    %c1_32 = arith.constant 1 : index
    %c0_33 = arith.constant 0 : index
    %34 = vector.load %arg13[%c1_31, %c1_32, %c0_33] : memref<10x10x16xf32, #tpu.memory_space<vmem>>, vector<8x8x16xf32>
    tpu.vector_store %arg13[%c1_31, %c1_32, %c0_33], %31 {strides = array<i32>} : memref<10x10x16xf32, #tpu.memory_space<vmem>>, vector<8x8x16xf32>,
    %c0_34 = arith.constant 0 : index
    %c0_35 = arith.constant 0 : index
    %c0_36 = arith.constant 0 : index
    %35 = vector.load %arg13[%c0_34, %c0_35, %c0_36] : memref<10x10x16xf32, #tpu.memory_space<vmem>>, vector<10x10x16xf32>
    %36 = vector.extract_strided_slice %35 {offsets = [0, 0, 0], sizes = [8, 8, 16], strides = [1, 1, 1]} : vector<10x10x16xf32> to vector<8x8x16xf32>
    %37 = vector.extract_strided_slice %35 {offsets = [0, 1, 0], sizes = [8, 8, 16], strides = [1, 1, 1]} : vector<10x10x16xf32> to vector<8x8x16xf32>
    %38 = vector.extract_strided_slice %35 {offsets = [0, 2, 0], sizes = [8, 8, 16], strides = [1, 1, 1]} : vector<10x10x16xf32> to vector<8x8x16xf32>
    %39 = vector.extract_strided_slice %35 {offsets = [1, 0, 0], sizes = [8, 8, 16], strides = [1, 1, 1]} : vector<10x10x16xf32> to vector<8x8x16xf32>
    %40 = vector.extract_strided_slice %35 {offsets = [1, 1, 0], sizes = [8, 8, 16], strides = [1, 1, 1]} : vector<10x10x16xf32> to vector<8x8x16xf32>
    %41 = vector.extract_strided_slice %35 {offsets = [1, 2, 0], sizes = [8, 8, 16], strides = [1, 1, 1]} : vector<10x10x16xf32> to vector<8x8x16xf32>
    %42 = vector.extract_strided_slice %35 {offsets = [2, 0, 0], sizes = [8, 8, 16], strides = [1, 1, 1]} : vector<10x10x16xf32> to vector<8x8x16xf32>
    %43 = vector.extract_strided_slice %35 {offsets = [2, 1, 0], sizes = [8, 8, 16], strides = [1, 1, 1]} : vector<10x10x16xf32> to vector<8x8x16xf32>
    %44 = vector.extract_strided_slice %35 {offsets = [2, 2, 0], sizes = [8, 8, 16], strides = [1, 1, 1]} : vector<10x10x16xf32> to vector<8x8x16xf32>
    %45 = tpu.concatenate %36, %37, %38, %39, %40, %41, %42, %43, %44 in 2 : vector<8x8x16xf32>, vector<8x8x16xf32>, vector<8x8x16xf32>, vector<8x8x16xf32>, vector<8x8x16xf32>, vector<8x8x16xf32>, vector<8x8x16xf32>, vector<8x8x16xf32>, vector<8x8x16xf32> -> vector<8x8x144xf32>
    %46 = arith.truncf %45 : vector<8x8x144xf32> to vector<8x8x144xbf16>
    %c0_37 = arith.constant 0 : index
    %c0_38 = arith.constant 0 : index
    %47 = vector.load %arg4[%c0_37, %c0_38] : memref<144x32xbf16, #tpu.memory_space<vmem>>, vector<144x32xbf16>
    %cst_39 = arith.constant dense<0.000000e+00> : vector<8x8x32xf32>
    %48 = tpu.matmul %46, %47, %cst_39 {dimension_numbers = #tpu.dot_dimension_numbers<[2], [0], [0, 1], [1], [0, 0, 0, 1, 1, 1], [], []>} : vector<8x8x144xbf16>, vector<144x32xbf16>, vector<8x8x32xf32> -> vector<8x8x32xf32>
    %c0_40 = arith.constant 0 : index
    %c0_41 = arith.constant 0 : index
    %49 = vector.load %arg5[%c0_40, %c0_41] : memref<1x32xf32, #tpu.memory_space<vmem>>, vector<1x32xf32>
    %50 = vector.shape_cast %49 : vector<1x32xf32> to vector<32xf32>
    %51 = vector.shape_cast %50 : vector<32xf32> to vector<1x1x32xf32>
    %52 = vector.broadcast %51 : vector<1x1x32xf32> to vector<8x8x32xf32>
    %53 = arith.addf %48, %52 : vector<8x8x32xf32>
    %cst_42 = arith.constant 0.000000e+00 : f32
    %54 = vector.broadcast %cst_42 : f32 to vector<8x8x32xf32>
    %55 = arith.maximumf %53, %54 : vector<8x8x32xf32>
    %c0_43 = arith.constant 0 : index
    %c0_44 = arith.constant 0 : index
    %c0_45 = arith.constant 0 : index
    %56 = vector.load %arg14[%c0_43, %c0_44, %c0_45] : memref<8x8x32xf32, #tpu.memory_space<vmem>>, vector<8x8x32xf32>
    tpu.vector_store %arg14[%c0_43, %c0_44, %c0_45], %55 {strides = array<i32>} : memref<8x8x32xf32, #tpu.memory_space<vmem>>, vector<8x8x32xf32>,
    %c0_46 = arith.constant 0 : index
    %c0_47 = arith.constant 0 : index
    %c0_48 = arith.constant 0 : index
    %57 = tpu.strided_load %arg14[%c0_46, %c0_47, %c0_48] {strides = array<i32: 1, 2, 1>} : memref<8x8x32xf32, #tpu.memory_space<vmem>>, vector<8x4x32xf32>
    %c0_49 = arith.constant 0 : index
    %c1_50 = arith.constant 1 : index
    %c0_51 = arith.constant 0 : index
    %58 = tpu.strided_load %arg14[%c0_49, %c1_50, %c0_51] {strides = array<i32: 1, 2, 1>} : memref<8x8x32xf32, #tpu.memory_space<vmem>>, vector<8x4x32xf32>
    %59 = arith.maximumf %57, %58 : vector<8x4x32xf32>
    %60 = vector.shape_cast %59 : vector<8x4x32xf32> to vector<4x2x4x32xf32>
    %cst_52 = arith.constant dense<0xFF800000> : vector<4x4x32xf32>
    %61 = vector.multi_reduction <maximumf>, %60, %cst_52 [1] : vector<4x2x4x32xf32> to vector<4x4x32xf32>
    %62 = vector.extract_strided_slice %61 {offsets = [0, 0, 0], sizes = [1, 1, 32], strides = [1, 1, 1]} : vector<4x4x32xf32> to vector<1x1x32xf32>
    %63 = vector.shape_cast %62 : vector<1x1x32xf32> to vector<1x32xf32>
    %64 = vector.extract_strided_slice %61 {offsets = [0, 1, 0], sizes = [1, 1, 32], strides = [1, 1, 1]} : vector<4x4x32xf32> to vector<1x1x32xf32>
    %65 = vector.shape_cast %64 : vector<1x1x32xf32> to vector<1x32xf32>
    %66 = vector.extract_strided_slice %61 {offsets = [0, 2, 0], sizes = [1, 1, 32], strides = [1, 1, 1]} : vector<4x4x32xf32> to vector<1x1x32xf32>
    %67 = vector.shape_cast %66 : vector<1x1x32xf32> to vector<1x32xf32>
    %68 = vector.extract_strided_slice %61 {offsets = [0, 3, 0], sizes = [1, 1, 32], strides = [1, 1, 1]} : vector<4x4x32xf32> to vector<1x1x32xf32>
    %69 = vector.shape_cast %68 : vector<1x1x32xf32> to vector<1x32xf32>
    %70 = vector.extract_strided_slice %61 {offsets = [1, 0, 0], sizes = [1, 1, 32], strides = [1, 1, 1]} : vector<4x4x32xf32> to vector<1x1x32xf32>
    %71 = vector.shape_cast %70 : vector<1x1x32xf32> to vector<1x32xf32>
    %72 = vector.extract_strided_slice %61 {offsets = [1, 1, 0], sizes = [1, 1, 32], strides = [1, 1, 1]} : vector<4x4x32xf32> to vector<1x1x32xf32>
    %73 = vector.shape_cast %72 : vector<1x1x32xf32> to vector<1x32xf32>
    %74 = vector.extract_strided_slice %61 {offsets = [1, 2, 0], sizes = [1, 1, 32], strides = [1, 1, 1]} : vector<4x4x32xf32> to vector<1x1x32xf32>
    %75 = vector.shape_cast %74 : vector<1x1x32xf32> to vector<1x32xf32>
    %76 = vector.extract_strided_slice %61 {offsets = [1, 3, 0], sizes = [1, 1, 32], strides = [1, 1, 1]} : vector<4x4x32xf32> to vector<1x1x32xf32>
    %77 = vector.shape_cast %76 : vector<1x1x32xf32> to vector<1x32xf32>
    %78 = vector.extract_strided_slice %61 {offsets = [2, 0, 0], sizes = [1, 1, 32], strides = [1, 1, 1]} : vector<4x4x32xf32> to vector<1x1x32xf32>
    %79 = vector.shape_cast %78 : vector<1x1x32xf32> to vector<1x32xf32>
    %80 = vector.extract_strided_slice %61 {offsets = [2, 1, 0], sizes = [1, 1, 32], strides = [1, 1, 1]} : vector<4x4x32xf32> to vector<1x1x32xf32>
    %81 = vector.shape_cast %80 : vector<1x1x32xf32> to vector<1x32xf32>
    %82 = vector.extract_strided_slice %61 {offsets = [2, 2, 0], sizes = [1, 1, 32], strides = [1, 1, 1]} : vector<4x4x32xf32> to vector<1x1x32xf32>
    %83 = vector.shape_cast %82 : vector<1x1x32xf32> to vector<1x32xf32>
    %84 = vector.extract_strided_slice %61 {offsets = [2, 3, 0], sizes = [1, 1, 32], strides = [1, 1, 1]} : vector<4x4x32xf32> to vector<1x1x32xf32>
    %85 = vector.shape_cast %84 : vector<1x1x32xf32> to vector<1x32xf32>
    %86 = vector.extract_strided_slice %61 {offsets = [3, 0, 0], sizes = [1, 1, 32], strides = [1, 1, 1]} : vector<4x4x32xf32> to vector<1x1x32xf32>
    %87 = vector.shape_cast %86 : vector<1x1x32xf32> to vector<1x32xf32>
    %88 = vector.extract_strided_slice %61 {offsets = [3, 1, 0], sizes = [1, 1, 32], strides = [1, 1, 1]} : vector<4x4x32xf32> to vector<1x1x32xf32>
    %89 = vector.shape_cast %88 : vector<1x1x32xf32> to vector<1x32xf32>
    %90 = vector.extract_strided_slice %61 {offsets = [3, 2, 0], sizes = [1, 1, 32], strides = [1, 1, 1]} : vector<4x4x32xf32> to vector<1x1x32xf32>
    %91 = vector.shape_cast %90 : vector<1x1x32xf32> to vector<1x32xf32>
    %92 = vector.extract_strided_slice %61 {offsets = [3, 3, 0], sizes = [1, 1, 32], strides = [1, 1, 1]} : vector<4x4x32xf32> to vector<1x1x32xf32>
    %93 = vector.shape_cast %92 : vector<1x1x32xf32> to vector<1x32xf32>
    %94 = tpu.concatenate %63, %65, %67, %69, %71, %73, %75, %77, %79, %81, %83, %85, %87, %89, %91, %93 in 1 : vector<1x32xf32>, vector<1x32xf32>, vector<1x32xf32>, vector<1x32xf32>, vector<1x32xf32>, vector<1x32xf32>, vector<1x32xf32>, vector<1x32xf32>, vector<1x32xf32>, vector<1x32xf32>, vector<1x32xf32>, vector<1x32xf32>, vector<1x32xf32>, vector<1x32xf32>, vector<1x32xf32>, vector<1x32xf32> -> vector<1x512xf32>
    %95 = arith.truncf %94 : vector<1x512xf32> to vector<1x512xbf16>
    %c0_53 = arith.constant 0 : index
    %c0_54 = arith.constant 0 : index
    %96 = vector.load %arg6[%c0_53, %c0_54] : memref<512x128xbf16, #tpu.memory_space<vmem>>, vector<512x128xbf16>
    %cst_55 = arith.constant dense<0.000000e+00> : vector<1x128xf32>
    %97 = tpu.matmul %95, %96, %cst_55 {dimension_numbers = #tpu.dot_dimension_numbers<[1], [0], [0], [1], [0, 0, 1, 1], [], []>} : vector<1x512xbf16>, vector<512x128xbf16>, vector<1x128xf32> -> vector<1x128xf32>
    %c0_56 = arith.constant 0 : index
    %c0_57 = arith.constant 0 : index
    %98 = vector.load %arg7[%c0_56, %c0_57] : memref<1x128xf32, #tpu.memory_space<vmem>>, vector<1x128xf32>
    %99 = arith.addf %97, %98 : vector<1x128xf32>
    %cst_58 = arith.constant 0.000000e+00 : f32
    %100 = vector.broadcast %cst_58 : f32 to vector<1x128xf32>
    %101 = arith.maximumf %99, %100 : vector<1x128xf32>
    %102 = arith.truncf %101 : vector<1x128xf32> to vector<1x128xbf16>
    %c0_59 = arith.constant 0 : index
    %c0_60 = arith.constant 0 : index
    %103 = vector.load %arg8[%c0_59, %c0_60] : memref<128x10xbf16, #tpu.memory_space<vmem>>, vector<128x10xbf16>
    %cst_61 = arith.constant dense<0.000000e+00> : vector<1x10xf32>
    %104 = tpu.matmul %102, %103, %cst_61 {dimension_numbers = #tpu.dot_dimension_numbers<[1], [0], [0], [1], [0, 0, 1, 1], [], []>} : vector<1x128xbf16>, vector<128x10xbf16>, vector<1x10xf32> -> vector<1x10xf32>
    %c0_62 = arith.constant 0 : index
    %c0_63 = arith.constant 0 : index
    %105 = vector.load %arg9[%c0_62, %c0_63] : memref<1x10xf32, #tpu.memory_space<vmem>>, vector<1x10xf32>
    %106 = arith.addf %104, %105 : vector<1x10xf32>
    %c0_64 = arith.constant 0 : index
    %c0_65 = arith.constant 0 : index
    %c0_66 = arith.constant 0 : index
    %107 = vector.load %arg10[%c0_64, %c0_65, %c0_66] : memref<1x1x10xf32, #tpu.memory_space<vmem>>, vector<1x1x10xf32>
    %108 = vector.shape_cast %107 : vector<1x1x10xf32> to vector<1x10xf32>
    %109 = vector.shape_cast %106 : vector<1x10xf32> to vector<1x1x10xf32>
    tpu.vector_store %arg10[%c0_64, %c0_65, %c0_66], %109 {strides = array<i32>} : memref<1x1x10xf32, #tpu.memory_space<vmem>>, vector<1x1x10xf32>,
    return
  }
  func.func @transform_0(%arg0: i32) -> (i32, i32, i32, i32) {
    %c0_i32 = arith.constant 0 : i32
    %c0_i32_0 = arith.constant 0 : i32
    %c0_i32_1 = arith.constant 0 : i32
    %c0_i32_2 = arith.constant 0 : i32
    return %arg0, %c0_i32, %c0_i32_0, %c0_i32_1 : i32, i32, i32, i32
  }
  func.func @transform_1(%arg0: i32) -> (i32, i32) {
    %c0_i32 = arith.constant 0 : i32
    %c0_i32_0 = arith.constant 0 : i32
    %c0_i32_1 = arith.constant 0 : i32
    return %c0_i32, %c0_i32_0 : i32, i32
  }
  func.func @transform_2(%arg0: i32) -> (i32, i32) {
    %c0_i32 = arith.constant 0 : i32
    %c0_i32_0 = arith.constant 0 : i32
    %c0_i32_1 = arith.constant 0 : i32
    return %c0_i32, %c0_i32_0 : i32, i32
  }
  func.func @transform_3(%arg0: i32) -> (i32, i32) {
    %c0_i32 = arith.constant 0 : i32
    %c0_i32_0 = arith.constant 0 : i32
    %c0_i32_1 = arith.constant 0 : i32
    return %c0_i32, %c0_i32_0 : i32, i32
  }
  func.func @transform_4(%arg0: i32) -> (i32, i32) {
    %c0_i32 = arith.constant 0 : i32
    %c0_i32_0 = arith.constant 0 : i32
    %c0_i32_1 = arith.constant 0 : i32
    return %c0_i32, %c0_i32_0 : i32, i32
  }
  func.func @transform_5(%arg0: i32) -> (i32, i32) {
    %c0_i32 = arith.constant 0 : i32
    %c0_i32_0 = arith.constant 0 : i32
    %c0_i32_1 = arith.constant 0 : i32
    return %c0_i32, %c0_i32_0 : i32, i32
  }
  func.func @transform_6(%arg0: i32) -> (i32, i32) {
    %c0_i32 = arith.constant 0 : i32
    %c0_i32_0 = arith.constant 0 : i32
    %c0_i32_1 = arith.constant 0 : i32
    return %c0_i32, %c0_i32_0 : i32, i32
  }
  func.func @transform_7(%arg0: i32) -> (i32, i32) {
    %c0_i32 = arith.constant 0 : i32
    %c0_i32_0 = arith.constant 0 : i32
    %c0_i32_1 = arith.constant 0 : i32
    return %c0_i32, %c0_i32_0 : i32, i32
  }
  func.func @transform_8(%arg0: i32) -> (i32, i32) {
    %c0_i32 = arith.constant 0 : i32
    %c0_i32_0 = arith.constant 0 : i32
    %c0_i32_1 = arith.constant 0 : i32
    return %c0_i32, %c0_i32_0 : i32, i32
  }
  func.func @transform_9(%arg0: i32) -> (i32, i32, i32) {
    %c0_i32 = arith.constant 0 : i32
    %c0_i32_0 = arith.constant 0 : i32
    %c0_i32_1 = arith.constant 0 : i32
    return %arg0, %c0_i32, %c0_i32_0 : i32, i32, i32
  }
}

</mosaic_0001>

<llo_original>
// kernel: cnn_forward.1
$region0: #{cnn_forward.1}
  #allocation0 [shape = 'u32[]', space=smem, size = 0x4, offset = 0x4, fixed_abs, tag = 'smem constant byte address 0x4 - core index']
  #allocation1 [shape = 'u32[144,128]{1,0:T(1,128)}', space=vmem, size = 0x12000, scoped, tag = 'internal scratch']
  #allocation2 [shape = 'f32[18,18,3]{2,1,0:T(8,128)}', space=vmem, size = 0x36000, scoped, tag = 'scratch operand']
  #allocation3 [shape = 'f32[16,16,16]{2,1,0:T(8,128)}', space=vmem, size = 0x20000, scoped, tag = 'scratch operand']
  #allocation4 [shape = 'f32[10,10,16]{2,1,0:T(8,128)}', space=vmem, size = 0x14000, scoped, tag = 'scratch operand']
  #allocation5 [shape = 'f32[8,8,32]{2,1,0:T(8,128)}', space=vmem, size = 0x8000, scoped, tag = 'scratch operand']
  %s0 = inlined_call_operand.vmem [shape: f32[2,16,16,3], index: 0, kind: input, shape index: {}]
  %s1 = inlined_call_operand.vmem [shape: bf16[27,16], index: 1, kind: input, shape index: {}]
  %s2 = inlined_call_operand.vmem [shape: f32[1,16], index: 2, kind: input, shape index: {}]
  %s3 = inlined_call_operand.vmem [shape: bf16[144,32], index: 3, kind: input, shape index: {}]
  %s4 = inlined_call_operand.vmem [shape: f32[1,32], index: 4, kind: input, shape index: {}]
  %s5 = inlined_call_operand.vmem [shape: bf16[512,128], index: 5, kind: input, shape index: {}]
  %s6 = inlined_call_operand.vmem [shape: f32[1,128], index: 6, kind: input, shape index: {}]
  %s7 = inlined_call_operand.vmem [shape: bf16[128,10], index: 7, kind: input, shape index: {}]
  %s8 = inlined_call_operand.vmem [shape: f32[1,10], index: 8, kind: input, shape index: {}]
  %s9 = inlined_call_operand.hbm [shape: f32[2,1,10], index: 9, kind: output, shape index: {}]
  %s10 = sld [smem:[#allocation0]]
  $region69: #{cnn_forward.1} parent=0
    _
  %s12 = ssub.s32 1, %s10
  %s13 = scalar_select 0, %s12, %s10
  $region1: #{cnn_forward.1} parent=0
    #allocation6 [shape = 'u8[1024]{0}', space=vmem, size = 0x400, scoped, tag = 'output window, operand 0']
    #allocation7 [shape = 's32[2]{0}', space=sflag, size = 0x8, scoped, tag = 'scoped memory for cnn_forward.1']
    %14 = vsyncpa [#allocation7], 0
    %s15 = scalar_lea.sflag [#allocation7], 1
    %16 = vsyncpa %s15, 0
    loop: start=0, step=1, limit=4
    $region2: #{cnn_forward.1} parent=1 // loop_pre_header
      _
    $region3: #{cnn_forward.1} parent=1 // loop_header
      %s18 = sphi 0, %s22
      %p19 = scmp.ge.s32.totalorder %s18, 4
      %s28 = sphi 0, %s30
      %s31 = sphi 0, %s28
      %s32 = sphi 0, %s31
      %s48 = sphi 0, %s32
      %s52 = sphi 0, %s52
      %s54 = sphi 0, %s52
      %s55 = sphi 0, %s54
      %s69 = sphi 0, %s55
      %s73 = sphi 0, %s73
      %s75 = sphi 0, %s73
      %s76 = sphi 0, %s75
      %s90 = sphi 0, %s76
      %s94 = sphi 0, %s94
      %s96 = sphi 0, %s94
      %s97 = sphi 0, %s96
      %s111 = sphi 0, %s97
      %s115 = sphi 0, %s115
      %s117 = sphi 0, %s115
      %s118 = sphi 0, %s117
      %s132 = sphi 0, %s118
      %s136 = sphi 0, %s136
      %s138 = sphi 0, %s136
      %s139 = sphi 0, %s138
      %s153 = sphi 0, %s139
      %s157 = sphi 0, %s157
      %s159 = sphi 0, %s157
      %s160 = sphi 0, %s159
      %s174 = sphi 0, %s160
      %s178 = sphi 0, %s178
      %s180 = sphi 0, %s178
      %s181 = sphi 0, %s180
      %s195 = sphi 0, %s181
      %s199 = sphi 0, %s199
      %s201 = sphi 0, %s199
      %s202 = sphi 0, %s201
      %s216 = sphi 0, %s202
      %s222 = sphi 0, %s224
      %s225 = sphi 0, %s222
      %s226 = sphi 0, %s225
      %s242 = sphi 0, %s226
    $region4: #{cnn_forward.1} parent=1 // loop_header_branch
      %21 = sbr.rel (%p19) target = $region8
    $region5: #{cnn_forward.1} parent=1 // loop_body
      %s23 = ssub.s32 %s18, 1
      %s24 = ssub.s32 %s18, 2
      %s25 = sadd.s32 %s18, 1
      %s26 = ssub.s32 %s18, %s25
      %p27 = scmp.eq.s32.totalorder %s26, 0
      %s29 = sadd.s32 %s28, 1
      %s30 = scalar_select %p27, %s28, %s29
      %p33 = pneg %p27
      %p34 = scmp.eq.s32.totalorder %s18, 1
      %p35 = por %p33, %p34
      %p36 = scmp.ne.s32.totalorder %s28, %s31
      %p37 = scmp.eq.s32.totalorder %s18, 0
      %p38 = por %p36, %p37
      %p39 = scmp.ne.s32.totalorder %s28, %s31
      %p40 = scmp.eq.s32.totalorder %s23, 1
      %p41 = por %p39, %p40
      %p42 = scmp.ne.s32.totalorder %s31, %s32
      %p43 = scmp.eq.s32.totalorder %s23, 0
      %p44 = por %p42, %p43
      %p45 = scmp.ne.s32.totalorder %s31, %s32
      %p46 = scmp.eq.s32.totalorder %s24, 1
      %p47 = por %p45, %p46
      %p49 = scmp.ne.s32.totalorder %s32, %s48
      %p50 = scmp.eq.s32.totalorder %s24, 0
      %p51 = por %p49, %p50
      %s53 = sadd.s32 %s52, 1
      %p56 = scmp.eq.s32.totalorder %s18, 1
      %p57 = scmp.ne.s32.totalorder %s52, %s54
      %p58 = scmp.eq.s32.totalorder %s18, 0
      %p59 = por %p57, %p58
      %p60 = scmp.ne.s32.totalorder %s52, %s54
      %p61 = scmp.eq.s32.totalorder %s23, 1
      %p62 = por %p60, %p61
      %p63 = scmp.ne.s32.totalorder %s54, %s55
      %p64 = scmp.eq.s32.totalorder %s23, 0
      %p65 = por %p63, %p64
      %p66 = scmp.ne.s32.totalorder %s54, %s55
      %p67 = scmp.eq.s32.totalorder %s24, 1
      %p68 = por %p66, %p67
      %p70 = scmp.ne.s32.totalorder %s55, %s69
      %p71 = scmp.eq.s32.totalorder %s24, 0
      %p72 = por %p70, %p71
      %s74 = sadd.s32 %s73, 1
      %p77 = scmp.eq.s32.totalorder %s18, 1
      %p78 = scmp.ne.s32.totalorder %s73, %s75
      %p79 = scmp.eq.s32.totalorder %s18, 0
      %p80 = por %p78, %p79
      %p81 = scmp.ne.s32.totalorder %s73, %s75
      %p82 = scmp.eq.s32.totalorder %s23, 1
      %p83 = por %p81, %p82
      %p84 = scmp.ne.s32.totalorder %s75, %s76
      %p85 = scmp.eq.s32.totalorder %s23, 0
      %p86 = por %p84, %p85
      %p87 = scmp.ne.s32.totalorder %s75, %s76
      %p88 = scmp.eq.s32.totalorder %s24, 1
      %p89 = por %p87, %p88
      %p91 = scmp.ne.s32.totalorder %s76, %s90
      %p92 = scmp.eq.s32.totalorder %s24, 0
      %p93 = por %p91, %p92
      %s95 = sadd.s32 %s94, 1
      %p98 = scmp.eq.s32.totalorder %s18, 1
      %p99 = scmp.ne.s32.totalorder %s94, %s96
      %p100 = scmp.eq.s32.totalorder %s18, 0
      %p101 = por %p99, %p100
      %p102 = scmp.ne.s32.totalorder %s94, %s96
      %p103 = scmp.eq.s32.totalorder %s23, 1
      %p104 = por %p102, %p103
      %p105 = scmp.ne.s32.totalorder %s96, %s97
      %p106 = scmp.eq.s32.totalorder %s23, 0
      %p107 = por %p105, %p106
      %p108 = scmp.ne.s32.totalorder %s96, %s97
      %p109 = scmp.eq.s32.totalorder %s24, 1
      %p110 = por %p108, %p109
      %p112 = scmp.ne.s32.totalorder %s97, %s111
      %p113 = scmp.eq.s32.totalorder %s24, 0
      %p114 = por %p112, %p113
      %s116 = sadd.s32 %s115, 1
      %p119 = scmp.eq.s32.totalorder %s18, 1
      %p120 = scmp.ne.s32.totalorder %s115, %s117
      %p121 = scmp.eq.s32.totalorder %s18, 0
      %p122 = por %p120, %p121
      %p123 = scmp.ne.s32.totalorder %s115, %s117
      %p124 = scmp.eq.s32.totalorder %s23, 1
      %p125 = por %p123, %p124
      %p126 = scmp.ne.s32.totalorder %s117, %s118
      %p127 = scmp.eq.s32.totalorder %s23, 0
      %p128 = por %p126, %p127
      %p129 = scmp.ne.s32.totalorder %s117, %s118
      %p130 = scmp.eq.s32.totalorder %s24, 1
      %p131 = por %p129, %p130
      %p133 = scmp.ne.s32.totalorder %s118, %s132
      %p134 = scmp.eq.s32.totalorder %s24, 0
      %p135 = por %p133, %p134
      %s137 = sadd.s32 %s136, 1
      %p140 = scmp.eq.s32.totalorder %s18, 1
      %p141 = scmp.ne.s32.totalorder %s136, %s138
      %p142 = scmp.eq.s32.totalorder %s18, 0
      %p143 = por %p141, %p142
      %p144 = scmp.ne.s32.totalorder %s136, %s138
      %p145 = scmp.eq.s32.totalorder %s23, 1
      %p146 = por %p144, %p145
      %p147 = scmp.ne.s32.totalorder %s138, %s139
      %p148 = scmp.eq.s32.totalorder %s23, 0
      %p149 = por %p147, %p148
      %p150 = scmp.ne.s32.totalorder %s138, %s139
      %p151 = scmp.eq.s32.totalorder %s24, 1
      %p152 = por %p150, %p151
      %p154 = scmp.ne.s32.totalorder %s139, %s153
      %p155 = scmp.eq.s32.totalorder %s24, 0
      %p156 = por %p154, %p155
      %s158 = sadd.s32 %s157, 1
      %p161 = scmp.eq.s32.totalorder %s18, 1
      %p162 = scmp.ne.s32.totalorder %s157, %s159
      %p163 = scmp.eq.s32.totalorder %s18, 0
      %p164 = por %p162, %p163
      %p165 = scmp.ne.s32.totalorder %s157, %s159
      %p166 = scmp.eq.s32.totalorder %s23, 1
      %p167 = por %p165, %p166
      %p168 = scmp.ne.s32.totalorder %s159, %s160
      %p169 = scmp.eq.s32.totalorder %s23, 0
      %p170 = por %p168, %p169
      %p171 = scmp.ne.s32.totalorder %s159, %s160
      %p172 = scmp.eq.s32.totalorder %s24, 1
      %p173 = por %p171, %p172
      %p175 = scmp.ne.s32.totalorder %s160, %s174
      %p176 = scmp.eq.s32.totalorder %s24, 0
      %p177 = por %p175, %p176
      %s179 = sadd.s32 %s178, 1
      %p182 = scmp.eq.s32.totalorder %s18, 1
      %p183 = scmp.ne.s32.totalorder %s178, %s180
      %p184 = scmp.eq.s32.totalorder %s18, 0
      %p185 = por %p183, %p184
      %p186 = scmp.ne.s32.totalorder %s178, %s180
      %p187 = scmp.eq.s32.totalorder %s23, 1
      %p188 = por %p186, %p187
      %p189 = scmp.ne.s32.totalorder %s180, %s181
      %p190 = scmp.eq.s32.totalorder %s23, 0
      %p191 = por %p189, %p190
      %p192 = scmp.ne.s32.totalorder %s180, %s181
      %p193 = scmp.eq.s32.totalorder %s24, 1
      %p194 = por %p192, %p193
      %p196 = scmp.ne.s32.totalorder %s181, %s195
      %p197 = scmp.eq.s32.totalorder %s24, 0
      %p198 = por %p196, %p197
      %s200 = sadd.s32 %s199, 1
      %p203 = scmp.eq.s32.totalorder %s18, 1
      %p204 = scmp.ne.s32.totalorder %s199, %s201
      %p205 = scmp.eq.s32.totalorder %s18, 0
      %p206 = por %p204, %p205
      %p207 = scmp.ne.s32.totalorder %s199, %s201
      %p208 = scmp.eq.s32.totalorder %s23, 1
      %p209 = por %p207, %p208
      %p210 = scmp.ne.s32.totalorder %s201, %s202
      %p211 = scmp.eq.s32.totalorder %s23, 0
      %p212 = por %p210, %p211
      %p213 = scmp.ne.s32.totalorder %s201, %s202
      %p214 = scmp.eq.s32.totalorder %s24, 1
      %p215 = por %p213, %p214
      %p217 = scmp.ne.s32.totalorder %s202, %s216
      %p218 = scmp.eq.s32.totalorder %s24, 0
      %p219 = por %p217, %p218
      %s220 = ssub.s32 %s18, %s25
      %p221 = scmp.eq.s32.totalorder %s220, 0
      %s223 = sadd.s32 %s222, 1
      %s224 = scalar_select %p221, %s222, %s223
      %p227 = pneg %p221
      %p228 = scmp.eq.s32.totalorder %s18, 1
      %p229 = por %p227, %p228
      %p230 = scmp.ne.s32.totalorder %s222, %s225
      %p231 = scmp.eq.s32.totalorder %s18, 0
      %p232 = por %p230, %p231
      %p233 = scmp.ne.s32.totalorder %s222, %s225
      %p234 = scmp.eq.s32.totalorder %s23, 1
      %p235 = por %p233, %p234
      %p236 = scmp.ne.s32.totalorder %s225, %s226
      %p237 = scmp.eq.s32.totalorder %s23, 0
      %p238 = por %p236, %p237
      %p239 = scmp.ne.s32.totalorder %s225, %s226
      %p240 = scmp.eq.s32.totalorder %s24, 1
      %p241 = por %p239, %p240
      %p243 = scmp.ne.s32.totalorder %s226, %s242
      %p244 = scmp.eq.s32.totalorder %s24, 0
      %p245 = por %p243, %p244
      %p246 = scmp.le.s32.totalorder 1, %s18
      %p247 = scmp.lt.s32.totalorder %s18, 3
      %p248 = pnand %p246, %p247
      %p249 = pneg %p248
      // Predicated region
      $region9: #{cnn_forward.1} parent=5 // pred_check
        _
      $region10: #{cnn_forward.1} parent=5 // pred_check_branch
        %251 = sbr.rel (%p248) target = $region12
      $region11: #{cnn_forward.1} parent=5 // pred_region
        %s252 = ssub.s32 %s18, 1
        // Predicated region
        $region13: #{cnn_forward.1} parent=11 // pred_check
          %p253 = pneg %p65
        $region14: #{cnn_forward.1} parent=11 // pred_check_branch
          %255 = sbr.rel (%p253) target = $region16
        $region15: #{cnn_forward.1} parent=11 // pred_region
          _
        $region16: #{cnn_forward.1} parent=11 // pred_fallthru
          _
        // Predicated region
        $region17: #{cnn_forward.1} parent=11 // pred_check
          %p256 = pneg %p86
        $region18: #{cnn_forward.1} parent=11 // pred_check_branch
          %258 = sbr.rel (%p256) target = $region20
        $region19: #{cnn_forward.1} parent=11 // pred_region
          _
        $region20: #{cnn_forward.1} parent=11 // pred_fallthru
          _
        // Predicated region
        $region21: #{cnn_forward.1} parent=11 // pred_check
          %p259 = pneg %p107
        $region22: #{cnn_forward.1} parent=11 // pred_check_branch
          %261 = sbr.rel (%p259) target = $region24
        $region23: #{cnn_forward.1} parent=11 // pred_region
          _
        $region24: #{cnn_forward.1} parent=11 // pred_fallthru
          _
        // Predicated region
        $region25: #{cnn_forward.1} parent=11 // pred_check
          %p262 = pneg %p128
        $region26: #{cnn_forward.1} parent=11 // pred_check_branch
          %264 = sbr.rel (%p262) target = $region28
        $region27: #{cnn_forward.1} parent=11 // pred_region
          _
        $region28: #{cnn_forward.1} parent=11 // pred_fallthru
          _
        // Predicated region
        $region29: #{cnn_forward.1} parent=11 // pred_check
          %p265 = pneg %p149
        $region30: #{cnn_forward.1} parent=11 // pred_check_branch
          %267 = sbr.rel (%p265) target = $region32
        $region31: #{cnn_forward.1} parent=11 // pred_region
          _
        $region32: #{cnn_forward.1} parent=11 // pred_fallthru
          _
        // Predicated region
        $region33: #{cnn_forward.1} parent=11 // pred_check
          %p268 = pneg %p170
        $region34: #{cnn_forward.1} parent=11 // pred_check_branch
          %270 = sbr.rel (%p268) target = $region36
        $region35: #{cnn_forward.1} parent=11 // pred_region
          _
        $region36: #{cnn_forward.1} parent=11 // pred_fallthru
          _
        // Predicated region
        $region37: #{cnn_forward.1} parent=11 // pred_check
          %p271 = pneg %p191
        $region38: #{cnn_forward.1} parent=11 // pred_check_branch
          %273 = sbr.rel (%p271) target = $region40
        $region39: #{cnn_forward.1} parent=11 // pred_region
          _
        $region40: #{cnn_forward.1} parent=11 // pred_fallthru
          _
        // Predicated region
        $region41: #{cnn_forward.1} parent=11 // pred_check
          %p274 = pneg %p212
        $region42: #{cnn_forward.1} parent=11 // pred_check_branch
          %276 = sbr.rel (%p274) target = $region44
        $region43: #{cnn_forward.1} parent=11 // pred_region
          _
        $region44: #{cnn_forward.1} parent=11 // pred_fallthru
          _
      $region12: #{cnn_forward.1} parent=5 // pred_fallthru
        _
      %p277 = scmp.lt.s32.totalorder %s18, 2
      // Predicated region
      $region45: #{cnn_forward.1} parent=5 // pred_check
        %p278 = pneg %p277
      $region46: #{cnn_forward.1} parent=5 // pred_check_branch
        %280 = sbr.rel (%p278) target = $region48
      $region47: #{cnn_forward.1} parent=5 // pred_region
        // Predicated region
        $region49: #{cnn_forward.1} parent=47 // pred_check
          %p281 = pneg %p38
        $region50: #{cnn_forward.1} parent=47 // pred_check_branch
          %283 = sbr.rel (%p281) target = $region52
        $region51: #{cnn_forward.1} parent=47 // pred_region
          %p284 = scmp.lt.s32.totalorder %s18, 1
          %s285 = scalar_select %p284, %s18, 1
          %s286 = smul.addr %s285, 32
          %s287 = smul.addr %s286, 8
          %s288 = scalar_lea.vmem %s0, %s287
        $region52: #{cnn_forward.1} parent=47 // pred_fallthru
          _
      $region48: #{cnn_forward.1} parent=5 // pred_fallthru
        _
      %p289 = scmp.le.s32.totalorder 1, %s18
      %p290 = scmp.lt.s32.totalorder %s18, 3
      %p291 = pnand %p289, %p290
      %p292 = pneg %p291
      // Predicated region
      $region53: #{cnn_forward.1} parent=5 // pred_check
        _
      $region54: #{cnn_forward.1} parent=5 // pred_check_branch
        %294 = sbr.rel (%p291) target = $region56
      $region55: #{cnn_forward.1} parent=5 // pred_region
        %s295 = ssub.s32 %s18, 1
        %p296 = scmp.lt.s32.totalorder %s23, 1
        %s297 = scalar_select %p296, %s23, 1
        %s298 = smul.addr %s297, 32
        %s299 = smul.addr %s298, 8
        %s300 = scalar_lea.vmem %s0, %s299
        %p301 = pneg %p44
        %p302 = pneg %p41
        %p303 = pneg %p65
        %p304 = pneg %p62
        %p305 = pneg %p86
        %p306 = pneg %p83
        %p307 = pneg %p107
        %p308 = pneg %p104
        %p309 = pneg %p128
        %p310 = pneg %p125
        %p311 = pneg %p149
        %p312 = pneg %p146
        %p313 = pneg %p170
        %p314 = pneg %p167
        %p315 = pneg %p191
        %p316 = pneg %p188
        %p317 = pneg %p212
        %p318 = pneg %p209
        %p319 = pneg %p238
        %p320 = pneg %p235
        %s321 = sand.u32 %s225, 1
        %s322 = scalar_lea.sflag [#allocation7], %s321
        %s323 = sand.u32 %s225, 1
        %s324 = scalar_lea.vmem [#allocation6], %s323
        %p325 = scmp.lt.s32.totalorder %s23, 1
        %s326 = scalar_select %p325, %s23, 1
        %s327 = smul.addr %s326, 32
        %s328 = smul.addr %s327, 8
        %s329 = scalar_lea.vmem %s0, %s328
        %vm331 = vcmask 23552
        %332 = vst.msk [vmem:[#allocation2] sm:$0xff] %vm331, 0.0
        %333 = vst.msk [vmem:[#allocation2 + $0x8] sm:$0xff] %vm331, 0.0
        %vm334 = vcmask 17408
        %335 = vst.msk [vmem:[#allocation2 + $0x10] sm:$0x3] %vm334, 0.0
        %336 = vst.msk [vmem:[#allocation2 + $0x18] sm:$0xff] %vm331, 0.0
        %337 = vst.msk [vmem:[#allocation2 + $0x20] sm:$0xff] %vm331, 0.0
        %338 = vst.msk [vmem:[#allocation2 + $0x28] sm:$0x3] %vm334, 0.0
        %339 = vst.msk [vmem:[#allocation2 + $0x30] sm:$0xff] %vm331, 0.0
        %340 = vst.msk [vmem:[#allocation2 + $0x38] sm:$0xff] %vm331, 0.0
        %341 = vst.msk [vmem:[#allocation2 + $0x40] sm:$0x3] %vm334, 0.0
        %342 = vst.msk [vmem:[#allocation2 + $0x48] sm:$0xff] %vm331, 0.0
        %343 = vst.msk [vmem:[#allocation2 + $0x50] sm:$0xff] %vm331, 0.0
        %344 = vst.msk [vmem:[#allocation2 + $0x58] sm:$0x3] %vm334, 0.0
        %345 = vst.msk [vmem:[#allocation2 + $0x60] sm:$0xff] %vm331, 0.0
        %346 = vst.msk [vmem:[#allocation2 + $0x68] sm:$0xff] %vm331, 0.0
        %347 = vst.msk [vmem:[#allocation2 + $0x70] sm:$0x3] %vm334, 0.0
        %348 = vst.msk [vmem:[#allocation2 + $0x78] sm:$0xff] %vm331, 0.0
        %349 = vst.msk [vmem:[#allocation2 + $0x80] sm:$0xff] %vm331, 0.0
        %350 = vst.msk [vmem:[#allocation2 + $0x88] sm:$0x3] %vm334, 0.0
        %351 = vst.msk [vmem:[#allocation2 + $0x90] sm:$0xff] %vm331, 0.0
        %352 = vst.msk [vmem:[#allocation2 + $0x98] sm:$0xff] %vm331, 0.0
        %353 = vst.msk [vmem:[#allocation2 + $0xa0] sm:$0x3] %vm334, 0.0
        %354 = vst.msk [vmem:[#allocation2 + $0xa8] sm:$0xff] %vm331, 0.0
        %355 = vst.msk [vmem:[#allocation2 + $0xb0] sm:$0xff] %vm331, 0.0
        %356 = vst.msk [vmem:[#allocation2 + $0xb8] sm:$0x3] %vm334, 0.0
        %357 = vst.msk [vmem:[#allocation2 + $0xc0] sm:$0xff] %vm331, 0.0
        %358 = vst.msk [vmem:[#allocation2 + $0xc8] sm:$0xff] %vm331, 0.0
        %359 = vst.msk [vmem:[#allocation2 + $0xd0] sm:$0x3] %vm334, 0.0
        %360 = vst.msk [vmem:[#allocation2 + $0xd8] sm:$0xff] %vm331, 0.0
        %361 = vst.msk [vmem:[#allocation2 + $0xe0] sm:$0xff] %vm331, 0.0
        %362 = vst.msk [vmem:[#allocation2 + $0xe8] sm:$0x3] %vm334, 0.0
        %363 = vst.msk [vmem:[#allocation2 + $0xf0] sm:$0xff] %vm331, 0.0
        %364 = vst.msk [vmem:[#allocation2 + $0xf8] sm:$0xff] %vm331, 0.0
        %365 = vst.msk [vmem:[#allocation2 + $0x100] sm:$0x3] %vm334, 0.0
        %366 = vst.msk [vmem:[#allocation2 + $0x108] sm:$0xff] %vm331, 0.0
        %367 = vst.msk [vmem:[#allocation2 + $0x110] sm:$0xff] %vm331, 0.0
        %368 = vst.msk [vmem:[#allocation2 + $0x118] sm:$0x3] %vm334, 0.0
        %369 = vst.msk [vmem:[#allocation2 + $0x120] sm:$0xff] %vm331, 0.0
        %370 = vst.msk [vmem:[#allocation2 + $0x128] sm:$0xff] %vm331, 0.0
        %371 = vst.msk [vmem:[#allocation2 + $0x130] sm:$0x3] %vm334, 0.0
        %372 = vst.msk [vmem:[#allocation2 + $0x138] sm:$0xff] %vm331, 0.0
        %373 = vst.msk [vmem:[#allocation2 + $0x140] sm:$0xff] %vm331, 0.0
        %374 = vst.msk [vmem:[#allocation2 + $0x148] sm:$0x3] %vm334, 0.0
        %375 = vst.msk [vmem:[#allocation2 + $0x150] sm:$0xff] %vm331, 0.0
        %376 = vst.msk [vmem:[#allocation2 + $0x158] sm:$0xff] %vm331, 0.0
        %377 = vst.msk [vmem:[#allocation2 + $0x160] sm:$0x3] %vm334, 0.0
        %378 = vst.msk [vmem:[#allocation2 + $0x168] sm:$0xff] %vm331, 0.0
        %379 = vst.msk [vmem:[#allocation2 + $0x170] sm:$0xff] %vm331, 0.0
        %380 = vst.msk [vmem:[#allocation2 + $0x178] sm:$0x3] %vm334, 0.0
        %381 = vst.msk [vmem:[#allocation2 + $0x180] sm:$0xff] %vm331, 0.0
        %382 = vst.msk [vmem:[#allocation2 + $0x188] sm:$0xff] %vm331, 0.0
        %383 = vst.msk [vmem:[#allocation2 + $0x190] sm:$0x3] %vm334, 0.0
        %384 = vst.msk [vmem:[#allocation2 + $0x198] sm:$0xff] %vm331, 0.0
        %385 = vst.msk [vmem:[#allocation2 + $0x1a0] sm:$0xff] %vm331, 0.0
        %386 = vst.msk [vmem:[#allocation2 + $0x1a8] sm:$0x3] %vm334, 0.0
        %v387 = vld [vmem:[%s329] sm:$0xff]
        %v388 = vld [vmem:[%s329 + $0x8] sm:$0xff]
        %v389 = vld [vmem:[%s329 + $0x10] sm:$0xff]
        %v390 = vld [vmem:[%s329 + $0x18] sm:$0xff]
        %v391 = vld [vmem:[%s329 + $0x20] sm:$0xff]
        %v392 = vld [vmem:[%s329 + $0x28] sm:$0xff]
        %v393 = vld [vmem:[%s329 + $0x30] sm:$0xff]
        %v394 = vld [vmem:[%s329 + $0x38] sm:$0xff]
        %v395 = vld [vmem:[%s329 + $0x40] sm:$0xff]
        %v396 = vld [vmem:[%s329 + $0x48] sm:$0xff]
        %v397 = vld [vmem:[%s329 + $0x50] sm:$0xff]
        %v398 = vld [vmem:[%s329 + $0x58] sm:$0xff]
        %v399 = vld [vmem:[%s329 + $0x60] sm:$0xff]
        %v400 = vld [vmem:[%s329 + $0x68] sm:$0xff]
        %v401 = vld [vmem:[%s329 + $0x70] sm:$0xff]
        %v402 = vld [vmem:[%s329 + $0x78] sm:$0xff]
        %v403 = vld [vmem:[%s329 + $0x80] sm:$0xff]
        %v404 = vld [vmem:[%s329 + $0x88] sm:$0xff]
        %v405 = vld [vmem:[%s329 + $0x90] sm:$0xff]
        %v406 = vld [vmem:[%s329 + $0x98] sm:$0xff]
        %v407 = vld [vmem:[%s329 + $0xa0] sm:$0xff]
        %v408 = vld [vmem:[%s329 + $0xa8] sm:$0xff]
        %v409 = vld [vmem:[%s329 + $0xb0] sm:$0xff]
        %v410 = vld [vmem:[%s329 + $0xb8] sm:$0xff]
        %v411 = vld [vmem:[%s329 + $0xc0] sm:$0xff]
        %v412 = vld [vmem:[%s329 + $0xc8] sm:$0xff]
        %v413 = vld [vmem:[%s329 + $0xd0] sm:$0xff]
        %v414 = vld [vmem:[%s329 + $0xd8] sm:$0xff]
        %v415 = vld [vmem:[%s329 + $0xe0] sm:$0xff]
        %v416 = vld [vmem:[%s329 + $0xe8] sm:$0xff]
        %v417 = vld [vmem:[%s329 + $0xf0] sm:$0xff]
        %v418 = vld [vmem:[%s329 + $0xf8] sm:$0xff]
        %s419 = scalar_lea.vmem [#allocation2], 24
        %420 = vst.msk [vmem:[%s419 + $0x1] sm:$0xff] %vm331, %v387
        %421 = vst.msk [vmem:[%s419 + $0x9] sm:$0xff] %vm331, %v388
        %422 = vst.msk [vmem:[%s419 + $0x19] sm:$0xff] %vm331, %v389
        %423 = vst.msk [vmem:[%s419 + $0x21] sm:$0xff] %vm331, %v390
        %424 = vst.msk [vmem:[%s419 + $0x31] sm:$0xff] %vm331, %v391
        %425 = vst.msk [vmem:[%s419 + $0x39] sm:$0xff] %vm331, %v392
        %426 = vst.msk [vmem:[%s419 + $0x49] sm:$0xff] %vm331, %v393
        %427 = vst.msk [vmem:[%s419 + $0x51] sm:$0xff] %vm331, %v394
        %428 = vst.msk [vmem:[%s419 + $0x61] sm:$0xff] %vm331, %v395
        %429 = vst.msk [vmem:[%s419 + $0x69] sm:$0xff] %vm331, %v396
        %430 = vst.msk [vmem:[%s419 + $0x79] sm:$0xff] %vm331, %v397
        %431 = vst.msk [vmem:[%s419 + $0x81] sm:$0xff] %vm331, %v398
        %432 = vst.msk [vmem:[%s419 + $0x91] sm:$0xff] %vm331, %v399
        %433 = vst.msk [vmem:[%s419 + $0x99] sm:$0xff] %vm331, %v400
        %434 = vst.msk [vmem:[%s419 + $0xa9] sm:$0xff] %vm331, %v401
        %435 = vst.msk [vmem:[%s419 + $0xb1] sm:$0xff] %vm331, %v402
        %436 = vst.msk [vmem:[%s419 + $0xc1] sm:$0xff] %vm331, %v403
        %437 = vst.msk [vmem:[%s419 + $0xc9] sm:$0xff] %vm331, %v404
        %438 = vst.msk [vmem:[%s419 + $0xd9] sm:$0xff] %vm331, %v405
        %439 = vst.msk [vmem:[%s419 + $0xe1] sm:$0xff] %vm331, %v406
        %440 = vst.msk [vmem:[%s419 + $0xf1] sm:$0xff] %vm331, %v407
        %441 = vst.msk [vmem:[%s419 + $0xf9] sm:$0xff] %vm331, %v408
        %442 = vst.msk [vmem:[%s419 + $0x109] sm:$0xff] %vm331, %v409
        %443 = vst.msk [vmem:[%s419 + $0x111] sm:$0xff] %vm331, %v410
        %444 = vst.msk [vmem:[%s419 + $0x121] sm:$0xff] %vm331, %v411
        %445 = vst.msk [vmem:[%s419 + $0x129] sm:$0xff] %vm331, %v412
        %446 = vst.msk [vmem:[%s419 + $0x139] sm:$0xff] %vm331, %v413
        %447 = vst.msk [vmem:[%s419 + $0x141] sm:$0xff] %vm331, %v414
        %448 = vst.msk [vmem:[%s419 + $0x151] sm:$0xff] %vm331, %v415
        %449 = vst.msk [vmem:[%s419 + $0x159] sm:$0xff] %vm331, %v416
        %450 = vst.msk [vmem:[%s419 + $0x169] sm:$0xff] %vm331, %v417
        %451 = vst.msk [vmem:[%s419 + $0x171] sm:$0xff] %vm331, %v418
        %v452 = vld [vmem:[#allocation2] sm:$0xff]
        %v453 = vld [vmem:[#allocation2 + $0x8] sm:$0xff]
        %v454 = vld [vmem:[#allocation2 + $0x10] sm:$0x3]
        %v455 = vld [vmem:[#allocation2 + $0x18] sm:$0xff]
        %v456 = vld [vmem:[#allocation2 + $0x20] sm:$0xff]
        %v457 = vld [vmem:[#allocation2 + $0x28] sm:$0x3]
        %v458 = vld [vmem:[#allocation2 + $0x30] sm:$0xff]
        %v459 = vld [vmem:[#allocation2 + $0x38] sm:$0xff]
        %v460 = vld [vmem:[#allocation2 + $0x40] sm:$0x3]
        %v461 = vld [vmem:[#allocation2 + $0x48] sm:$0xff]
        %v462 = vld [vmem:[#allocation2 + $0x50] sm:$0xff]
        %v463 = vld [vmem:[#allocation2 + $0x58] sm:$0x3]
        %v464 = vld [vmem:[#allocation2 + $0x60] sm:$0xff]
        %v465 = vld [vmem:[#allocation2 + $0x68] sm:$0xff]
        %v466 = vld [vmem:[#allocation2 + $0x70] sm:$0x3]
        %v467 = vld [vmem:[#allocation2 + $0x78] sm:$0xff]
        %v468 = vld [vmem:[#allocation2 + $0x80] sm:$0xff]
        %v469 = vld [vmem:[#allocation2 + $0x88] sm:$0x3]
        %v470 = vld [vmem:[#allocation2 + $0x90] sm:$0xff]
        %v471 = vld [vmem:[#allocation2 + $0x98] sm:$0xff]
        %v472 = vld [vmem:[#allocation2 + $0xa0] sm:$0x3]
        %v473 = vld [vmem:[#allocation2 + $0xa8] sm:$0xff]
        %v474 = vld [vmem:[#allocation2 + $0xb0] sm:$0xff]
        %v475 = vld [vmem:[#allocation2 + $0xb8] sm:$0x3]
        %v476 = vld [vmem:[#allocation2 + $0xc0] sm:$0xff]
        %v477 = vld [vmem:[#allocation2 + $0xc8] sm:$0xff]
        %v478 = vld [vmem:[#allocation2 + $0xd0] sm:$0x3]
        %v479 = vld [vmem:[#allocation2 + $0xd8] sm:$0xff]
        %v480 = vld [vmem:[#allocation2 + $0xe0] sm:$0xff]
        %v481 = vld [vmem:[#allocation2 + $0xe8] sm:$0x3]
        %v482 = vld [vmem:[#allocation2 + $0xf0] sm:$0xff]
        %v483 = vld [vmem:[#allocation2 + $0xf8] sm:$0xff]
        %v484 = vld [vmem:[#allocation2 + $0x100] sm:$0x3]
        %v485 = vld [vmem:[#allocation2 + $0x108] sm:$0xff]
        %v486 = vld [vmem:[#allocation2 + $0x110] sm:$0xff]
        %v487 = vld [vmem:[#allocation2 + $0x118] sm:$0x3]
        %v488 = vld [vmem:[#allocation2 + $0x120] sm:$0xff]
        %v489 = vld [vmem:[#allocation2 + $0x128] sm:$0xff]
        %v490 = vld [vmem:[#allocation2 + $0x130] sm:$0x3]
        %v491 = vld [vmem:[#allocation2 + $0x138] sm:$0xff]
        %v492 = vld [vmem:[#allocation2 + $0x140] sm:$0xff]
        %v493 = vld [vmem:[#allocation2 + $0x148] sm:$0x3]
        %v494 = vld [vmem:[#allocation2 + $0x150] sm:$0xff]
        %v495 = vld [vmem:[#allocation2 + $0x158] sm:$0xff]
        %v496 = vld [vmem:[#allocation2 + $0x160] sm:$0x3]
        %v497 = vld [vmem:[#allocation2 + $0x168] sm:$0xff]
        %v498 = vld [vmem:[#allocation2 + $0x170] sm:$0xff]
        %v499 = vld [vmem:[#allocation2 + $0x178] sm:$0x3]
        %v500 = vld [vmem:[#allocation2 + $0x180] sm:$0xff]
        %v501 = vld [vmem:[#allocation2 + $0x188] sm:$0xff]
        %v502 = vld [vmem:[#allocation2 + $0x190] sm:$0x3]
        %v503 = vld [vmem:[#allocation2 + $0x198] sm:$0xff]
        %v504 = vld [vmem:[#allocation2 + $0x1a0] sm:$0xff]
        %v505 = vld [vmem:[#allocation2 + $0x1a8] sm:$0x3]
        %vm554 = vcmask 1046528
        %v555 = vrot.slane %v452, 1
        %v556 = vrot.slane %v453, 1
        %v557 = vsel %vm554, %v555, %v556
        %v558 = vrot.slane %v454, 1
        %v559 = vsel %vm554, %v556, %v558
        %v560 = vrot.slane %v455, 1
        %v561 = vrot.slane %v456, 1
        %v562 = vsel %vm554, %v560, %v561
        %v563 = vrot.slane %v457, 1
        %v564 = vsel %vm554, %v561, %v563
        %v565 = vrot.slane %v458, 1
        %v566 = vrot.slane %v459, 1
        %v567 = vsel %vm554, %v565, %v566
        %v568 = vrot.slane %v460, 1
        %v569 = vsel %vm554, %v566, %v568
        %v570 = vrot.slane %v461, 1
        %v571 = vrot.slane %v462, 1
        %v572 = vsel %vm554, %v570, %v571
        %v573 = vrot.slane %v463, 1
        %v574 = vsel %vm554, %v571, %v573
        %v575 = vrot.slane %v464, 1
        %v576 = vrot.slane %v465, 1
        %v577 = vsel %vm554, %v575, %v576
        %v578 = vrot.slane %v466, 1
        %v579 = vsel %vm554, %v576, %v578
        %v580 = vrot.slane %v467, 1
        %v581 = vrot.slane %v468, 1
        %v582 = vsel %vm554, %v580, %v581
        %v583 = vrot.slane %v469, 1
        %v584 = vsel %vm554, %v581, %v583
        %v585 = vrot.slane %v470, 1
        %v586 = vrot.slane %v471, 1
        %v587 = vsel %vm554, %v585, %v586
        %v588 = vrot.slane %v472, 1
        %v589 = vsel %vm554, %v586, %v588
        %v590 = vrot.slane %v473, 1
        %v591 = vrot.slane %v474, 1
        %v592 = vsel %vm554, %v590, %v591
        %v593 = vrot.slane %v475, 1
        %v594 = vsel %vm554, %v591, %v593
        %v595 = vrot.slane %v476, 1
        %v596 = vrot.slane %v477, 1
        %v597 = vsel %vm554, %v595, %v596
        %v598 = vrot.slane %v478, 1
        %v599 = vsel %vm554, %v596, %v598
        %v600 = vrot.slane %v479, 1
        %v601 = vrot.slane %v480, 1
        %v602 = vsel %vm554, %v600, %v601
        %v603 = vrot.slane %v481, 1
        %v604 = vsel %vm554, %v601, %v603
        %v605 = vrot.slane %v482, 1
        %v606 = vrot.slane %v483, 1
        %v607 = vsel %vm554, %v605, %v606
        %v608 = vrot.slane %v484, 1
        %v609 = vsel %vm554, %v606, %v608
        %v610 = vrot.slane %v485, 1
        %v611 = vrot.slane %v486, 1
        %v612 = vsel %vm554, %v610, %v611
        %v613 = vrot.slane %v487, 1
        %v614 = vsel %vm554, %v611, %v613
        %v615 = vrot.slane %v488, 1
        %v616 = vrot.slane %v489, 1
        %v617 = vsel %vm554, %v615, %v616
        %v618 = vrot.slane %v490, 1
        %v619 = vsel %vm554, %v616, %v618
        %v620 = vrot.slane %v491, 1
        %v621 = vrot.slane %v492, 1
        %v622 = vsel %vm554, %v620, %v621
        %v623 = vrot.slane %v493, 1
        %v624 = vsel %vm554, %v621, %v623
        %v625 = vrot.slane %v494, 1
        %v626 = vrot.slane %v495, 1
        %v627 = vsel %vm554, %v625, %v626
        %v628 = vrot.slane %v496, 1
        %v629 = vsel %vm554, %v626, %v628
        %v630 = vrot.slane %v497, 1
        %v631 = vrot.slane %v498, 1
        %v632 = vsel %vm554, %v630, %v631
        %v633 = vrot.slane %v499, 1
        %v634 = vsel %vm554, %v631, %v633
        %635 = vrot.lane.b32.xlu0 %v557, 3
        %v636 = vpop.permute.xlu0 %635
        %637 = vrot.lane.b32.xlu0 %v559, 3
        %v638 = vpop.permute.xlu0 %637
        %639 = vrot.lane.b32.xlu0 %v562, 3
        %v640 = vpop.permute.xlu0 %639
        %641 = vrot.lane.b32.xlu0 %v564, 3
        %v642 = vpop.permute.xlu0 %641
        %643 = vrot.lane.b32.xlu0 %v567, 3
        %v644 = vpop.permute.xlu0 %643
        %645 = vrot.lane.b32.xlu0 %v569, 3
        %v646 = vpop.permute.xlu0 %645
        %647 = vrot.lane.b32.xlu0 %v572, 3
        %v648 = vpop.permute.xlu0 %647
        %649 = vrot.lane.b32.xlu0 %v574, 3
        %v650 = vpop.permute.xlu0 %649
        %651 = vrot.lane.b32.xlu0 %v577, 3
        %v652 = vpop.permute.xlu0 %651
        %653 = vrot.lane.b32.xlu0 %v579, 3
        %v654 = vpop.permute.xlu0 %653
        %655 = vrot.lane.b32.xlu0 %v582, 3
        %v656 = vpop.permute.xlu0 %655
        %657 = vrot.lane.b32.xlu0 %v584, 3
        %v658 = vpop.permute.xlu0 %657
        %659 = vrot.lane.b32.xlu0 %v587, 3
        %v660 = vpop.permute.xlu0 %659
        %661 = vrot.lane.b32.xlu0 %v589, 3
        %v662 = vpop.permute.xlu0 %661
        %663 = vrot.lane.b32.xlu0 %v592, 3
        %v664 = vpop.permute.xlu0 %663
        %665 = vrot.lane.b32.xlu0 %v594, 3
        %v666 = vpop.permute.xlu0 %665
        %667 = vrot.lane.b32.xlu0 %v597, 3
        %v668 = vpop.permute.xlu0 %667
        %669 = vrot.lane.b32.xlu0 %v599, 3
        %v670 = vpop.permute.xlu0 %669
        %671 = vrot.lane.b32.xlu0 %v602, 3
        %v672 = vpop.permute.xlu0 %671
        %673 = vrot.lane.b32.xlu0 %v604, 3
        %v674 = vpop.permute.xlu0 %673
        %675 = vrot.lane.b32.xlu0 %v607, 3
        %v676 = vpop.permute.xlu0 %675
        %677 = vrot.lane.b32.xlu0 %v609, 3
        %v678 = vpop.permute.xlu0 %677
        %679 = vrot.lane.b32.xlu0 %v612, 3
        %v680 = vpop.permute.xlu0 %679
        %681 = vrot.lane.b32.xlu0 %v614, 3
        %v682 = vpop.permute.xlu0 %681
        %683 = vrot.lane.b32.xlu0 %v617, 3
        %v684 = vpop.permute.xlu0 %683
        %685 = vrot.lane.b32.xlu0 %v619, 3
        %v686 = vpop.permute.xlu0 %685
        %687 = vrot.lane.b32.xlu0 %v622, 3
        %v688 = vpop.permute.xlu0 %687
        %689 = vrot.lane.b32.xlu0 %v624, 3
        %v690 = vpop.permute.xlu0 %689
        %691 = vrot.lane.b32.xlu0 %v627, 3
        %v692 = vpop.permute.xlu0 %691
        %693 = vrot.lane.b32.xlu0 %v629, 3
        %v694 = vpop.permute.xlu0 %693
        %695 = vrot.lane.b32.xlu0 %v632, 3
        %v696 = vpop.permute.xlu0 %695
        %697 = vrot.lane.b32.xlu0 %v634, 3
        %v698 = vpop.permute.xlu0 %697
        %vm731 = vcmask 1045504
        %v732 = vrot.slane %v452, 2
        %v733 = vrot.slane %v453, 2
        %v734 = vsel %vm731, %v732, %v733
        %v735 = vrot.slane %v454, 2
        %v736 = vsel %vm731, %v733, %v735
        %v737 = vrot.slane %v455, 2
        %v738 = vrot.slane %v456, 2
        %v739 = vsel %vm731, %v737, %v738
        %v740 = vrot.slane %v457, 2
        %v741 = vsel %vm731, %v738, %v740
        %v742 = vrot.slane %v458, 2
        %v743 = vrot.slane %v459, 2
        %v744 = vsel %vm731, %v742, %v743
        %v745 = vrot.slane %v460, 2
        %v746 = vsel %vm731, %v743, %v745
        %v747 = vrot.slane %v461, 2
        %v748 = vrot.slane %v462, 2
        %v749 = vsel %vm731, %v747, %v748
        %v750 = vrot.slane %v463, 2
        %v751 = vsel %vm731, %v748, %v750
        %v752 = vrot.slane %v464, 2
        %v753 = vrot.slane %v465, 2
        %v754 = vsel %vm731, %v752, %v753
        %v755 = vrot.slane %v466, 2
        %v756 = vsel %vm731, %v753, %v755
        %v757 = vrot.slane %v467, 2
        %v758 = vrot.slane %v468, 2
        %v759 = vsel %vm731, %v757, %v758
        %v760 = vrot.slane %v469, 2
        %v761 = vsel %vm731, %v758, %v760
        %v762 = vrot.slane %v470, 2
        %v763 = vrot.slane %v471, 2
        %v764 = vsel %vm731, %v762, %v763
        %v765 = vrot.slane %v472, 2
        %v766 = vsel %vm731, %v763, %v765
        %v767 = vrot.slane %v473, 2
        %v768 = vrot.slane %v474, 2
        %v769 = vsel %vm731, %v767, %v768
        %v770 = vrot.slane %v475, 2
        %v771 = vsel %vm731, %v768, %v770
        %v772 = vrot.slane %v476, 2
        %v773 = vrot.slane %v477, 2
        %v774 = vsel %vm731, %v772, %v773
        %v775 = vrot.slane %v478, 2
        %v776 = vsel %vm731, %v773, %v775
        %v777 = vrot.slane %v479, 2
        %v778 = vrot.slane %v480, 2
        %v779 = vsel %vm731, %v777, %v778
        %v780 = vrot.slane %v481, 2
        %v781 = vsel %vm731, %v778, %v780
        %v782 = vrot.slane %v482, 2
        %v783 = vrot.slane %v483, 2
        %v784 = vsel %vm731, %v782, %v783
        %v785 = vrot.slane %v484, 2
        %v786 = vsel %vm731, %v783, %v785
        %v787 = vrot.slane %v485, 2
        %v788 = vrot.slane %v486, 2
        %v789 = vsel %vm731, %v787, %v788
        %v790 = vrot.slane %v487, 2
        %v791 = vsel %vm731, %v788, %v790
        %v792 = vrot.slane %v488, 2
        %v793 = vrot.slane %v489, 2
        %v794 = vsel %vm731, %v792, %v793
        %v795 = vrot.slane %v490, 2
        %v796 = vsel %vm731, %v793, %v795
        %v797 = vrot.slane %v491, 2
        %v798 = vrot.slane %v492, 2
        %v799 = vsel %vm731, %v797, %v798
        %v800 = vrot.slane %v493, 2
        %v801 = vsel %vm731, %v798, %v800
        %v802 = vrot.slane %v494, 2
        %v803 = vrot.slane %v495, 2
        %v804 = vsel %vm731, %v802, %v803
        %v805 = vrot.slane %v496, 2
        %v806 = vsel %vm731, %v803, %v805
        %v807 = vrot.slane %v497, 2
        %v808 = vrot.slane %v498, 2
        %v809 = vsel %vm731, %v807, %v808
        %v810 = vrot.slane %v499, 2
        %v811 = vsel %vm731, %v808, %v810
        %812 = vrot.lane.b32.xlu0 %v734, 6
        %v813 = vpop.permute.xlu0 %812
        %814 = vrot.lane.b32.xlu0 %v736, 6
        %v815 = vpop.permute.xlu0 %814
        %816 = vrot.lane.b32.xlu0 %v739, 6
        %v817 = vpop.permute.xlu0 %816
        %818 = vrot.lane.b32.xlu0 %v741, 6
        %v819 = vpop.permute.xlu0 %818
        %820 = vrot.lane.b32.xlu0 %v744, 6
        %v821 = vpop.permute.xlu0 %820
        %822 = vrot.lane.b32.xlu0 %v746, 6
        %v823 = vpop.permute.xlu0 %822
        %824 = vrot.lane.b32.xlu0 %v749, 6
        %v825 = vpop.permute.xlu0 %824
        %826 = vrot.lane.b32.xlu0 %v751, 6
        %v827 = vpop.permute.xlu0 %826
        %828 = vrot.lane.b32.xlu0 %v754, 6
        %v829 = vpop.permute.xlu0 %828
        %830 = vrot.lane.b32.xlu0 %v756, 6
        %v831 = vpop.permute.xlu0 %830
        %832 = vrot.lane.b32.xlu0 %v759, 6
        %v833 = vpop.permute.xlu0 %832
        %834 = vrot.lane.b32.xlu0 %v761, 6
        %v835 = vpop.permute.xlu0 %834
        %836 = vrot.lane.b32.xlu0 %v764, 6
        %v837 = vpop.permute.xlu0 %836
        %838 = vrot.lane.b32.xlu0 %v766, 6
        %v839 = vpop.permute.xlu0 %838
        %840 = vrot.lane.b32.xlu0 %v769, 6
        %v841 = vpop.permute.xlu0 %840
        %842 = vrot.lane.b32.xlu0 %v771, 6
        %v843 = vpop.permute.xlu0 %842
        %844 = vrot.lane.b32.xlu0 %v774, 6
        %v845 = vpop.permute.xlu0 %844
        %846 = vrot.lane.b32.xlu0 %v776, 6
        %v847 = vpop.permute.xlu0 %846
        %848 = vrot.lane.b32.xlu0 %v779, 6
        %v849 = vpop.permute.xlu0 %848
        %850 = vrot.lane.b32.xlu0 %v781, 6
        %v851 = vpop.permute.xlu0 %850
        %852 = vrot.lane.b32.xlu0 %v784, 6
        %v853 = vpop.permute.xlu0 %852
        %854 = vrot.lane.b32.xlu0 %v786, 6
        %v855 = vpop.permute.xlu0 %854
        %856 = vrot.lane.b32.xlu0 %v789, 6
        %v857 = vpop.permute.xlu0 %856
        %858 = vrot.lane.b32.xlu0 %v791, 6
        %v859 = vpop.permute.xlu0 %858
        %860 = vrot.lane.b32.xlu0 %v794, 6
        %v861 = vpop.permute.xlu0 %860
        %862 = vrot.lane.b32.xlu0 %v796, 6
        %v863 = vpop.permute.xlu0 %862
        %864 = vrot.lane.b32.xlu0 %v799, 6
        %v865 = vpop.permute.xlu0 %864
        %866 = vrot.lane.b32.xlu0 %v801, 6
        %v867 = vpop.permute.xlu0 %866
        %868 = vrot.lane.b32.xlu0 %v804, 6
        %v869 = vpop.permute.xlu0 %868
        %870 = vrot.lane.b32.xlu0 %v806, 6
        %v871 = vpop.permute.xlu0 %870
        %872 = vrot.lane.b32.xlu0 %v809, 6
        %v873 = vpop.permute.xlu0 %872
        %874 = vrot.lane.b32.xlu0 %v811, 6
        %v875 = vpop.permute.xlu0 %874
        %910 = vrot.lane.b32.xlu0 %v455, 9
        %v911 = vpop.permute.xlu0 %910
        %912 = vrot.lane.b32.xlu0 %v456, 9
        %v913 = vpop.permute.xlu0 %912
        %914 = vrot.lane.b32.xlu0 %v458, 9
        %v915 = vpop.permute.xlu0 %914
        %916 = vrot.lane.b32.xlu0 %v459, 9
        %v917 = vpop.permute.xlu0 %916
        %918 = vrot.lane.b32.xlu0 %v461, 9
        %v919 = vpop.permute.xlu0 %918
        %920 = vrot.lane.b32.xlu0 %v462, 9
        %v921 = vpop.permute.xlu0 %920
        %922 = vrot.lane.b32.xlu0 %v464, 9
        %v923 = vpop.permute.xlu0 %922
        %924 = vrot.lane.b32.xlu0 %v465, 9
        %v925 = vpop.permute.xlu0 %924
        %926 = vrot.lane.b32.xlu0 %v467, 9
        %v927 = vpop.permute.xlu0 %926
        %928 = vrot.lane.b32.xlu0 %v468, 9
        %v929 = vpop.permute.xlu0 %928
        %930 = vrot.lane.b32.xlu0 %v470, 9
        %v931 = vpop.permute.xlu0 %930
        %932 = vrot.lane.b32.xlu0 %v471, 9
        %v933 = vpop.permute.xlu0 %932
        %934 = vrot.lane.b32.xlu0 %v473, 9
        %v935 = vpop.permute.xlu0 %934
        %936 = vrot.lane.b32.xlu0 %v474, 9
        %v937 = vpop.permute.xlu0 %936
        %938 = vrot.lane.b32.xlu0 %v476, 9
        %v939 = vpop.permute.xlu0 %938
        %940 = vrot.lane.b32.xlu0 %v477, 9
        %v941 = vpop.permute.xlu0 %940
        %942 = vrot.lane.b32.xlu0 %v479, 9
        %v943 = vpop.permute.xlu0 %942
        %944 = vrot.lane.b32.xlu0 %v480, 9
        %v945 = vpop.permute.xlu0 %944
        %946 = vrot.lane.b32.xlu0 %v482, 9
        %v947 = vpop.permute.xlu0 %946
        %948 = vrot.lane.b32.xlu0 %v483, 9
        %v949 = vpop.permute.xlu0 %948
        %950 = vrot.lane.b32.xlu0 %v485, 9
        %v951 = vpop.permute.xlu0 %950
        %952 = vrot.lane.b32.xlu0 %v486, 9
        %v953 = vpop.permute.xlu0 %952
        %954 = vrot.lane.b32.xlu0 %v488, 9
        %v955 = vpop.permute.xlu0 %954
        %956 = vrot.lane.b32.xlu0 %v489, 9
        %v957 = vpop.permute.xlu0 %956
        %958 = vrot.lane.b32.xlu0 %v491, 9
        %v959 = vpop.permute.xlu0 %958
        %960 = vrot.lane.b32.xlu0 %v492, 9
        %v961 = vpop.permute.xlu0 %960
        %962 = vrot.lane.b32.xlu0 %v494, 9
        %v963 = vpop.permute.xlu0 %962
        %964 = vrot.lane.b32.xlu0 %v495, 9
        %v965 = vpop.permute.xlu0 %964
        %966 = vrot.lane.b32.xlu0 %v497, 9
        %v967 = vpop.permute.xlu0 %966
        %968 = vrot.lane.b32.xlu0 %v498, 9
        %v969 = vpop.permute.xlu0 %968
        %970 = vrot.lane.b32.xlu0 %v500, 9
        %v971 = vpop.permute.xlu0 %970
        %972 = vrot.lane.b32.xlu0 %v501, 9
        %v973 = vpop.permute.xlu0 %972
        %v1007 = vrot.slane %v500, 1
        %v1008 = vrot.slane %v501, 1
        %v1009 = vsel %vm554, %v1007, %v1008
        %v1010 = vrot.slane %v502, 1
        %v1011 = vsel %vm554, %v1008, %v1010
        %1012 = vrot.lane.b32.xlu0 %v562, 12
        %v1013 = vpop.permute.xlu0 %1012
        %1014 = vrot.lane.b32.xlu0 %v564, 12
        %v1015 = vpop.permute.xlu0 %1014
        %1016 = vrot.lane.b32.xlu0 %v567, 12
        %v1017 = vpop.permute.xlu0 %1016
        %1018 = vrot.lane.b32.xlu0 %v569, 12
        %v1019 = vpop.permute.xlu0 %1018
        %1020 = vrot.lane.b32.xlu0 %v572, 12
        %v1021 = vpop.permute.xlu0 %1020
        %1022 = vrot.lane.b32.xlu0 %v574, 12
        %v1023 = vpop.permute.xlu0 %1022
        %1024 = vrot.lane.b32.xlu0 %v577, 12
        %v1025 = vpop.permute.xlu0 %1024
        %1026 = vrot.lane.b32.xlu0 %v579, 12
        %v1027 = vpop.permute.xlu0 %1026
        %1028 = vrot.lane.b32.xlu0 %v582, 12
        %v1029 = vpop.permute.xlu0 %1028
        %1030 = vrot.lane.b32.xlu0 %v584, 12
        %v1031 = vpop.permute.xlu0 %1030
        %1032 = vrot.lane.b32.xlu0 %v587, 12
        %v1033 = vpop.permute.xlu0 %1032
        %1034 = vrot.lane.b32.xlu0 %v589, 12
        %v1035 = vpop.permute.xlu0 %1034
        %1036 = vrot.lane.b32.xlu0 %v592, 12
        %v1037 = vpop.permute.xlu0 %1036
        %1038 = vrot.lane.b32.xlu0 %v594, 12
        %v1039 = vpop.permute.xlu0 %1038
        %1040 = vrot.lane.b32.xlu0 %v597, 12
        %v1041 = vpop.permute.xlu0 %1040
        %1042 = vrot.lane.b32.xlu0 %v599, 12
        %v1043 = vpop.permute.xlu0 %1042
        %1044 = vrot.lane.b32.xlu0 %v602, 12
        %v1045 = vpop.permute.xlu0 %1044
        %1046 = vrot.lane.b32.xlu0 %v604, 12
        %v1047 = vpop.permute.xlu0 %1046
        %1048 = vrot.lane.b32.xlu0 %v607, 12
        %v1049 = vpop.permute.xlu0 %1048
        %1050 = vrot.lane.b32.xlu0 %v609, 12
        %v1051 = vpop.permute.xlu0 %1050
        %1052 = vrot.lane.b32.xlu0 %v612, 12
        %v1053 = vpop.permute.xlu0 %1052
        %1054 = vrot.lane.b32.xlu0 %v614, 12
        %v1055 = vpop.permute.xlu0 %1054
        %1056 = vrot.lane.b32.xlu0 %v617, 12
        %v1057 = vpop.permute.xlu0 %1056
        %1058 = vrot.lane.b32.xlu0 %v619, 12
        %v1059 = vpop.permute.xlu0 %1058
        %1060 = vrot.lane.b32.xlu0 %v622, 12
        %v1061 = vpop.permute.xlu0 %1060
        %1062 = vrot.lane.b32.xlu0 %v624, 12
        %v1063 = vpop.permute.xlu0 %1062
        %1064 = vrot.lane.b32.xlu0 %v627, 12
        %v1065 = vpop.permute.xlu0 %1064
        %1066 = vrot.lane.b32.xlu0 %v629, 12
        %v1067 = vpop.permute.xlu0 %1066
        %1068 = vrot.lane.b32.xlu0 %v632, 12
        %v1069 = vpop.permute.xlu0 %1068
        %1070 = vrot.lane.b32.xlu0 %v634, 12
        %v1071 = vpop.permute.xlu0 %1070
        %1072 = vrot.lane.b32.xlu0 %v1009, 12
        %v1073 = vpop.permute.xlu0 %1072
        %1074 = vrot.lane.b32.xlu0 %v1011, 12
        %v1075 = vpop.permute.xlu0 %1074
        %v1108 = vrot.slane %v500, 2
        %v1109 = vrot.slane %v501, 2
        %v1110 = vsel %vm731, %v1108, %v1109
        %v1111 = vrot.slane %v502, 2
        %v1112 = vsel %vm731, %v1109, %v1111
        %1113 = vrot.lane.b32.xlu0 %v739, 15
        %v1114 = vpop.permute.xlu0 %1113
        %1115 = vrot.lane.b32.xlu0 %v741, 15
        %v1116 = vpop.permute.xlu0 %1115
        %1117 = vrot.lane.b32.xlu0 %v744, 15
        %v1118 = vpop.permute.xlu0 %1117
        %1119 = vrot.lane.b32.xlu0 %v746, 15
        %v1120 = vpop.permute.xlu0 %1119
        %1121 = vrot.lane.b32.xlu0 %v749, 15
        %v1122 = vpop.permute.xlu0 %1121
        %1123 = vrot.lane.b32.xlu0 %v751, 15
        %v1124 = vpop.permute.xlu0 %1123
        %1125 = vrot.lane.b32.xlu0 %v754, 15
        %v1126 = vpop.permute.xlu0 %1125
        %1127 = vrot.lane.b32.xlu0 %v756, 15
        %v1128 = vpop.permute.xlu0 %1127
        %1129 = vrot.lane.b32.xlu0 %v759, 15
        %v1130 = vpop.permute.xlu0 %1129
        %1131 = vrot.lane.b32.xlu0 %v761, 15
        %v1132 = vpop.permute.xlu0 %1131
        %1133 = vrot.lane.b32.xlu0 %v764, 15
        %v1134 = vpop.permute.xlu0 %1133
        %1135 = vrot.lane.b32.xlu0 %v766, 15
        %v1136 = vpop.permute.xlu0 %1135
        %1137 = vrot.lane.b32.xlu0 %v769, 15
        %v1138 = vpop.permute.xlu0 %1137
        %1139 = vrot.lane.b32.xlu0 %v771, 15
        %v1140 = vpop.permute.xlu0 %1139
        %1141 = vrot.lane.b32.xlu0 %v774, 15
        %v1142 = vpop.permute.xlu0 %1141
        %1143 = vrot.lane.b32.xlu0 %v776, 15
        %v1144 = vpop.permute.xlu0 %1143
        %1145 = vrot.lane.b32.xlu0 %v779, 15
        %v1146 = vpop.permute.xlu0 %1145
        %1147 = vrot.lane.b32.xlu0 %v781, 15
        %v1148 = vpop.permute.xlu0 %1147
        %1149 = vrot.lane.b32.xlu0 %v784, 15
        %v1150 = vpop.permute.xlu0 %1149
        %1151 = vrot.lane.b32.xlu0 %v786, 15
        %v1152 = vpop.permute.xlu0 %1151
        %1153 = vrot.lane.b32.xlu0 %v789, 15
        %v1154 = vpop.permute.xlu0 %1153
        %1155 = vrot.lane.b32.xlu0 %v791, 15
        %v1156 = vpop.permute.xlu0 %1155
        %1157 = vrot.lane.b32.xlu0 %v794, 15
        %v1158 = vpop.permute.xlu0 %1157
        %1159 = vrot.lane.b32.xlu0 %v796, 15
        %v1160 = vpop.permute.xlu0 %1159
        %1161 = vrot.lane.b32.xlu0 %v799, 15
        %v1162 = vpop.permute.xlu0 %1161
        %1163 = vrot.lane.b32.xlu0 %v801, 15
        %v1164 = vpop.permute.xlu0 %1163
        %1165 = vrot.lane.b32.xlu0 %v804, 15
        %v1166 = vpop.permute.xlu0 %1165
        %1167 = vrot.lane.b32.xlu0 %v806, 15
        %v1168 = vpop.permute.xlu0 %1167
        %1169 = vrot.lane.b32.xlu0 %v809, 15
        %v1170 = vpop.permute.xlu0 %1169
        %1171 = vrot.lane.b32.xlu0 %v811, 15
        %v1172 = vpop.permute.xlu0 %1171
        %1173 = vrot.lane.b32.xlu0 %v1110, 15
        %v1174 = vpop.permute.xlu0 %1173
        %1175 = vrot.lane.b32.xlu0 %v1112, 15
        %v1176 = vpop.permute.xlu0 %1175
        %1211 = vrot.lane.b32.xlu0 %v458, 18
        %v1212 = vpop.permute.xlu0 %1211
        %1213 = vrot.lane.b32.xlu0 %v459, 18
        %v1214 = vpop.permute.xlu0 %1213
        %1215 = vrot.lane.b32.xlu0 %v461, 18
        %v1216 = vpop.permute.xlu0 %1215
        %1217 = vrot.lane.b32.xlu0 %v462, 18
        %v1218 = vpop.permute.xlu0 %1217
        %1219 = vrot.lane.b32.xlu0 %v464, 18
        %v1220 = vpop.permute.xlu0 %1219
        %1221 = vrot.lane.b32.xlu0 %v465, 18
        %v1222 = vpop.permute.xlu0 %1221
        %1223 = vrot.lane.b32.xlu0 %v467, 18
        %v1224 = vpop.permute.xlu0 %1223
        %1225 = vrot.lane.b32.xlu0 %v468, 18
        %v1226 = vpop.permute.xlu0 %1225
        %1227 = vrot.lane.b32.xlu0 %v470, 18
        %v1228 = vpop.permute.xlu0 %1227
        %1229 = vrot.lane.b32.xlu0 %v471, 18
        %v1230 = vpop.permute.xlu0 %1229
        %1231 = vrot.lane.b32.xlu0 %v473, 18
        %v1232 = vpop.permute.xlu0 %1231
        %1233 = vrot.lane.b32.xlu0 %v474, 18
        %v1234 = vpop.permute.xlu0 %1233
        %1235 = vrot.lane.b32.xlu0 %v476, 18
        %v1236 = vpop.permute.xlu0 %1235
        %1237 = vrot.lane.b32.xlu0 %v477, 18
        %v1238 = vpop.permute.xlu0 %1237
        %1239 = vrot.lane.b32.xlu0 %v479, 18
        %v1240 = vpop.permute.xlu0 %1239
        %1241 = vrot.lane.b32.xlu0 %v480, 18
        %v1242 = vpop.permute.xlu0 %1241
        %1243 = vrot.lane.b32.xlu0 %v482, 18
        %v1244 = vpop.permute.xlu0 %1243
        %1245 = vrot.lane.b32.xlu0 %v483, 18
        %v1246 = vpop.permute.xlu0 %1245
        %1247 = vrot.lane.b32.xlu0 %v485, 18
        %v1248 = vpop.permute.xlu0 %1247
        %1249 = vrot.lane.b32.xlu0 %v486, 18
        %v1250 = vpop.permute.xlu0 %1249
        %1251 = vrot.lane.b32.xlu0 %v488, 18
        %v1252 = vpop.permute.xlu0 %1251
        %1253 = vrot.lane.b32.xlu0 %v489, 18
        %v1254 = vpop.permute.xlu0 %1253
        %1255 = vrot.lane.b32.xlu0 %v491, 18
        %v1256 = vpop.permute.xlu0 %1255
        %1257 = vrot.lane.b32.xlu0 %v492, 18
        %v1258 = vpop.permute.xlu0 %1257
        %1259 = vrot.lane.b32.xlu0 %v494, 18
        %v1260 = vpop.permute.xlu0 %1259
        %1261 = vrot.lane.b32.xlu0 %v495, 18
        %v1262 = vpop.permute.xlu0 %1261
        %1263 = vrot.lane.b32.xlu0 %v497, 18
        %v1264 = vpop.permute.xlu0 %1263
        %1265 = vrot.lane.b32.xlu0 %v498, 18
        %v1266 = vpop.permute.xlu0 %1265
        %1267 = vrot.lane.b32.xlu0 %v500, 18
        %v1268 = vpop.permute.xlu0 %1267
        %1269 = vrot.lane.b32.xlu0 %v501, 18
        %v1270 = vpop.permute.xlu0 %1269
        %1271 = vrot.lane.b32.xlu0 %v503, 18
        %v1272 = vpop.permute.xlu0 %1271
        %1273 = vrot.lane.b32.xlu0 %v504, 18
        %v1274 = vpop.permute.xlu0 %1273
        %v1308 = vrot.slane %v503, 1
        %v1309 = vrot.slane %v504, 1
        %v1310 = vsel %vm554, %v1308, %v1309
        %v1311 = vrot.slane %v505, 1
        %v1312 = vsel %vm554, %v1309, %v1311
        %1313 = vrot.lane.b32.xlu0 %v567, 21
        %v1314 = vpop.permute.xlu0 %1313
        %1315 = vrot.lane.b32.xlu0 %v569, 21
        %v1316 = vpop.permute.xlu0 %1315
        %1317 = vrot.lane.b32.xlu0 %v572, 21
        %v1318 = vpop.permute.xlu0 %1317
        %1319 = vrot.lane.b32.xlu0 %v574, 21
        %v1320 = vpop.permute.xlu0 %1319
        %1321 = vrot.lane.b32.xlu0 %v577, 21
        %v1322 = vpop.permute.xlu0 %1321
        %1323 = vrot.lane.b32.xlu0 %v579, 21
        %v1324 = vpop.permute.xlu0 %1323
        %1325 = vrot.lane.b32.xlu0 %v582, 21
        %v1326 = vpop.permute.xlu0 %1325
        %1327 = vrot.lane.b32.xlu0 %v584, 21
        %v1328 = vpop.permute.xlu0 %1327
        %1329 = vrot.lane.b32.xlu0 %v587, 21
        %v1330 = vpop.permute.xlu0 %1329
        %1331 = vrot.lane.b32.xlu0 %v589, 21
        %v1332 = vpop.permute.xlu0 %1331
        %1333 = vrot.lane.b32.xlu0 %v592, 21
        %v1334 = vpop.permute.xlu0 %1333
        %1335 = vrot.lane.b32.xlu0 %v594, 21
        %v1336 = vpop.permute.xlu0 %1335
        %1337 = vrot.lane.b32.xlu0 %v597, 21
        %v1338 = vpop.permute.xlu0 %1337
        %1339 = vrot.lane.b32.xlu0 %v599, 21
        %v1340 = vpop.permute.xlu0 %1339
        %1341 = vrot.lane.b32.xlu0 %v602, 21
        %v1342 = vpop.permute.xlu0 %1341
        %1343 = vrot.lane.b32.xlu0 %v604, 21
        %v1344 = vpop.permute.xlu0 %1343
        %1345 = vrot.lane.b32.xlu0 %v607, 21
        %v1346 = vpop.permute.xlu0 %1345
        %1347 = vrot.lane.b32.xlu0 %v609, 21
        %v1348 = vpop.permute.xlu0 %1347
        %1349 = vrot.lane.b32.xlu0 %v612, 21
        %v1350 = vpop.permute.xlu0 %1349
        %1351 = vrot.lane.b32.xlu0 %v614, 21
        %v1352 = vpop.permute.xlu0 %1351
        %1353 = vrot.lane.b32.xlu0 %v617, 21
        %v1354 = vpop.permute.xlu0 %1353
        %1355 = vrot.lane.b32.xlu0 %v619, 21
        %v1356 = vpop.permute.xlu0 %1355
        %1357 = vrot.lane.b32.xlu0 %v622, 21
        %v1358 = vpop.permute.xlu0 %1357
        %1359 = vrot.lane.b32.xlu0 %v624, 21
        %v1360 = vpop.permute.xlu0 %1359
        %1361 = vrot.lane.b32.xlu0 %v627, 21
        %v1362 = vpop.permute.xlu0 %1361
        %1363 = vrot.lane.b32.xlu0 %v629, 21
        %v1364 = vpop.permute.xlu0 %1363
        %1365 = vrot.lane.b32.xlu0 %v632, 21
        %v1366 = vpop.permute.xlu0 %1365
        %1367 = vrot.lane.b32.xlu0 %v634, 21
        %v1368 = vpop.permute.xlu0 %1367
        %1369 = vrot.lane.b32.xlu0 %v1009, 21
        %v1370 = vpop.permute.xlu0 %1369
        %1371 = vrot.lane.b32.xlu0 %v1011, 21
        %v1372 = vpop.permute.xlu0 %1371
        %1373 = vrot.lane.b32.xlu0 %v1310, 21
        %v1374 = vpop.permute.xlu0 %1373
        %1375 = vrot.lane.b32.xlu0 %v1312, 21
        %v1376 = vpop.permute.xlu0 %1375
        %v1409 = vrot.slane %v503, 2
        %v1410 = vrot.slane %v504, 2
        %v1411 = vsel %vm731, %v1409, %v1410
        %v1412 = vrot.slane %v505, 2
        %v1413 = vsel %vm731, %v1410, %v1412
        %1414 = vrot.lane.b32.xlu0 %v744, 24
        %v1415 = vpop.permute.xlu0 %1414
        %1416 = vrot.lane.b32.xlu0 %v746, 24
        %v1417 = vpop.permute.xlu0 %1416
        %1418 = vrot.lane.b32.xlu0 %v749, 24
        %v1419 = vpop.permute.xlu0 %1418
        %1420 = vrot.lane.b32.xlu0 %v751, 24
        %v1421 = vpop.permute.xlu0 %1420
        %1422 = vrot.lane.b32.xlu0 %v754, 24
        %v1423 = vpop.permute.xlu0 %1422
        %1424 = vrot.lane.b32.xlu0 %v756, 24
        %v1425 = vpop.permute.xlu0 %1424
        %1426 = vrot.lane.b32.xlu0 %v759, 24
        %v1427 = vpop.permute.xlu0 %1426
        %1428 = vrot.lane.b32.xlu0 %v761, 24
        %v1429 = vpop.permute.xlu0 %1428
        %1430 = vrot.lane.b32.xlu0 %v764, 24
        %v1431 = vpop.permute.xlu0 %1430
        %1432 = vrot.lane.b32.xlu0 %v766, 24
        %v1433 = vpop.permute.xlu0 %1432
        %1434 = vrot.lane.b32.xlu0 %v769, 24
        %v1435 = vpop.permute.xlu0 %1434
        %1436 = vrot.lane.b32.xlu0 %v771, 24
        %v1437 = vpop.permute.xlu0 %1436
        %1438 = vrot.lane.b32.xlu0 %v774, 24
        %v1439 = vpop.permute.xlu0 %1438
        %1440 = vrot.lane.b32.xlu0 %v776, 24
        %v1441 = vpop.permute.xlu0 %1440
        %1442 = vrot.lane.b32.xlu0 %v779, 24
        %v1443 = vpop.permute.xlu0 %1442
        %1444 = vrot.lane.b32.xlu0 %v781, 24
        %v1445 = vpop.permute.xlu0 %1444
        %1446 = vrot.lane.b32.xlu0 %v784, 24
        %v1447 = vpop.permute.xlu0 %1446
        %1448 = vrot.lane.b32.xlu0 %v786, 24
        %v1449 = vpop.permute.xlu0 %1448
        %1450 = vrot.lane.b32.xlu0 %v789, 24
        %v1451 = vpop.permute.xlu0 %1450
        %1452 = vrot.lane.b32.xlu0 %v791, 24
        %v1453 = vpop.permute.xlu0 %1452
        %1454 = vrot.lane.b32.xlu0 %v794, 24
        %v1455 = vpop.permute.xlu0 %1454
        %1456 = vrot.lane.b32.xlu0 %v796, 24
        %v1457 = vpop.permute.xlu0 %1456
        %1458 = vrot.lane.b32.xlu0 %v799, 24
        %v1459 = vpop.permute.xlu0 %1458
        %1460 = vrot.lane.b32.xlu0 %v801, 24
        %v1461 = vpop.permute.xlu0 %1460
        %1462 = vrot.lane.b32.xlu0 %v804, 24
        %v1463 = vpop.permute.xlu0 %1462
        %1464 = vrot.lane.b32.xlu0 %v806, 24
        %v1465 = vpop.permute.xlu0 %1464
        %1466 = vrot.lane.b32.xlu0 %v809, 24
        %v1467 = vpop.permute.xlu0 %1466
        %1468 = vrot.lane.b32.xlu0 %v811, 24
        %v1469 = vpop.permute.xlu0 %1468
        %1470 = vrot.lane.b32.xlu0 %v1110, 24
        %v1471 = vpop.permute.xlu0 %1470
        %1472 = vrot.lane.b32.xlu0 %v1112, 24
        %v1473 = vpop.permute.xlu0 %1472
        %1474 = vrot.lane.b32.xlu0 %v1411, 24
        %v1475 = vpop.permute.xlu0 %1474
        %1476 = vrot.lane.b32.xlu0 %v1413, 24
        %v1477 = vpop.permute.xlu0 %1476
        %v1510 = vsel %vm331, %v452, %v636
        %v1511 = vsel %vm331, %v453, %v638
        %v1512 = vsel %vm331, %v455, %v640
        %v1513 = vsel %vm331, %v456, %v642
        %v1514 = vsel %vm331, %v458, %v644
        %v1515 = vsel %vm331, %v459, %v646
        %v1516 = vsel %vm331, %v461, %v648
        %v1517 = vsel %vm331, %v462, %v650
        %v1518 = vsel %vm331, %v464, %v652
        %v1519 = vsel %vm331, %v465, %v654
        %v1520 = vsel %vm331, %v467, %v656
        %v1521 = vsel %vm331, %v468, %v658
        %v1522 = vsel %vm331, %v470, %v660
        %v1523 = vsel %vm331, %v471, %v662
        %v1524 = vsel %vm331, %v473, %v664
        %v1525 = vsel %vm331, %v474, %v666
        %v1526 = vsel %vm331, %v476, %v668
        %v1527 = vsel %vm331, %v477, %v670
        %v1528 = vsel %vm331, %v479, %v672
        %v1529 = vsel %vm331, %v480, %v674
        %v1530 = vsel %vm331, %v482, %v676
        %v1531 = vsel %vm331, %v483, %v678
        %v1532 = vsel %vm331, %v485, %v680
        %v1533 = vsel %vm331, %v486, %v682
        %v1534 = vsel %vm331, %v488, %v684
        %v1535 = vsel %vm331, %v489, %v686
        %v1536 = vsel %vm331, %v491, %v688
        %v1537 = vsel %vm331, %v492, %v690
        %v1538 = vsel %vm331, %v494, %v692
        %v1539 = vsel %vm331, %v495, %v694
        %v1540 = vsel %vm331, %v497, %v696
        %v1541 = vsel %vm331, %v498, %v698
        %vm1542 = vcmask 48128
        %v1543 = vsel %vm1542, %v1510, %v813
        %v1544 = vsel %vm1542, %v1511, %v815
        %v1545 = vsel %vm1542, %v1512, %v817
        %v1546 = vsel %vm1542, %v1513, %v819
        %v1547 = vsel %vm1542, %v1514, %v821
        %v1548 = vsel %vm1542, %v1515, %v823
        %v1549 = vsel %vm1542, %v1516, %v825
        %v1550 = vsel %vm1542, %v1517, %v827
        %v1551 = vsel %vm1542, %v1518, %v829
        %v1552 = vsel %vm1542, %v1519, %v831
        %v1553 = vsel %vm1542, %v1520, %v833
        %v1554 = vsel %vm1542, %v1521, %v835
        %v1555 = vsel %vm1542, %v1522, %v837
        %v1556 = vsel %vm1542, %v1523, %v839
        %v1557 = vsel %vm1542, %v1524, %v841
        %v1558 = vsel %vm1542, %v1525, %v843
        %v1559 = vsel %vm1542, %v1526, %v845
        %v1560 = vsel %vm1542, %v1527, %v847
        %v1561 = vsel %vm1542, %v1528, %v849
        %v1562 = vsel %vm1542, %v1529, %v851
        %v1563 = vsel %vm1542, %v1530, %v853
        %v1564 = vsel %vm1542, %v1531, %v855
        %v1565 = vsel %vm1542, %v1532, %v857
        %v1566 = vsel %vm1542, %v1533, %v859
        %v1567 = vsel %vm1542, %v1534, %v861
        %v1568 = vsel %vm1542, %v1535, %v863
        %v1569 = vsel %vm1542, %v1536, %v865
        %v1570 = vsel %vm1542, %v1537, %v867
        %v1571 = vsel %vm1542, %v1538, %v869
        %v1572 = vsel %vm1542, %v1539, %v871
        %v1573 = vsel %vm1542, %v1540, %v873
        %v1574 = vsel %vm1542, %v1541, %v875
        %vm1575 = vcmask 72704
        %v1576 = vsel %vm1575, %v1543, %v911
        %v1577 = vsel %vm1575, %v1544, %v913
        %v1578 = vsel %vm1575, %v1545, %v915
        %v1579 = vsel %vm1575, %v1546, %v917
        %v1580 = vsel %vm1575, %v1547, %v919
        %v1581 = vsel %vm1575, %v1548, %v921
        %v1582 = vsel %vm1575, %v1549, %v923
        %v1583 = vsel %vm1575, %v1550, %v925
        %v1584 = vsel %vm1575, %v1551, %v927
        %v1585 = vsel %vm1575, %v1552, %v929
        %v1586 = vsel %vm1575, %v1553, %v931
        %v1587 = vsel %vm1575, %v1554, %v933
        %v1588 = vsel %vm1575, %v1555, %v935
        %v1589 = vsel %vm1575, %v1556, %v937
        %v1590 = vsel %vm1575, %v1557, %v939
        %v1591 = vsel %vm1575, %v1558, %v941
        %v1592 = vsel %vm1575, %v1559, %v943
        %v1593 = vsel %vm1575, %v1560, %v945
        %v1594 = vsel %vm1575, %v1561, %v947
        %v1595 = vsel %vm1575, %v1562, %v949
        %v1596 = vsel %vm1575, %v1563, %v951
        %v1597 = vsel %vm1575, %v1564, %v953
        %v1598 = vsel %vm1575, %v1565, %v955
        %v1599 = vsel %vm1575, %v1566, %v957
        %v1600 = vsel %vm1575, %v1567, %v959
        %v1601 = vsel %vm1575, %v1568, %v961
        %v1602 = vsel %vm1575, %v1569, %v963
        %v1603 = vsel %vm1575, %v1570, %v965
        %v1604 = vsel %vm1575, %v1571, %v967
        %v1605 = vsel %vm1575, %v1572, %v969
        %v1606 = vsel %vm1575, %v1573, %v971
        %v1607 = vsel %vm1575, %v1574, %v973
        %vm1608 = vcmask 97280
        %v1609 = vsel %vm1608, %v1576, %v1013
        %v1610 = vsel %vm1608, %v1577, %v1015
        %v1611 = vsel %vm1608, %v1578, %v1017
        %v1612 = vsel %vm1608, %v1579, %v1019
        %v1613 = vsel %vm1608, %v1580, %v1021
        %v1614 = vsel %vm1608, %v1581, %v1023
        %v1615 = vsel %vm1608, %v1582, %v1025
        %v1616 = vsel %vm1608, %v1583, %v1027
        %v1617 = vsel %vm1608, %v1584, %v1029
        %v1618 = vsel %vm1608, %v1585, %v1031
        %v1619 = vsel %vm1608, %v1586, %v1033
        %v1620 = vsel %vm1608, %v1587, %v1035
        %v1621 = vsel %vm1608, %v1588, %v1037
        %v1622 = vsel %vm1608, %v1589, %v1039
        %v1623 = vsel %vm1608, %v1590, %v1041
        %v1624 = vsel %vm1608, %v1591, %v1043
        %v1625 = vsel %vm1608, %v1592, %v1045
        %v1626 = vsel %vm1608, %v1593, %v1047
        %v1627 = vsel %vm1608, %v1594, %v1049
        %v1628 = vsel %vm1608, %v1595, %v1051
        %v1629 = vsel %vm1608, %v1596, %v1053
        %v1630 = vsel %vm1608, %v1597, %v1055
        %v1631 = vsel %vm1608, %v1598, %v1057
        %v1632 = vsel %vm1608, %v1599, %v1059
        %v1633 = vsel %vm1608, %v1600, %v1061
        %v1634 = vsel %vm1608, %v1601, %v1063
        %v1635 = vsel %vm1608, %v1602, %v1065
        %v1636 = vsel %vm1608, %v1603, %v1067
        %v1637 = vsel %vm1608, %v1604, %v1069
        %v1638 = vsel %vm1608, %v1605, %v1071
        %v1639 = vsel %vm1608, %v1606, %v1073
        %v1640 = vsel %vm1608, %v1607, %v1075
        %vm1641 = vcmask 121856
        %v1642 = vsel %vm1641, %v1609, %v1114
        %v1643 = vsel %vm1641, %v1610, %v1116
        %v1644 = vsel %vm1641, %v1611, %v1118
        %v1645 = vsel %vm1641, %v1612, %v1120
        %v1646 = vsel %vm1641, %v1613, %v1122
        %v1647 = vsel %vm1641, %v1614, %v1124
        %v1648 = vsel %vm1641, %v1615, %v1126
        %v1649 = vsel %vm1641, %v1616, %v1128
        %v1650 = vsel %vm1641, %v1617, %v1130
        %v1651 = vsel %vm1641, %v1618, %v1132
        %v1652 = vsel %vm1641, %v1619, %v1134
        %v1653 = vsel %vm1641, %v1620, %v1136
        %v1654 = vsel %vm1641, %v1621, %v1138
        %v1655 = vsel %vm1641, %v1622, %v1140
        %v1656 = vsel %vm1641, %v1623, %v1142
        %v1657 = vsel %vm1641, %v1624, %v1144
        %v1658 = vsel %vm1641, %v1625, %v1146
        %v1659 = vsel %vm1641, %v1626, %v1148
        %v1660 = vsel %vm1641, %v1627, %v1150
        %v1661 = vsel %vm1641, %v1628, %v1152
        %v1662 = vsel %vm1641, %v1629, %v1154
        %v1663 = vsel %vm1641, %v1630, %v1156
        %v1664 = vsel %vm1641, %v1631, %v1158
        %v1665 = vsel %vm1641, %v1632, %v1160
        %v1666 = vsel %vm1641, %v1633, %v1162
        %v1667 = vsel %vm1641, %v1634, %v1164
        %v1668 = vsel %vm1641, %v1635, %v1166
        %v1669 = vsel %vm1641, %v1636, %v1168
        %v1670 = vsel %vm1641, %v1637, %v1170
        %v1671 = vsel %vm1641, %v1638, %v1172
        %v1672 = vsel %vm1641, %v1639, %v1174
        %v1673 = vsel %vm1641, %v1640, %v1176
        %vm1674 = vcmask 146432
        %v1675 = vsel %vm1674, %v1642, %v1212
        %v1676 = vsel %vm1674, %v1643, %v1214
        %v1677 = vsel %vm1674, %v1644, %v1216
        %v1678 = vsel %vm1674, %v1645, %v1218
        %v1679 = vsel %vm1674, %v1646, %v1220
        %v1680 = vsel %vm1674, %v1647, %v1222
        %v1681 = vsel %vm1674, %v1648, %v1224
        %v1682 = vsel %vm1674, %v1649, %v1226
        %v1683 = vsel %vm1674, %v1650, %v1228
        %v1684 = vsel %vm1674, %v1651, %v1230
        %v1685 = vsel %vm1674, %v1652, %v1232
        %v1686 = vsel %vm1674, %v1653, %v1234
        %v1687 = vsel %vm1674, %v1654, %v1236
        %v1688 = vsel %vm1674, %v1655, %v1238
        %v1689 = vsel %vm1674, %v1656, %v1240
        %v1690 = vsel %vm1674, %v1657, %v1242
        %v1691 = vsel %vm1674, %v1658, %v1244
        %v1692 = vsel %vm1674, %v1659, %v1246
        %v1693 = vsel %vm1674, %v1660, %v1248
        %v1694 = vsel %vm1674, %v1661, %v1250
        %v1695 = vsel %vm1674, %v1662, %v1252
        %v1696 = vsel %vm1674, %v1663, %v1254
        %v1697 = vsel %vm1674, %v1664, %v1256
        %v1698 = vsel %vm1674, %v1665, %v1258
        %v1699 = vsel %vm1674, %v1666, %v1260
        %v1700 = vsel %vm1674, %v1667, %v1262
        %v1701 = vsel %vm1674, %v1668, %v1264
        %v1702 = vsel %vm1674, %v1669, %v1266
        %v1703 = vsel %vm1674, %v1670, %v1268
        %v1704 = vsel %vm1674, %v1671, %v1270
        %v1705 = vsel %vm1674, %v1672, %v1272
        %v1706 = vsel %vm1674, %v1673, %v1274
        %vm1707 = vcmask 171008
        %v1708 = vsel %vm1707, %v1675, %v1314
        %v1709 = vsel %vm1707, %v1676, %v1316
        %v1710 = vsel %vm1707, %v1677, %v1318
        %v1711 = vsel %vm1707, %v1678, %v1320
        %v1712 = vsel %vm1707, %v1679, %v1322
        %v1713 = vsel %vm1707, %v1680, %v1324
        %v1714 = vsel %vm1707, %v1681, %v1326
        %v1715 = vsel %vm1707, %v1682, %v1328
        %v1716 = vsel %vm1707, %v1683, %v1330
        %v1717 = vsel %vm1707, %v1684, %v1332
        %v1718 = vsel %vm1707, %v1685, %v1334
        %v1719 = vsel %vm1707, %v1686, %v1336
        %v1720 = vsel %vm1707, %v1687, %v1338
        %v1721 = vsel %vm1707, %v1688, %v1340
        %v1722 = vsel %vm1707, %v1689, %v1342
        %v1723 = vsel %vm1707, %v1690, %v1344
        %v1724 = vsel %vm1707, %v1691, %v1346
        %v1725 = vsel %vm1707, %v1692, %v1348
        %v1726 = vsel %vm1707, %v1693, %v1350
        %v1727 = vsel %vm1707, %v1694, %v1352
        %v1728 = vsel %vm1707, %v1695, %v1354
        %v1729 = vsel %vm1707, %v1696, %v1356
        %v1730 = vsel %vm1707, %v1697, %v1358
        %v1731 = vsel %vm1707, %v1698, %v1360
        %v1732 = vsel %vm1707, %v1699, %v1362
        %v1733 = vsel %vm1707, %v1700, %v1364
        %v1734 = vsel %vm1707, %v1701, %v1366
        %v1735 = vsel %vm1707, %v1702, %v1368
        %v1736 = vsel %vm1707, %v1703, %v1370
        %v1737 = vsel %vm1707, %v1704, %v1372
        %v1738 = vsel %vm1707, %v1705, %v1374
        %v1739 = vsel %vm1707, %v1706, %v1376
        %vm1740 = vcmask 195584
        %v1741 = vsel %vm1740, %v1708, %v1415
        %v1742 = vsel %vm1740, %v1709, %v1417
        %v1743 = vsel %vm1740, %v1710, %v1419
        %v1744 = vsel %vm1740, %v1711, %v1421
        %v1745 = vsel %vm1740, %v1712, %v1423
        %v1746 = vsel %vm1740, %v1713, %v1425
        %v1747 = vsel %vm1740, %v1714, %v1427
        %v1748 = vsel %vm1740, %v1715, %v1429
        %v1749 = vsel %vm1740, %v1716, %v1431
        %v1750 = vsel %vm1740, %v1717, %v1433
        %v1751 = vsel %vm1740, %v1718, %v1435
        %v1752 = vsel %vm1740, %v1719, %v1437
        %v1753 = vsel %vm1740, %v1720, %v1439
        %v1754 = vsel %vm1740, %v1721, %v1441
        %v1755 = vsel %vm1740, %v1722, %v1443
        %v1756 = vsel %vm1740, %v1723, %v1445
        %v1757 = vsel %vm1740, %v1724, %v1447
        %v1758 = vsel %vm1740, %v1725, %v1449
        %v1759 = vsel %vm1740, %v1726, %v1451
        %v1760 = vsel %vm1740, %v1727, %v1453
        %v1761 = vsel %vm1740, %v1728, %v1455
        %v1762 = vsel %vm1740, %v1729, %v1457
        %v1763 = vsel %vm1740, %v1730, %v1459
        %v1764 = vsel %vm1740, %v1731, %v1461
        %v1765 = vsel %vm1740, %v1732, %v1463
        %v1766 = vsel %vm1740, %v1733, %v1465
        %v1767 = vsel %vm1740, %v1734, %v1467
        %v1768 = vsel %vm1740, %v1735, %v1469
        %v1769 = vsel %vm1740, %v1736, %v1471
        %v1770 = vsel %vm1740, %v1737, %v1473
        %v1771 = vsel %vm1740, %v1738, %v1475
        %v1772 = vsel %vm1740, %v1739, %v1477
        %v1773 = vpack.c.bf16 %v1742, %v1741
        %v1774 = vpack.c.bf16 %v1744, %v1743
        %v1775 = vpack.c.bf16 %v1746, %v1745
        %v1776 = vpack.c.bf16 %v1748, %v1747
        %v1777 = vpack.c.bf16 %v1750, %v1749
        %v1778 = vpack.c.bf16 %v1752, %v1751
        %v1779 = vpack.c.bf16 %v1754, %v1753
        %v1780 = vpack.c.bf16 %v1756, %v1755
        %v1781 = vpack.c.bf16 %v1758, %v1757
        %v1782 = vpack.c.bf16 %v1760, %v1759
        %v1783 = vpack.c.bf16 %v1762, %v1761
        %v1784 = vpack.c.bf16 %v1764, %v1763
        %v1785 = vpack.c.bf16 %v1766, %v1765
        %v1786 = vpack.c.bf16 %v1768, %v1767
        %v1787 = vpack.c.bf16 %v1770, %v1769
        %v1788 = vpack.c.bf16 %v1772, %v1771
        %v1789 = vld [vmem:[%s1] sm:$0xf]
        %v1790 = vld [vmem:[%s1 + $0x4] sm:$0xf]
        %v1791 = vld [vmem:[%s1 + $0x8] sm:$0xf]
        %v1792 = vld [vmem:[%s1 + $0xc] sm:$0x3]
        %v1793 = vld [vmem:[%s2] sm:$0x1]
        %v1795 = vlaneseq
        %v1796 = vshrl.u32 %v1795, 7
        %v1797 = vsub.s32 0, %v1796
        %v1798 = vrot.slane %v1793, %v1797
        %v1804 = vunpack.c.l.b16 %v1789
        %v1805 = vunpack.c.l.b16 %v1790
        %v1806 = vunpack.c.l.b16 %v1791
        %v1807 = vunpack.c.l.b16 %v1792
        %v1808 = vpack.c.b16 %v1805, %v1804
        %v1809 = vpack.c.b16 %v1807, %v1806
        %vm1811 = vcmask 220160
        %v1813 = vsel %vm1811, %v1773, 0
        %v1816 = vsel %vm1811, %v1774, 0
        %v1819 = vsel %vm1811, %v1775, 0
        %v1822 = vsel %vm1811, %v1776, 0
        %v1825 = vsel %vm1811, %v1777, 0
        %v1828 = vsel %vm1811, %v1778, 0
        %v1831 = vsel %vm1811, %v1779, 0
        %v1834 = vsel %vm1811, %v1780, 0
        %v1837 = vsel %vm1811, %v1781, 0
        %v1840 = vsel %vm1811, %v1782, 0
        %v1843 = vsel %vm1811, %v1783, 0
        %v1846 = vsel %vm1811, %v1784, 0
        %v1849 = vsel %vm1811, %v1785, 0
        %v1852 = vsel %vm1811, %v1786, 0
        %v1855 = vsel %vm1811, %v1787, 0
        %v1858 = vsel %vm1811, %v1788, 0
        %vm1860 = vcmask 1044480
        %v1861 = vsel %vm1860, 4294967295, 65535
        %v1862 = vsel %vm731, %v1861, 0
        %v1864 = vand.u32 %v1809, %v1862
        %1866 = vmatprep.subr.bf16.mxu0 0
        %1867 = vmatpush1.bf16.msra.mxu0 %v1808
        %1868 = vmatprep.subr.bf16.mxu0 0
        %1869 = vmatpush1.bf16.msra.mxu0 %v1864
        %1870 = vmatprep.subr.bf16.mxu0 0
        %1871 = vmatpush1.bf16.msra.mxu0 0
        %1872 = vmatprep.subr.bf16.mxu0 0
        %1873 = vmatpush1.bf16.msra.mxu0 0
        %1874 = vmatprep.subr.bf16.mxu0 0
        %1875 = vmatpush1.bf16.msra.mxu0 0
        %1876 = vmatprep.subr.bf16.mxu0 0
        %1877 = vmatpush1.bf16.msra.mxu0 0
        %1878 = vmatprep.subr.bf16.mxu0 0
        %1879 = vmatpush1.bf16.msra.mxu0 0
        %1880 = vmatprep.subr.bf16.mxu0 0
        %1881 = vmatpush1.bf16.msra.mxu0 0
        %1882 = vmatprep.subr.bf16.mxu0 0
        %1883 = vmatpush1.bf16.msra.mxu0 0
        %1884 = vmatprep.subr.bf16.mxu0 0
        %1885 = vmatpush1.bf16.msra.mxu0 0
        %1886 = vmatprep.subr.bf16.mxu0 0
        %1887 = vmatpush1.bf16.msra.mxu0 0
        %1888 = vmatprep.subr.bf16.mxu0 0
        %1889 = vmatpush1.bf16.msra.mxu0 0
        %1890 = vmatprep.subr.bf16.mxu0 0
        %1891 = vmatpush1.bf16.msra.mxu0 0
        %1892 = vmatprep.subr.bf16.mxu0 0
        %1893 = vmatpush1.bf16.msra.mxu0 0
        %1894 = vmatprep.subr.bf16.mxu0 0
        %1895 = vmatpush1.bf16.msra.mxu0 0
        %1896 = vmatprep.subr.bf16.mxu0 0
        %1897 = vmatpush1.bf16.msra.mxu0 0
        %1898 = vmatprep.mubr.bf16.mxu0 0
        %1899 = vmatmul.mubr.bf16.gmra.mrb[0].mxu0 %v1813
        %v1900 = vpop.f32.mrb[0].mxu0
        %v1901 = vadd.f32 %v1798, %v1900
        %v1902 = vpop.f32.mrb[0].mxu0
        %v1903 = vpop.f32.mrb[0].mxu0
        %v1904 = vadd.f32 %v1798, %v1903
        %v1905 = vpop.f32.mrb[0].mxu0
        %1906 = vmatprep.mubr.bf16.mxu0 0
        %1907 = vmatmul.mubr.bf16.gmra.mrb[0].mxu0 %v1816
        %v1908 = vpop.f32.mrb[0].mxu0
        %v1909 = vadd.f32 %v1798, %v1908
        %v1910 = vpop.f32.mrb[0].mxu0
        %v1911 = vpop.f32.mrb[0].mxu0
        %v1912 = vadd.f32 %v1798, %v1911
        %v1913 = vpop.f32.mrb[0].mxu0
        %1914 = vmatprep.mubr.bf16.mxu0 0
        %1915 = vmatmul.mubr.bf16.gmra.mrb[0].mxu0 %v1819
        %v1916 = vpop.f32.mrb[0].mxu0
        %v1917 = vadd.f32 %v1798, %v1916
        %v1918 = vpop.f32.mrb[0].mxu0
        %v1919 = vpop.f32.mrb[0].mxu0
        %v1920 = vadd.f32 %v1798, %v1919
        %v1921 = vpop.f32.mrb[0].mxu0
        %1922 = vmatprep.mubr.bf16.mxu0 0
        %1923 = vmatmul.mubr.bf16.gmra.mrb[0].mxu0 %v1822
        %v1924 = vpop.f32.mrb[0].mxu0
        %v1925 = vadd.f32 %v1798, %v1924
        %v1926 = vpop.f32.mrb[0].mxu0
        %v1927 = vpop.f32.mrb[0].mxu0
        %v1928 = vadd.f32 %v1798, %v1927
        %v1929 = vpop.f32.mrb[0].mxu0
        %1930 = vmatprep.mubr.bf16.mxu0 0
        %1931 = vmatmul.mubr.bf16.gmra.mrb[0].mxu0 %v1825
        %v1932 = vpop.f32.mrb[0].mxu0
        %v1933 = vadd.f32 %v1798, %v1932
        %v1934 = vpop.f32.mrb[0].mxu0
        %v1935 = vpop.f32.mrb[0].mxu0
        %v1936 = vadd.f32 %v1798, %v1935
        %v1937 = vpop.f32.mrb[0].mxu0
        %1938 = vmatprep.mubr.bf16.mxu0 0
        %1939 = vmatmul.mubr.bf16.gmra.mrb[0].mxu0 %v1828
        %v1940 = vpop.f32.mrb[0].mxu0
        %v1941 = vadd.f32 %v1798, %v1940
        %v1942 = vpop.f32.mrb[0].mxu0
        %v1943 = vpop.f32.mrb[0].mxu0
        %v1944 = vadd.f32 %v1798, %v1943
        %v1945 = vpop.f32.mrb[0].mxu0
        %1946 = vmatprep.mubr.bf16.mxu0 0
        %1947 = vmatmul.mubr.bf16.gmra.mrb[0].mxu0 %v1831
        %v1948 = vpop.f32.mrb[0].mxu0
        %v1949 = vadd.f32 %v1798, %v1948
        %v1950 = vpop.f32.mrb[0].mxu0
        %v1951 = vpop.f32.mrb[0].mxu0
        %v1952 = vadd.f32 %v1798, %v1951
        %v1953 = vpop.f32.mrb[0].mxu0
        %1954 = vmatprep.mubr.bf16.mxu0 0
        %1955 = vmatmul.mubr.bf16.gmra.mrb[0].mxu0 %v1834
        %v1956 = vpop.f32.mrb[0].mxu0
        %v1957 = vadd.f32 %v1798, %v1956
        %v1958 = vpop.f32.mrb[0].mxu0
        %v1959 = vpop.f32.mrb[0].mxu0
        %v1960 = vadd.f32 %v1798, %v1959
        %v1961 = vpop.f32.mrb[0].mxu0
        %1962 = vmatprep.mubr.bf16.mxu0 0
        %1963 = vmatmul.mubr.bf16.gmra.mrb[0].mxu0 %v1837
        %v1964 = vpop.f32.mrb[0].mxu0
        %v1965 = vadd.f32 %v1798, %v1964
        %v1966 = vpop.f32.mrb[0].mxu0
        %v1967 = vpop.f32.mrb[0].mxu0
        %v1968 = vadd.f32 %v1798, %v1967
        %v1969 = vpop.f32.mrb[0].mxu0
        %1970 = vmatprep.mubr.bf16.mxu0 0
        %1971 = vmatmul.mubr.bf16.gmra.mrb[0].mxu0 %v1840
        %v1972 = vpop.f32.mrb[0].mxu0
        %v1973 = vadd.f32 %v1798, %v1972
        %v1974 = vpop.f32.mrb[0].mxu0
        %v1975 = vpop.f32.mrb[0].mxu0
        %v1976 = vadd.f32 %v1798, %v1975
        %v1977 = vpop.f32.mrb[0].mxu0
        %1978 = vmatprep.mubr.bf16.mxu0 0
        %1979 = vmatmul.mubr.bf16.gmra.mrb[0].mxu0 %v1843
        %v1980 = vpop.f32.mrb[0].mxu0
        %v1981 = vadd.f32 %v1798, %v1980
        %v1982 = vpop.f32.mrb[0].mxu0
        %v1983 = vpop.f32.mrb[0].mxu0
        %v1984 = vadd.f32 %v1798, %v1983
        %v1985 = vpop.f32.mrb[0].mxu0
        %1986 = vmatprep.mubr.bf16.mxu0 0
        %1987 = vmatmul.mubr.bf16.gmra.mrb[0].mxu0 %v1846
        %v1988 = vpop.f32.mrb[0].mxu0
        %v1989 = vadd.f32 %v1798, %v1988
        %v1990 = vpop.f32.mrb[0].mxu0
        %v1991 = vpop.f32.mrb[0].mxu0
        %v1992 = vadd.f32 %v1798, %v1991
        %v1993 = vpop.f32.mrb[0].mxu0
        %1994 = vmatprep.mubr.bf16.mxu0 0
        %1995 = vmatmul.mubr.bf16.gmra.mrb[0].mxu0 %v1849
        %v1996 = vpop.f32.mrb[0].mxu0
        %v1997 = vadd.f32 %v1798, %v1996
        %v1998 = vpop.f32.mrb[0].mxu0
        %v1999 = vpop.f32.mrb[0].mxu0
        %v2000 = vadd.f32 %v1798, %v1999
        %v2001 = vpop.f32.mrb[0].mxu0
        %2002 = vmatprep.mubr.bf16.mxu0 0
        %2003 = vmatmul.mubr.bf16.gmra.mrb[0].mxu0 %v1852
        %v2004 = vpop.f32.mrb[0].mxu0
        %v2005 = vadd.f32 %v1798, %v2004
        %v2006 = vpop.f32.mrb[0].mxu0
        %v2007 = vpop.f32.mrb[0].mxu0
        %v2008 = vadd.f32 %v1798, %v2007
        %v2009 = vpop.f32.mrb[0].mxu0
        %2010 = vmatprep.mubr.bf16.mxu0 0
        %2011 = vmatmul.mubr.bf16.gmra.mrb[0].mxu0 %v1855
        %v2012 = vpop.f32.mrb[0].mxu0
        %v2013 = vadd.f32 %v1798, %v2012
        %v2014 = vpop.f32.mrb[0].mxu0
        %v2015 = vpop.f32.mrb[0].mxu0
        %v2016 = vadd.f32 %v1798, %v2015
        %v2017 = vpop.f32.mrb[0].mxu0
        %2018 = vmatprep.mubr.bf16.mxu0 0
        %2019 = vmatmul.mubr.bf16.gmra.mrb[0].mxu0 %v1858
        %v2020 = vpop.f32.mrb[0].mxu0
        %v2021 = vadd.f32 %v1798, %v2020
        %v2022 = vpop.f32.mrb[0].mxu0
        %v2023 = vpop.f32.mrb[0].mxu0
        %v2024 = vadd.f32 %v1798, %v2023
        %v2025 = vpop.f32.mrb[0].mxu0
        %2026 = vdwg.mxu0
        %v2027 = vmax.f32 %v1901, 0.0
        %v2028 = vmax.f32 %v1904, 0.0
        %v2029 = vmax.f32 %v1909, 0.0
        %v2030 = vmax.f32 %v1912, 0.0
        %v2031 = vmax.f32 %v1917, 0.0
        %v2032 = vmax.f32 %v1920, 0.0
        %v2033 = vmax.f32 %v1925, 0.0
        %v2034 = vmax.f32 %v1928, 0.0
        %v2035 = vmax.f32 %v1933, 0.0
        %v2036 = vmax.f32 %v1936, 0.0
        %v2037 = vmax.f32 %v1941, 0.0
        %v2038 = vmax.f32 %v1944, 0.0
        %v2039 = vmax.f32 %v1949, 0.0
        %v2040 = vmax.f32 %v1952, 0.0
        %v2041 = vmax.f32 %v1957, 0.0
        %v2042 = vmax.f32 %v1960, 0.0
        %v2043 = vmax.f32 %v1965, 0.0
        %v2044 = vmax.f32 %v1968, 0.0
        %v2045 = vmax.f32 %v1973, 0.0
        %v2046 = vmax.f32 %v1976, 0.0
        %v2047 = vmax.f32 %v1981, 0.0
        %v2048 = vmax.f32 %v1984, 0.0
        %v2049 = vmax.f32 %v1989, 0.0
        %v2050 = vmax.f32 %v1992, 0.0
        %v2051 = vmax.f32 %v1997, 0.0
        %v2052 = vmax.f32 %v2000, 0.0
        %v2053 = vmax.f32 %v2005, 0.0
        %v2054 = vmax.f32 %v2008, 0.0
        %v2055 = vmax.f32 %v2013, 0.0
        %v2056 = vmax.f32 %v2016, 0.0
        %v2057 = vmax.f32 %v2021, 0.0
        %v2058 = vmax.f32 %v2024, 0.0
        %vm2059 = vcmask 130048
        %2060 = vst.msk [vmem:[#allocation3] sm:$0xff] %vm2059, %v2027
        %2061 = vst.msk [vmem:[#allocation3 + $0x8] sm:$0xff] %vm2059, %v2028
        %2062 = vst.msk [vmem:[#allocation3 + $0x10] sm:$0xff] %vm2059, %v2029
        %2063 = vst.msk [vmem:[#allocation3 + $0x18] sm:$0xff] %vm2059, %v2030
        %2064 = vst.msk [vmem:[#allocation3 + $0x20] sm:$0xff] %vm2059, %v2031
        %2065 = vst.msk [vmem:[#allocation3 + $0x28] sm:$0xff] %vm2059, %v2032
        %2066 = vst.msk [vmem:[#allocation3 + $0x30] sm:$0xff] %vm2059, %v2033
        %2067 = vst.msk [vmem:[#allocation3 + $0x38] sm:$0xff] %vm2059, %v2034
        %2068 = vst.msk [vmem:[#allocation3 + $0x40] sm:$0xff] %vm2059, %v2035
        %2069 = vst.msk [vmem:[#allocation3 + $0x48] sm:$0xff] %vm2059, %v2036
        %2070 = vst.msk [vmem:[#allocation3 + $0x50] sm:$0xff] %vm2059, %v2037
        %2071 = vst.msk [vmem:[#allocation3 + $0x58] sm:$0xff] %vm2059, %v2038
        %2072 = vst.msk [vmem:[#allocation3 + $0x60] sm:$0xff] %vm2059, %v2039
        %2073 = vst.msk [vmem:[#allocation3 + $0x68] sm:$0xff] %vm2059, %v2040
        %2074 = vst.msk [vmem:[#allocation3 + $0x70] sm:$0xff] %vm2059, %v2041
        %2075 = vst.msk [vmem:[#allocation3 + $0x78] sm:$0xff] %vm2059, %v2042
        %2076 = vst.msk [vmem:[#allocation3 + $0x80] sm:$0xff] %vm2059, %v2043
        %2077 = vst.msk [vmem:[#allocation3 + $0x88] sm:$0xff] %vm2059, %v2044
        %2078 = vst.msk [vmem:[#allocation3 + $0x90] sm:$0xff] %vm2059, %v2045
        %2079 = vst.msk [vmem:[#allocation3 + $0x98] sm:$0xff] %vm2059, %v2046
        %2080 = vst.msk [vmem:[#allocation3 + $0xa0] sm:$0xff] %vm2059, %v2047
        %2081 = vst.msk [vmem:[#allocation3 + $0xa8] sm:$0xff] %vm2059, %v2048
        %2082 = vst.msk [vmem:[#allocation3 + $0xb0] sm:$0xff] %vm2059, %v2049
        %2083 = vst.msk [vmem:[#allocation3 + $0xb8] sm:$0xff] %vm2059, %v2050
        %2084 = vst.msk [vmem:[#allocation3 + $0xc0] sm:$0xff] %vm2059, %v2051
        %2085 = vst.msk [vmem:[#allocation3 + $0xc8] sm:$0xff] %vm2059, %v2052
        %2086 = vst.msk [vmem:[#allocation3 + $0xd0] sm:$0xff] %vm2059, %v2053
        %2087 = vst.msk [vmem:[#allocation3 + $0xd8] sm:$0xff] %vm2059, %v2054
        %2088 = vst.msk [vmem:[#allocation3 + $0xe0] sm:$0xff] %vm2059, %v2055
        %2089 = vst.msk [vmem:[#allocation3 + $0xe8] sm:$0xff] %vm2059, %v2056
        %2090 = vst.msk [vmem:[#allocation3 + $0xf0] sm:$0xff] %vm2059, %v2057
        %2091 = vst.msk [vmem:[#allocation3 + $0xf8] sm:$0xff] %vm2059, %v2058
        %v2092 = vld [vmem:[#allocation3] ss:$2 sm:$0xff]
        %s2093 = scalar_lea.vmem [#allocation3], 16
        %v2094 = vld [vmem:[%s2093] ss:$2 sm:$0xff]
        %s2095 = scalar_lea.vmem [#allocation3], 32
        %v2096 = vld [vmem:[%s2095] ss:$2 sm:$0xff]
        %s2097 = scalar_lea.vmem [#allocation3], 48
        %v2098 = vld [vmem:[%s2097] ss:$2 sm:$0xff]
        %s2099 = scalar_lea.vmem [#allocation3], 64
        %v2100 = vld [vmem:[%s2099] ss:$2 sm:$0xff]
        %s2101 = scalar_lea.vmem [#allocation3], 80
        %v2102 = vld [vmem:[%s2101] ss:$2 sm:$0xff]
        %s2103 = scalar_lea.vmem [#allocation3], 96
        %v2104 = vld [vmem:[%s2103] ss:$2 sm:$0xff]
        %s2105 = scalar_lea.vmem [#allocation3], 112
        %v2106 = vld [vmem:[%s2105] ss:$2 sm:$0xff]
        %s2107 = scalar_lea.vmem [#allocation3], 128
        %v2108 = vld [vmem:[%s2107] ss:$2 sm:$0xff]
        %s2109 = scalar_lea.vmem [#allocation3], 144
        %v2110 = vld [vmem:[%s2109] ss:$2 sm:$0xff]
        %s2111 = scalar_lea.vmem [#allocation3], 160
        %v2112 = vld [vmem:[%s2111] ss:$2 sm:$0xff]
        %s2113 = scalar_lea.vmem [#allocation3], 176
        %v2114 = vld [vmem:[%s2113] ss:$2 sm:$0xff]
        %s2115 = scalar_lea.vmem [#allocation3], 192
        %v2116 = vld [vmem:[%s2115] ss:$2 sm:$0xff]
        %s2117 = scalar_lea.vmem [#allocation3], 208
        %v2118 = vld [vmem:[%s2117] ss:$2 sm:$0xff]
        %s2119 = scalar_lea.vmem [#allocation3], 224
        %v2120 = vld [vmem:[%s2119] ss:$2 sm:$0xff]
        %s2121 = scalar_lea.vmem [#allocation3], 240
        %v2122 = vld [vmem:[%s2121] ss:$2 sm:$0xff]
        %s2123 = scalar_lea.vmem [#allocation3], 1
        %v2124 = vld [vmem:[%s2123] ss:$2 sm:$0xff]
        %s2125 = scalar_lea.vmem [#allocation3], 17
        %v2126 = vld [vmem:[%s2125] ss:$2 sm:$0xff]
        %s2127 = scalar_lea.vmem [#allocation3], 33
        %v2128 = vld [vmem:[%s2127] ss:$2 sm:$0xff]
        %s2129 = scalar_lea.vmem [#allocation3], 49
        %v2130 = vld [vmem:[%s2129] ss:$2 sm:$0xff]
        %s2131 = scalar_lea.vmem [#allocation3], 65
        %v2132 = vld [vmem:[%s2131] ss:$2 sm:$0xff]
        %s2133 = scalar_lea.vmem [#allocation3], 81
        %v2134 = vld [vmem:[%s2133] ss:$2 sm:$0xff]
        %s2135 = scalar_lea.vmem [#allocation3], 97
        %v2136 = vld [vmem:[%s2135] ss:$2 sm:$0xff]
        %s2137 = scalar_lea.vmem [#allocation3], 113
        %v2138 = vld [vmem:[%s2137] ss:$2 sm:$0xff]
        %s2139 = scalar_lea.vmem [#allocation3], 129
        %v2140 = vld [vmem:[%s2139] ss:$2 sm:$0xff]
        %s2141 = scalar_lea.vmem [#allocation3], 145
        %v2142 = vld [vmem:[%s2141] ss:$2 sm:$0xff]
        %s2143 = scalar_lea.vmem [#allocation3], 161
        %v2144 = vld [vmem:[%s2143] ss:$2 sm:$0xff]
        %s2145 = scalar_lea.vmem [#allocation3], 177
        %v2146 = vld [vmem:[%s2145] ss:$2 sm:$0xff]
        %s2147 = scalar_lea.vmem [#allocation3], 193
        %v2148 = vld [vmem:[%s2147] ss:$2 sm:$0xff]
        %s2149 = scalar_lea.vmem [#allocation3], 209
        %v2150 = vld [vmem:[%s2149] ss:$2 sm:$0xff]
        %s2151 = scalar_lea.vmem [#allocation3], 225
        %v2152 = vld [vmem:[%s2151] ss:$2 sm:$0xff]
        %s2153 = scalar_lea.vmem [#allocation3], 241
        %v2154 = vld [vmem:[%s2153] ss:$2 sm:$0xff]
        %v2155 = vmax.f32 %v2092, %v2124
        %v2156 = vmax.f32 %v2094, %v2126
        %v2157 = vmax.f32 %v2096, %v2128
        %v2158 = vmax.f32 %v2098, %v2130
        %v2159 = vmax.f32 %v2100, %v2132
        %v2160 = vmax.f32 %v2102, %v2134
        %v2161 = vmax.f32 %v2104, %v2136
        %v2162 = vmax.f32 %v2106, %v2138
        %v2163 = vmax.f32 %v2108, %v2140
        %v2164 = vmax.f32 %v2110, %v2142
        %v2165 = vmax.f32 %v2112, %v2144
        %v2166 = vmax.f32 %v2114, %v2146
        %v2167 = vmax.f32 %v2116, %v2148
        %v2168 = vmax.f32 %v2118, %v2150
        %v2169 = vmax.f32 %v2120, %v2152
        %v2170 = vmax.f32 %v2122, %v2154
        %v2171 = vsel %vm2059, %v2155, -inf
        %v2172 = vsel %vm2059, %v2156, -inf
        %v2173 = vmax.f32 %v2171, %v2172
        %v2174 = vsel %vm2059, %v2157, -inf
        %v2175 = vsel %vm2059, %v2158, -inf
        %v2176 = vmax.f32 %v2174, %v2175
        %v2177 = vsel %vm2059, %v2159, -inf
        %v2178 = vsel %vm2059, %v2160, -inf
        %v2179 = vmax.f32 %v2177, %v2178
        %v2180 = vsel %vm2059, %v2161, -inf
        %v2181 = vsel %vm2059, %v2162, -inf
        %v2182 = vmax.f32 %v2180, %v2181
        %v2183 = vsel %vm2059, %v2163, -inf
        %v2184 = vsel %vm2059, %v2164, -inf
        %v2185 = vmax.f32 %v2183, %v2184
        %v2186 = vsel %vm2059, %v2165, -inf
        %v2187 = vsel %vm2059, %v2166, -inf
        %v2188 = vmax.f32 %v2186, %v2187
        %v2189 = vsel %vm2059, %v2167, -inf
        %v2190 = vsel %vm2059, %v2168, -inf
        %v2191 = vmax.f32 %v2189, %v2190
        %v2192 = vsel %vm2059, %v2169, -inf
        %v2193 = vsel %vm2059, %v2170, -inf
        %v2194 = vmax.f32 %v2192, %v2193
        %2195 = vst.msk [vmem:[#allocation4] sm:$0xff] %vm2059, 0.0
        %vm2196 = vcmask 123904
        %2197 = vst.msk [vmem:[#allocation4 + $0x8] sm:$0x3] %vm2196, 0.0
        %2198 = vst.msk [vmem:[#allocation4 + $0x10] sm:$0xff] %vm2059, 0.0
        %2199 = vst.msk [vmem:[#allocation4 + $0x18] sm:$0x3] %vm2196, 0.0
        %2200 = vst.msk [vmem:[#allocation4 + $0x20] sm:$0xff] %vm2059, 0.0
        %2201 = vst.msk [vmem:[#allocation4 + $0x28] sm:$0x3] %vm2196, 0.0
        %2202 = vst.msk [vmem:[#allocation4 + $0x30] sm:$0xff] %vm2059, 0.0
        %2203 = vst.msk [vmem:[#allocation4 + $0x38] sm:$0x3] %vm2196, 0.0
        %2204 = vst.msk [vmem:[#allocation4 + $0x40] sm:$0xff] %vm2059, 0.0
        %2205 = vst.msk [vmem:[#allocation4 + $0x48] sm:$0x3] %vm2196, 0.0
        %2206 = vst.msk [vmem:[#allocation4 + $0x50] sm:$0xff] %vm2059, 0.0
        %2207 = vst.msk [vmem:[#allocation4 + $0x58] sm:$0x3] %vm2196, 0.0
        %2208 = vst.msk [vmem:[#allocation4 + $0x60] sm:$0xff] %vm2059, 0.0
        %2209 = vst.msk [vmem:[#allocation4 + $0x68] sm:$0x3] %vm2196, 0.0
        %2210 = vst.msk [vmem:[#allocation4 + $0x70] sm:$0xff] %vm2059, 0.0
        %2211 = vst.msk [vmem:[#allocation4 + $0x78] sm:$0x3] %vm2196, 0.0
        %2212 = vst.msk [vmem:[#allocation4 + $0x80] sm:$0xff] %vm2059, 0.0
        %2213 = vst.msk [vmem:[#allocation4 + $0x88] sm:$0x3] %vm2196, 0.0
        %2214 = vst.msk [vmem:[#allocation4 + $0x90] sm:$0xff] %vm2059, 0.0
        %2215 = vst.msk [vmem:[#allocation4 + $0x98] sm:$0x3] %vm2196, 0.0
        %s2216 = scalar_lea.vmem [#allocation4], 16
        %2217 = vst.msk [vmem:[%s2216 + $0x1] sm:$0xff] %vm2059, %v2173
        %2218 = vst.msk [vmem:[%s2216 + $0x11] sm:$0xff] %vm2059, %v2176
        %2219 = vst.msk [vmem:[%s2216 + $0x21] sm:$0xff] %vm2059, %v2179
        %2220 = vst.msk [vmem:[%s2216 + $0x31] sm:$0xff] %vm2059, %v2182
        %2221 = vst.msk [vmem:[%s2216 + $0x41] sm:$0xff] %vm2059, %v2185
        %2222 = vst.msk [vmem:[%s2216 + $0x51] sm:$0xff] %vm2059, %v2188
        %2223 = vst.msk [vmem:[%s2216 + $0x61] sm:$0xff] %vm2059, %v2191
        %2224 = vst.msk [vmem:[%s2216 + $0x71] sm:$0xff] %vm2059, %v2194
        %v2225 = vld [vmem:[#allocation4] sm:$0xff]
        %v2226 = vld [vmem:[#allocation4 + $0x8] sm:$0x3]
        %v2227 = vld [vmem:[#allocation4 + $0x10] sm:$0xff]
        %v2228 = vld [vmem:[#allocation4 + $0x18] sm:$0x3]
        %v2229 = vld [vmem:[#allocation4 + $0x20] sm:$0xff]
        %v2230 = vld [vmem:[#allocation4 + $0x28] sm:$0x3]
        %v2231 = vld [vmem:[#allocation4 + $0x30] sm:$0xff]
        %v2232 = vld [vmem:[#allocation4 + $0x38] sm:$0x3]
        %v2233 = vld [vmem:[#allocation4 + $0x40] sm:$0xff]
        %v2234 = vld [vmem:[#allocation4 + $0x48] sm:$0x3]
        %v2235 = vld [vmem:[#allocation4 + $0x50] sm:$0xff]
        %v2236 = vld [vmem:[#allocation4 + $0x58] sm:$0x3]
        %v2237 = vld [vmem:[#allocation4 + $0x60] sm:$0xff]
        %v2238 = vld [vmem:[#allocation4 + $0x68] sm:$0x3]
        %v2239 = vld [vmem:[#allocation4 + $0x70] sm:$0xff]
        %v2240 = vld [vmem:[#allocation4 + $0x78] sm:$0x3]
        %v2241 = vld [vmem:[#allocation4 + $0x80] sm:$0xff]
        %v2242 = vld [vmem:[#allocation4 + $0x88] sm:$0x3]
        %v2243 = vld [vmem:[#allocation4 + $0x90] sm:$0xff]
        %v2244 = vld [vmem:[#allocation4 + $0x98] sm:$0x3]
        %v2261 = vrot.slane %v2225, 1
        %v2262 = vrot.slane %v2226, 1
        %v2263 = vsel %vm554, %v2261, %v2262
        %v2264 = vrot.slane %v2227, 1
        %v2265 = vrot.slane %v2228, 1
        %v2266 = vsel %vm554, %v2264, %v2265
        %v2267 = vrot.slane %v2229, 1
        %v2268 = vrot.slane %v2230, 1
        %v2269 = vsel %vm554, %v2267, %v2268
        %v2270 = vrot.slane %v2231, 1
        %v2271 = vrot.slane %v2232, 1
        %v2272 = vsel %vm554, %v2270, %v2271
        %v2273 = vrot.slane %v2233, 1
        %v2274 = vrot.slane %v2234, 1
        %v2275 = vsel %vm554, %v2273, %v2274
        %v2276 = vrot.slane %v2235, 1
        %v2277 = vrot.slane %v2236, 1
        %v2278 = vsel %vm554, %v2276, %v2277
        %v2279 = vrot.slane %v2237, 1
        %v2280 = vrot.slane %v2238, 1
        %v2281 = vsel %vm554, %v2279, %v2280
        %v2282 = vrot.slane %v2239, 1
        %v2283 = vrot.slane %v2240, 1
        %v2284 = vsel %vm554, %v2282, %v2283
        %2285 = vrot.lane.b32.xlu0 %v2263, 16
        %v2286 = vpop.permute.xlu0 %2285
        %2287 = vrot.lane.b32.xlu0 %v2266, 16
        %v2288 = vpop.permute.xlu0 %2287
        %2289 = vrot.lane.b32.xlu0 %v2269, 16
        %v2290 = vpop.permute.xlu0 %2289
        %2291 = vrot.lane.b32.xlu0 %v2272, 16
        %v2292 = vpop.permute.xlu0 %2291
        %2293 = vrot.lane.b32.xlu0 %v2275, 16
        %v2294 = vpop.permute.xlu0 %2293
        %2295 = vrot.lane.b32.xlu0 %v2278, 16
        %v2296 = vpop.permute.xlu0 %2295
        %2297 = vrot.lane.b32.xlu0 %v2281, 16
        %v2298 = vpop.permute.xlu0 %2297
        %2299 = vrot.lane.b32.xlu0 %v2284, 16
        %v2300 = vpop.permute.xlu0 %2299
        %v2309 = vrot.slane %v2225, 2
        %v2310 = vrot.slane %v2226, 2
        %v2311 = vsel %vm731, %v2309, %v2310
        %v2312 = vrot.slane %v2227, 2
        %v2313 = vrot.slane %v2228, 2
        %v2314 = vsel %vm731, %v2312, %v2313
        %v2315 = vrot.slane %v2229, 2
        %v2316 = vrot.slane %v2230, 2
        %v2317 = vsel %vm731, %v2315, %v2316
        %v2318 = vrot.slane %v2231, 2
        %v2319 = vrot.slane %v2232, 2
        %v2320 = vsel %vm731, %v2318, %v2319
        %v2321 = vrot.slane %v2233, 2
        %v2322 = vrot.slane %v2234, 2
        %v2323 = vsel %vm731, %v2321, %v2322
        %v2324 = vrot.slane %v2235, 2
        %v2325 = vrot.slane %v2236, 2
        %v2326 = vsel %vm731, %v2324, %v2325
        %v2327 = vrot.slane %v2237, 2
        %v2328 = vrot.slane %v2238, 2
        %v2329 = vsel %vm731, %v2327, %v2328
        %v2330 = vrot.slane %v2239, 2
        %v2331 = vrot.slane %v2240, 2
        %v2332 = vsel %vm731, %v2330, %v2331
        %2333 = vrot.lane.b32.xlu0 %v2311, 32
        %v2334 = vpop.permute.xlu0 %2333
        %2335 = vrot.lane.b32.xlu0 %v2314, 32
        %v2336 = vpop.permute.xlu0 %2335
        %2337 = vrot.lane.b32.xlu0 %v2317, 32
        %v2338 = vpop.permute.xlu0 %2337
        %2339 = vrot.lane.b32.xlu0 %v2320, 32
        %v2340 = vpop.permute.xlu0 %2339
        %2341 = vrot.lane.b32.xlu0 %v2323, 32
        %v2342 = vpop.permute.xlu0 %2341
        %2343 = vrot.lane.b32.xlu0 %v2326, 32
        %v2344 = vpop.permute.xlu0 %2343
        %2345 = vrot.lane.b32.xlu0 %v2329, 32
        %v2346 = vpop.permute.xlu0 %2345
        %2347 = vrot.lane.b32.xlu0 %v2332, 32
        %v2348 = vpop.permute.xlu0 %2347
        %2358 = vrot.lane.b32.xlu0 %v2227, 48
        %v2359 = vpop.permute.xlu0 %2358
        %2360 = vrot.lane.b32.xlu0 %v2229, 48
        %v2361 = vpop.permute.xlu0 %2360
        %2362 = vrot.lane.b32.xlu0 %v2231, 48
        %v2363 = vpop.permute.xlu0 %2362
        %2364 = vrot.lane.b32.xlu0 %v2233, 48
        %v2365 = vpop.permute.xlu0 %2364
        %2366 = vrot.lane.b32.xlu0 %v2235, 48
        %v2367 = vpop.permute.xlu0 %2366
        %2368 = vrot.lane.b32.xlu0 %v2237, 48
        %v2369 = vpop.permute.xlu0 %2368
        %2370 = vrot.lane.b32.xlu0 %v2239, 48
        %v2371 = vpop.permute.xlu0 %2370
        %2372 = vrot.lane.b32.xlu0 %v2241, 48
        %v2373 = vpop.permute.xlu0 %2372
        %v2383 = vrot.slane %v2241, 1
        %v2384 = vrot.slane %v2242, 1
        %v2385 = vsel %vm554, %v2383, %v2384
        %2386 = vrot.lane.b32.xlu0 %v2266, 64
        %v2387 = vpop.permute.xlu0 %2386
        %2388 = vrot.lane.b32.xlu0 %v2269, 64
        %v2389 = vpop.permute.xlu0 %2388
        %2390 = vrot.lane.b32.xlu0 %v2272, 64
        %v2391 = vpop.permute.xlu0 %2390
        %2392 = vrot.lane.b32.xlu0 %v2275, 64
        %v2393 = vpop.permute.xlu0 %2392
        %2394 = vrot.lane.b32.xlu0 %v2278, 64
        %v2395 = vpop.permute.xlu0 %2394
        %2396 = vrot.lane.b32.xlu0 %v2281, 64
        %v2397 = vpop.permute.xlu0 %2396
        %2398 = vrot.lane.b32.xlu0 %v2284, 64
        %v2399 = vpop.permute.xlu0 %2398
        %2400 = vrot.lane.b32.xlu0 %v2385, 64
        %v2401 = vpop.permute.xlu0 %2400
        %v2410 = vrot.slane %v2241, 2
        %v2411 = vrot.slane %v2242, 2
        %v2412 = vsel %vm731, %v2410, %v2411
        %2413 = vrot.lane.b32.xlu0 %v2314, 80
        %v2414 = vpop.permute.xlu0 %2413
        %2415 = vrot.lane.b32.xlu0 %v2317, 80
        %v2416 = vpop.permute.xlu0 %2415
        %2417 = vrot.lane.b32.xlu0 %v2320, 80
        %v2418 = vpop.permute.xlu0 %2417
        %2419 = vrot.lane.b32.xlu0 %v2323, 80
        %v2420 = vpop.permute.xlu0 %2419
        %2421 = vrot.lane.b32.xlu0 %v2326, 80
        %v2422 = vpop.permute.xlu0 %2421
        %2423 = vrot.lane.b32.xlu0 %v2329, 80
        %v2424 = vpop.permute.xlu0 %2423
        %2425 = vrot.lane.b32.xlu0 %v2332, 80
        %v2426 = vpop.permute.xlu0 %2425
        %2427 = vrot.lane.b32.xlu0 %v2412, 80
        %v2428 = vpop.permute.xlu0 %2427
        %2438 = vrot.lane.b32.xlu0 %v2229, 96
        %v2439 = vpop.permute.xlu0 %2438
        %2440 = vrot.lane.b32.xlu0 %v2231, 96
        %v2441 = vpop.permute.xlu0 %2440
        %2442 = vrot.lane.b32.xlu0 %v2233, 96
        %v2443 = vpop.permute.xlu0 %2442
        %2444 = vrot.lane.b32.xlu0 %v2235, 96
        %v2445 = vpop.permute.xlu0 %2444
        %2446 = vrot.lane.b32.xlu0 %v2237, 96
        %v2447 = vpop.permute.xlu0 %2446
        %2448 = vrot.lane.b32.xlu0 %v2239, 96
        %v2449 = vpop.permute.xlu0 %2448
        %2450 = vrot.lane.b32.xlu0 %v2241, 96
        %v2451 = vpop.permute.xlu0 %2450
        %2452 = vrot.lane.b32.xlu0 %v2243, 96
        %v2453 = vpop.permute.xlu0 %2452
        %v2463 = vrot.slane %v2243, 1
        %v2464 = vrot.slane %v2244, 1
        %v2465 = vsel %vm554, %v2463, %v2464
        %2466 = vrot.lane.b32.xlu0 %v2269, 112
        %v2467 = vpop.permute.xlu0 %2466
        %2468 = vrot.lane.b32.xlu0 %v2272, 112
        %v2469 = vpop.permute.xlu0 %2468
        %2470 = vrot.lane.b32.xlu0 %v2275, 112
        %v2471 = vpop.permute.xlu0 %2470
        %2472 = vrot.lane.b32.xlu0 %v2278, 112
        %v2473 = vpop.permute.xlu0 %2472
        %2474 = vrot.lane.b32.xlu0 %v2281, 112
        %v2475 = vpop.permute.xlu0 %2474
        %2476 = vrot.lane.b32.xlu0 %v2284, 112
        %v2477 = vpop.permute.xlu0 %2476
        %2478 = vrot.lane.b32.xlu0 %v2385, 112
        %v2479 = vpop.permute.xlu0 %2478
        %2480 = vrot.lane.b32.xlu0 %v2465, 112
        %v2481 = vpop.permute.xlu0 %2480
        %v2490 = vrot.slane %v2243, 2
        %v2491 = vrot.slane %v2244, 2
        %v2492 = vsel %vm731, %v2490, %v2491
        %v2501 = vsel %vm2059, %v2225, %v2286
        %v2502 = vsel %vm2059, %v2227, %v2288
        %v2503 = vsel %vm2059, %v2229, %v2290
        %v2504 = vsel %vm2059, %v2231, %v2292
        %v2505 = vsel %vm2059, %v2233, %v2294
        %v2506 = vsel %vm2059, %v2235, %v2296
        %v2507 = vsel %vm2059, %v2237, %v2298
        %v2508 = vsel %vm2059, %v2239, %v2300
        %vm2509 = vcmask 261120
        %v2510 = vsel %vm2509, %v2501, %v2334
        %v2511 = vsel %vm2509, %v2502, %v2336
        %v2512 = vsel %vm2509, %v2503, %v2338
        %v2513 = vsel %vm2509, %v2504, %v2340
        %v2514 = vsel %vm2509, %v2505, %v2342
        %v2515 = vsel %vm2509, %v2506, %v2344
        %v2516 = vsel %vm2509, %v2507, %v2346
        %v2517 = vsel %vm2509, %v2508, %v2348
        %vm2518 = vcmask 392192
        %v2519 = vsel %vm2518, %v2510, %v2359
        %v2520 = vsel %vm2518, %v2511, %v2361
        %v2521 = vsel %vm2518, %v2512, %v2363
        %v2522 = vsel %vm2518, %v2513, %v2365
        %v2523 = vsel %vm2518, %v2514, %v2367
        %v2524 = vsel %vm2518, %v2515, %v2369
        %v2525 = vsel %vm2518, %v2516, %v2371
        %v2526 = vsel %vm2518, %v2517, %v2373
        %vm2527 = vcmask 523264
        %v2528 = vsel %vm2527, %v2519, %v2387
        %v2529 = vsel %vm2527, %v2520, %v2389
        %v2530 = vsel %vm2527, %v2521, %v2391
        %v2531 = vsel %vm2527, %v2522, %v2393
        %v2532 = vsel %vm2527, %v2523, %v2395
        %v2533 = vsel %vm2527, %v2524, %v2397
        %v2534 = vsel %vm2527, %v2525, %v2399
        %v2535 = vsel %vm2527, %v2526, %v2401
        %vm2536 = vcmask 654336
        %v2537 = vsel %vm2536, %v2528, %v2414
        %v2538 = vsel %vm2536, %v2529, %v2416
        %v2539 = vsel %vm2536, %v2530, %v2418
        %v2540 = vsel %vm2536, %v2531, %v2420
        %v2541 = vsel %vm2536, %v2532, %v2422
        %v2542 = vsel %vm2536, %v2533, %v2424
        %v2543 = vsel %vm2536, %v2534, %v2426
        %v2544 = vsel %vm2536, %v2535, %v2428
        %vm2545 = vcmask 785408
        %v2546 = vsel %vm2545, %v2537, %v2439
        %v2547 = vsel %vm2545, %v2538, %v2441
        %v2548 = vsel %vm2545, %v2539, %v2443
        %v2549 = vsel %vm2545, %v2540, %v2445
        %v2550 = vsel %vm2545, %v2541, %v2447
        %v2551 = vsel %vm2545, %v2542, %v2449
        %v2552 = vsel %vm2545, %v2543, %v2451
        %v2553 = vsel %vm2545, %v2544, %v2453
        %vm2554 = vcmask 916480
        %v2555 = vsel %vm2554, %v2546, %v2467
        %v2556 = vsel %vm2554, %v2547, %v2469
        %v2557 = vsel %vm2554, %v2548, %v2471
        %v2558 = vsel %vm2554, %v2549, %v2473
        %v2559 = vsel %vm2554, %v2550, %v2475
        %v2560 = vsel %vm2554, %v2551, %v2477
        %v2561 = vsel %vm2554, %v2552, %v2479
        %v2562 = vsel %vm2554, %v2553, %v2481
        %v2563 = vpack.c.bf16 %v2555, %v2555
        %v2564 = vpack.c.bf16 %v2317, %v2317
        %v2565 = vpack.c.bf16 %v2556, %v2556
        %v2566 = vpack.c.bf16 %v2320, %v2320
        %v2567 = vpack.c.bf16 %v2557, %v2557
        %v2568 = vpack.c.bf16 %v2323, %v2323
        %v2569 = vpack.c.bf16 %v2558, %v2558
        %v2570 = vpack.c.bf16 %v2326, %v2326
        %v2571 = vpack.c.bf16 %v2559, %v2559
        %v2572 = vpack.c.bf16 %v2329, %v2329
        %v2573 = vpack.c.bf16 %v2560, %v2560
        %v2574 = vpack.c.bf16 %v2332, %v2332
        %v2575 = vpack.c.bf16 %v2561, %v2561
        %v2576 = vpack.c.bf16 %v2412, %v2412
        %v2577 = vpack.c.bf16 %v2562, %v2562
        %v2578 = vpack.c.bf16 %v2492, %v2492
        %v2579 = vld [vmem:[%s3] sm:$0xf]
        %v2580 = vld [vmem:[%s3 + $0x4] sm:$0xf]
        %v2581 = vld [vmem:[%s3 + $0x8] sm:$0xf]
        %v2582 = vld [vmem:[%s3 + $0xc] sm:$0xf]
        %v2583 = vld [vmem:[%s3 + $0x10] sm:$0xf]
        %v2584 = vld [vmem:[%s3 + $0x14] sm:$0xf]
        %v2585 = vld [vmem:[%s3 + $0x18] sm:$0xf]
        %v2586 = vld [vmem:[%s3 + $0x1c] sm:$0xf]
        %v2587 = vld [vmem:[%s3 + $0x20] sm:$0xf]
        %v2588 = vld [vmem:[%s3 + $0x24] sm:$0xf]
        %v2589 = vld [vmem:[%s3 + $0x28] sm:$0xf]
        %v2590 = vld [vmem:[%s3 + $0x2c] sm:$0xf]
        %v2591 = vld [vmem:[%s3 + $0x30] sm:$0xf]
        %v2592 = vld [vmem:[%s3 + $0x34] sm:$0xf]
        %v2593 = vld [vmem:[%s3 + $0x38] sm:$0xf]
        %v2594 = vld [vmem:[%s3 + $0x3c] sm:$0xf]
        %v2595 = vld [vmem:[%s3 + $0x40] sm:$0xf]
        %v2596 = vld [vmem:[%s3 + $0x44] sm:$0xf]
        %v2597 = vld [vmem:[%s4] sm:$0x1]
        %v2599 = vlaneseq
        %v2600 = vshrl.u32 %v2599, 7
        %v2601 = vsub.s32 0, %v2600
        %v2602 = vrot.slane %v2597, %v2601
        %v2620 = vunpack.c.l.b16 %v2563
        %v2621 = vunpack.c.l.b16 %v2564
        %v2622 = vunpack.c.l.b16 %v2565
        %v2623 = vunpack.c.l.b16 %v2566
        %v2624 = vunpack.c.l.b16 %v2567
        %v2625 = vunpack.c.l.b16 %v2568
        %v2626 = vunpack.c.l.b16 %v2569
        %v2627 = vunpack.c.l.b16 %v2570
        %v2628 = vunpack.c.l.b16 %v2571
        %v2629 = vunpack.c.l.b16 %v2572
        %v2630 = vunpack.c.l.b16 %v2573
        %v2631 = vunpack.c.l.b16 %v2574
        %v2632 = vunpack.c.l.b16 %v2575
        %v2633 = vunpack.c.l.b16 %v2576
        %v2634 = vunpack.c.l.b16 %v2577
        %v2635 = vunpack.c.l.b16 %v2578
        %v2636 = vpack.c.b16 %v2622, %v2620
        %v2637 = vpack.c.b16 %v2623, %v2621
        %v2638 = vpack.c.b16 %v2626, %v2624
        %v2639 = vpack.c.b16 %v2627, %v2625
        %v2640 = vpack.c.b16 %v2630, %v2628
        %v2641 = vpack.c.b16 %v2631, %v2629
        %v2642 = vpack.c.b16 %v2634, %v2632
        %v2643 = vpack.c.b16 %v2635, %v2633
        %v2666 = vunpack.c.l.b16 %v2579
        %v2667 = vunpack.c.l.b16 %v2580
        %v2668 = vunpack.c.l.b16 %v2581
        %v2669 = vunpack.c.l.b16 %v2582
        %v2670 = vunpack.c.l.b16 %v2583
        %v2671 = vunpack.c.l.b16 %v2584
        %v2672 = vunpack.c.l.b16 %v2585
        %v2673 = vunpack.c.l.b16 %v2586
        %v2674 = vunpack.c.l.b16 %v2587
        %v2675 = vunpack.c.l.b16 %v2588
        %v2676 = vunpack.c.l.b16 %v2589
        %v2677 = vunpack.c.l.b16 %v2590
        %v2678 = vunpack.c.l.b16 %v2591
        %v2679 = vunpack.c.l.b16 %v2592
        %v2680 = vunpack.c.l.b16 %v2593
        %v2681 = vunpack.c.l.b16 %v2594
        %v2682 = vunpack.c.l.b16 %v2595
        %v2683 = vunpack.c.l.b16 %v2596
        %v2684 = vpack.c.b16 %v2667, %v2666
        %v2685 = vpack.c.b16 %v2669, %v2668
        %v2686 = vpack.c.b16 %v2671, %v2670
        %v2687 = vpack.c.b16 %v2673, %v2672
        %v2688 = vpack.c.b16 %v2675, %v2674
        %v2689 = vpack.c.b16 %v2677, %v2676
        %v2690 = vpack.c.b16 %v2679, %v2678
        %v2691 = vpack.c.b16 %v2681, %v2680
        %v2692 = vpack.c.b16 %v2683, %v2682
        %v2703 = vsel %vm2059, %v2637, 0
        %v2706 = vsel %vm2059, %v2639, 0
        %v2709 = vsel %vm2059, %v2641, 0
        %v2712 = vsel %vm2059, %v2643, 0
        %2714 = vmatprep.subr.bf16.mxu0 0
        %2715 = vmatpush1.bf16.msra.mxu0 %v2684
        %2716 = vmatprep.subr.bf16.mxu0 0
        %2717 = vmatpush1.bf16.msra.mxu0 %v2685
        %2718 = vmatprep.subr.bf16.mxu0 0
        %2719 = vmatpush1.bf16.msra.mxu0 %v2686
        %2720 = vmatprep.subr.bf16.mxu0 0
        %2721 = vmatpush1.bf16.msra.mxu0 %v2687
        %2722 = vmatprep.subr.bf16.mxu0 0
        %2723 = vmatpush1.bf16.msra.mxu0 %v2688
        %2724 = vmatprep.subr.bf16.mxu0 0
        %2725 = vmatpush1.bf16.msra.mxu0 %v2689
        %2726 = vmatprep.subr.bf16.mxu0 0
        %2727 = vmatpush1.bf16.msra.mxu0 %v2690
        %2728 = vmatprep.subr.bf16.mxu0 0
        %2729 = vmatpush1.bf16.msra.mxu0 %v2691
        %2730 = vmatprep.subr.bf16.mxu0 0
        %2731 = vmatpush1.bf16.msra.mxu0 %v2692
        %2732 = vmatprep.subr.bf16.mxu0 0
        %2733 = vmatpush1.bf16.msra.mxu0 0
        %2734 = vmatprep.subr.bf16.mxu0 0
        %2735 = vmatpush1.bf16.msra.mxu0 0
        %2736 = vmatprep.subr.bf16.mxu0 0
        %2737 = vmatpush1.bf16.msra.mxu0 0
        %2738 = vmatprep.subr.bf16.mxu0 0
        %2739 = vmatpush1.bf16.msra.mxu0 0
        %2740 = vmatprep.subr.bf16.mxu0 0
        %2741 = vmatpush1.bf16.msra.mxu0 0
        %2742 = vmatprep.subr.bf16.mxu0 0
        %2743 = vmatpush1.bf16.msra.mxu0 0
        %2744 = vmatprep.subr.bf16.mxu0 0
        %2745 = vmatpush1.bf16.msra.mxu0 0
        %2746 = vmatprep.mubr.bf16.mxu0 %v2703
        %2747 = vmatmul.mubr.bf16.gmra.mrb[0].mxu0 %v2636
        %v2748 = vpop.f32.mrb[0].mxu0
        %v2749 = vadd.f32 %v2602, %v2748
        %v2750 = vpop.f32.mrb[0].mxu0
        %v2751 = vpop.f32.mrb[0].mxu0
        %v2752 = vadd.f32 %v2602, %v2751
        %v2753 = vpop.f32.mrb[0].mxu0
        %2754 = vmatprep.mubr.bf16.mxu0 %v2706
        %2755 = vmatmul.mubr.bf16.gmra.mrb[0].mxu0 %v2638
        %v2756 = vpop.f32.mrb[0].mxu0
        %v2757 = vadd.f32 %v2602, %v2756
        %v2758 = vpop.f32.mrb[0].mxu0
        %v2759 = vpop.f32.mrb[0].mxu0
        %v2760 = vadd.f32 %v2602, %v2759
        %v2761 = vpop.f32.mrb[0].mxu0
        %2762 = vmatprep.mubr.bf16.mxu0 %v2709
        %2763 = vmatmul.mubr.bf16.gmra.mrb[0].mxu0 %v2640
        %v2764 = vpop.f32.mrb[0].mxu0
        %v2765 = vadd.f32 %v2602, %v2764
        %v2766 = vpop.f32.mrb[0].mxu0
        %v2767 = vpop.f32.mrb[0].mxu0
        %v2768 = vadd.f32 %v2602, %v2767
        %v2769 = vpop.f32.mrb[0].mxu0
        %2770 = vmatprep.mubr.bf16.mxu0 %v2712
        %2771 = vmatmul.mubr.bf16.gmra.mrb[0].mxu0 %v2642
        %v2772 = vpop.f32.mrb[0].mxu0
        %v2773 = vadd.f32 %v2602, %v2772
        %v2774 = vpop.f32.mrb[0].mxu0
        %v2775 = vpop.f32.mrb[0].mxu0
        %v2776 = vadd.f32 %v2602, %v2775
        %v2777 = vpop.f32.mrb[0].mxu0
        %2778 = vdwg.mxu0
        %v2779 = vmax.f32 %v2749, 0.0
        %v2780 = vmax.f32 %v2752, 0.0
        %v2781 = vmax.f32 %v2757, 0.0
        %v2782 = vmax.f32 %v2760, 0.0
        %v2783 = vmax.f32 %v2765, 0.0
        %v2784 = vmax.f32 %v2768, 0.0
        %v2785 = vmax.f32 %v2773, 0.0
        %v2786 = vmax.f32 %v2776, 0.0
        %2787 = vst.msk [vmem:[#allocation5] sm:$0xff] %vm2509, %v2779
        %2788 = vst.msk [vmem:[#allocation5 + $0x8] sm:$0xff] %vm2509, %v2780
        %2789 = vst.msk [vmem:[#allocation5 + $0x10] sm:$0xff] %vm2509, %v2781
        %2790 = vst.msk [vmem:[#allocation5 + $0x18] sm:$0xff] %vm2509, %v2782
        %2791 = vst.msk [vmem:[#allocation5 + $0x20] sm:$0xff] %vm2509, %v2783
        %2792 = vst.msk [vmem:[#allocation5 + $0x28] sm:$0xff] %vm2509, %v2784
        %2793 = vst.msk [vmem:[#allocation5 + $0x30] sm:$0xff] %vm2509, %v2785
        %2794 = vst.msk [vmem:[#allocation5 + $0x38] sm:$0xff] %vm2509, %v2786
        %v2795 = vld [vmem:[#allocation5] ss:$2 sm:$0xf]
        %s2796 = scalar_lea.vmem [#allocation5], 8
        %v2797 = vld [vmem:[%s2796] ss:$2 sm:$0xf]
        %s2798 = scalar_lea.vmem [#allocation5], 16
        %v2799 = vld [vmem:[%s2798] ss:$2 sm:$0xf]
        %s2800 = scalar_lea.vmem [#allocation5], 24
        %v2801 = vld [vmem:[%s2800] ss:$2 sm:$0xf]
        %s2802 = scalar_lea.vmem [#allocation5], 32
        %v2803 = vld [vmem:[%s2802] ss:$2 sm:$0xf]
        %s2804 = scalar_lea.vmem [#allocation5], 40
        %v2805 = vld [vmem:[%s2804] ss:$2 sm:$0xf]
        %s2806 = scalar_lea.vmem [#allocation5], 48
        %v2807 = vld [vmem:[%s2806] ss:$2 sm:$0xf]
        %s2808 = scalar_lea.vmem [#allocation5], 56
        %v2809 = vld [vmem:[%s2808] ss:$2 sm:$0xf]
        %s2810 = scalar_lea.vmem [#allocation5], 1
        %v2811 = vld [vmem:[%s2810] ss:$2 sm:$0xf]
        %s2812 = scalar_lea.vmem [#allocation5], 9
        %v2813 = vld [vmem:[%s2812] ss:$2 sm:$0xf]
        %s2814 = scalar_lea.vmem [#allocation5], 17
        %v2815 = vld [vmem:[%s2814] ss:$2 sm:$0xf]
        %s2816 = scalar_lea.vmem [#allocation5], 25
        %v2817 = vld [vmem:[%s2816] ss:$2 sm:$0xf]
        %s2818 = scalar_lea.vmem [#allocation5], 33
        %v2819 = vld [vmem:[%s2818] ss:$2 sm:$0xf]
        %s2820 = scalar_lea.vmem [#allocation5], 41
        %v2821 = vld [vmem:[%s2820] ss:$2 sm:$0xf]
        %s2822 = scalar_lea.vmem [#allocation5], 49
        %v2823 = vld [vmem:[%s2822] ss:$2 sm:$0xf]
        %s2824 = scalar_lea.vmem [#allocation5], 57
        %v2825 = vld [vmem:[%s2824] ss:$2 sm:$0xf]
        %v2826 = vmax.f32 %v2795, %v2811
        %v2827 = vmax.f32 %v2797, %v2813
        %v2828 = vmax.f32 %v2799, %v2815
        %v2829 = vmax.f32 %v2801, %v2817
        %v2830 = vmax.f32 %v2803, %v2819
        %v2831 = vmax.f32 %v2805, %v2821
        %v2832 = vmax.f32 %v2807, %v2823
        %v2833 = vmax.f32 %v2809, %v2825
        %vm2834 = vcmask 257024
        %v2835 = vsel %vm2834, %v2826, -inf
        %v2836 = vsel %vm2834, %v2827, -inf
        %v2837 = vmax.f32 %v2835, %v2836
        %v2838 = vsel %vm2834, %v2828, -inf
        %v2839 = vsel %vm2834, %v2829, -inf
        %v2840 = vmax.f32 %v2838, %v2839
        %v2841 = vsel %vm2834, %v2830, -inf
        %v2842 = vsel %vm2834, %v2831, -inf
        %v2843 = vmax.f32 %v2841, %v2842
        %v2844 = vsel %vm2834, %v2832, -inf
        %v2845 = vsel %vm2834, %v2833, -inf
        %v2846 = vmax.f32 %v2844, %v2845
        %v2848 = vrot.slane %v2837, 1
        %2849 = vrot.lane.b32.xlu0 %v2848, 32
        %v2850 = vpop.permute.xlu0 %2849
        %v2852 = vrot.slane %v2837, 2
        %2853 = vrot.lane.b32.xlu0 %v2852, 64
        %v2854 = vpop.permute.xlu0 %2853
        %v2856 = vrot.slane %v2837, 3
        %2857 = vrot.lane.b32.xlu0 %v2856, 96
        %v2858 = vpop.permute.xlu0 %2857
        %v2861 = vrot.slane %v2840, 1
        %2862 = vrot.lane.b32.xlu0 %v2861, 32
        %v2863 = vpop.permute.xlu0 %2862
        %v2865 = vrot.slane %v2840, 2
        %2866 = vrot.lane.b32.xlu0 %v2865, 64
        %v2867 = vpop.permute.xlu0 %2866
        %v2869 = vrot.slane %v2840, 3
        %2870 = vrot.lane.b32.xlu0 %v2869, 96
        %v2871 = vpop.permute.xlu0 %2870
        %v2874 = vrot.slane %v2843, 1
        %2875 = vrot.lane.b32.xlu0 %v2874, 32
        %v2876 = vpop.permute.xlu0 %2875
        %v2878 = vrot.slane %v2843, 2
        %2879 = vrot.lane.b32.xlu0 %v2878, 64
        %v2880 = vpop.permute.xlu0 %2879
        %v2882 = vrot.slane %v2843, 3
        %2883 = vrot.lane.b32.xlu0 %v2882, 96
        %v2884 = vpop.permute.xlu0 %2883
        %v2887 = vrot.slane %v2846, 1
        %2888 = vrot.lane.b32.xlu0 %v2887, 32
        %v2889 = vpop.permute.xlu0 %2888
        %v2891 = vrot.slane %v2846, 2
        %2892 = vrot.lane.b32.xlu0 %v2891, 64
        %v2893 = vpop.permute.xlu0 %2892
        %v2895 = vrot.slane %v2846, 3
        %2896 = vrot.lane.b32.xlu0 %v2895, 96
        %v2897 = vpop.permute.xlu0 %2896
        %v2899 = vsel %vm2509, %v2837, %v2850
        %v2900 = vsel %vm2527, %v2899, %v2854
        %v2901 = vsel %vm2545, %v2900, %v2858
        %v2902 = vsel %vm2509, %v2840, %v2863
        %v2903 = vsel %vm2527, %v2902, %v2867
        %v2904 = vsel %vm2545, %v2903, %v2871
        %v2905 = vsel %vm2509, %v2843, %v2876
        %v2906 = vsel %vm2527, %v2905, %v2880
        %v2907 = vsel %vm2545, %v2906, %v2884
        %v2908 = vsel %vm2509, %v2846, %v2889
        %v2909 = vsel %vm2527, %v2908, %v2893
        %v2910 = vsel %vm2545, %v2909, %v2897
        %v2911 = vpack.c.bf16 %v2901, %v2901
        %v2912 = vpack.c.bf16 %v2904, %v2904
        %v2913 = vpack.c.bf16 %v2907, %v2907
        %v2914 = vpack.c.bf16 %v2910, %v2910
        %v2915 = vld [vmem:[%s5] sm:$0xf]
        %v2916 = vld [vmem:[%s5 + $0x4] sm:$0xf]
        %v2917 = vld [vmem:[%s5 + $0x8] sm:$0xf]
        %v2918 = vld [vmem:[%s5 + $0xc] sm:$0xf]
        %v2919 = vld [vmem:[%s5 + $0x10] sm:$0xf]
        %v2920 = vld [vmem:[%s5 + $0x14] sm:$0xf]
        %v2921 = vld [vmem:[%s5 + $0x18] sm:$0xf]
        %v2922 = vld [vmem:[%s5 + $0x1c] sm:$0xf]
        %v2923 = vld [vmem:[%s5 + $0x20] sm:$0xf]
        %v2924 = vld [vmem:[%s5 + $0x24] sm:$0xf]
        %v2925 = vld [vmem:[%s5 + $0x28] sm:$0xf]
        %v2926 = vld [vmem:[%s5 + $0x2c] sm:$0xf]
        %v2927 = vld [vmem:[%s5 + $0x30] sm:$0xf]
        %v2928 = vld [vmem:[%s5 + $0x34] sm:$0xf]
        %v2929 = vld [vmem:[%s5 + $0x38] sm:$0xf]
        %v2930 = vld [vmem:[%s5 + $0x3c] sm:$0xf]
        %v2931 = vld [vmem:[%s5 + $0x40] sm:$0xf]
        %v2932 = vld [vmem:[%s5 + $0x44] sm:$0xf]
        %v2933 = vld [vmem:[%s5 + $0x48] sm:$0xf]
        %v2934 = vld [vmem:[%s5 + $0x4c] sm:$0xf]
        %v2935 = vld [vmem:[%s5 + $0x50] sm:$0xf]
        %v2936 = vld [vmem:[%s5 + $0x54] sm:$0xf]
        %v2937 = vld [vmem:[%s5 + $0x58] sm:$0xf]
        %v2938 = vld [vmem:[%s5 + $0x5c] sm:$0xf]
        %v2939 = vld [vmem:[%s5 + $0x60] sm:$0xf]
        %v2940 = vld [vmem:[%s5 + $0x64] sm:$0xf]
        %v2941 = vld [vmem:[%s5 + $0x68] sm:$0xf]
        %v2942 = vld [vmem:[%s5 + $0x6c] sm:$0xf]
        %v2943 = vld [vmem:[%s5 + $0x70] sm:$0xf]
        %v2944 = vld [vmem:[%s5 + $0x74] sm:$0xf]
        %v2945 = vld [vmem:[%s5 + $0x78] sm:$0xf]
        %v2946 = vld [vmem:[%s5 + $0x7c] sm:$0xf]
        %v2947 = vld [vmem:[%s5 + $0x80] sm:$0xf]
        %v2948 = vld [vmem:[%s5 + $0x84] sm:$0xf]
        %v2949 = vld [vmem:[%s5 + $0x88] sm:$0xf]
        %v2950 = vld [vmem:[%s5 + $0x8c] sm:$0xf]
        %v2951 = vld [vmem:[%s5 + $0x90] sm:$0xf]
        %v2952 = vld [vmem:[%s5 + $0x94] sm:$0xf]
        %v2953 = vld [vmem:[%s5 + $0x98] sm:$0xf]
        %v2954 = vld [vmem:[%s5 + $0x9c] sm:$0xf]
        %v2955 = vld [vmem:[%s5 + $0xa0] sm:$0xf]
        %v2956 = vld [vmem:[%s5 + $0xa4] sm:$0xf]
        %v2957 = vld [vmem:[%s5 + $0xa8] sm:$0xf]
        %v2958 = vld [vmem:[%s5 + $0xac] sm:$0xf]
        %v2959 = vld [vmem:[%s5 + $0xb0] sm:$0xf]
        %v2960 = vld [vmem:[%s5 + $0xb4] sm:$0xf]
        %v2961 = vld [vmem:[%s5 + $0xb8] sm:$0xf]
        %v2962 = vld [vmem:[%s5 + $0xbc] sm:$0xf]
        %v2963 = vld [vmem:[%s5 + $0xc0] sm:$0xf]
        %v2964 = vld [vmem:[%s5 + $0xc4] sm:$0xf]
        %v2965 = vld [vmem:[%s5 + $0xc8] sm:$0xf]
        %v2966 = vld [vmem:[%s5 + $0xcc] sm:$0xf]
        %v2967 = vld [vmem:[%s5 + $0xd0] sm:$0xf]
        %v2968 = vld [vmem:[%s5 + $0xd4] sm:$0xf]
        %v2969 = vld [vmem:[%s5 + $0xd8] sm:$0xf]
        %v2970 = vld [vmem:[%s5 + $0xdc] sm:$0xf]
        %v2971 = vld [vmem:[%s5 + $0xe0] sm:$0xf]
        %v2972 = vld [vmem:[%s5 + $0xe4] sm:$0xf]
        %v2973 = vld [vmem:[%s5 + $0xe8] sm:$0xf]
        %v2974 = vld [vmem:[%s5 + $0xec] sm:$0xf]
        %v2975 = vld [vmem:[%s5 + $0xf0] sm:$0xf]
        %v2976 = vld [vmem:[%s5 + $0xf4] sm:$0xf]
        %v2977 = vld [vmem:[%s5 + $0xf8] sm:$0xf]
        %v2978 = vld [vmem:[%s5 + $0xfc] sm:$0xf]
        %v2979 = vld [vmem:[%s6] sm:$0x1]
        %v3044 = vunpack.c.l.b16 %v2915
        %v3045 = vunpack.c.l.b16 %v2916
        %v3046 = vunpack.c.l.b16 %v2917
        %v3047 = vunpack.c.l.b16 %v2918
        %v3048 = vunpack.c.l.b16 %v2919
        %v3049 = vunpack.c.l.b16 %v2920
        %v3050 = vunpack.c.l.b16 %v2921
        %v3051 = vunpack.c.l.b16 %v2922
        %v3052 = vunpack.c.l.b16 %v2923
        %v3053 = vunpack.c.l.b16 %v2924
        %v3054 = vunpack.c.l.b16 %v2925
        %v3055 = vunpack.c.l.b16 %v2926
        %v3056 = vunpack.c.l.b16 %v2927
        %v3057 = vunpack.c.l.b16 %v2928
        %v3058 = vunpack.c.l.b16 %v2929
        %v3059 = vunpack.c.l.b16 %v2930
        %v3060 = vunpack.c.l.b16 %v2931
        %v3061 = vunpack.c.l.b16 %v2932
        %v3062 = vunpack.c.l.b16 %v2933
        %v3063 = vunpack.c.l.b16 %v2934
        %v3064 = vunpack.c.l.b16 %v2935
        %v3065 = vunpack.c.l.b16 %v2936
        %v3066 = vunpack.c.l.b16 %v2937
        %v3067 = vunpack.c.l.b16 %v2938
        %v3068 = vunpack.c.l.b16 %v2939
        %v3069 = vunpack.c.l.b16 %v2940
        %v3070 = vunpack.c.l.b16 %v2941
        %v3071 = vunpack.c.l.b16 %v2942
        %v3072 = vunpack.c.l.b16 %v2943
        %v3073 = vunpack.c.l.b16 %v2944
        %v3074 = vunpack.c.l.b16 %v2945
        %v3075 = vunpack.c.l.b16 %v2946
        %v3076 = vunpack.c.l.b16 %v2947
        %v3077 = vunpack.c.l.b16 %v2948
        %v3078 = vunpack.c.l.b16 %v2949
        %v3079 = vunpack.c.l.b16 %v2950
        %v3080 = vunpack.c.l.b16 %v2951
        %v3081 = vunpack.c.l.b16 %v2952
        %v3082 = vunpack.c.l.b16 %v2953
        %v3083 = vunpack.c.l.b16 %v2954
        %v3084 = vunpack.c.l.b16 %v2955
        %v3085 = vunpack.c.l.b16 %v2956
        %v3086 = vunpack.c.l.b16 %v2957
        %v3087 = vunpack.c.l.b16 %v2958
        %v3088 = vunpack.c.l.b16 %v2959
        %v3089 = vunpack.c.l.b16 %v2960
        %v3090 = vunpack.c.l.b16 %v2961
        %v3091 = vunpack.c.l.b16 %v2962
        %v3092 = vunpack.c.l.b16 %v2963
        %v3093 = vunpack.c.l.b16 %v2964
        %v3094 = vunpack.c.l.b16 %v2965
        %v3095 = vunpack.c.l.b16 %v2966
        %v3096 = vunpack.c.l.b16 %v2967
        %v3097 = vunpack.c.l.b16 %v2968
        %v3098 = vunpack.c.l.b16 %v2969
        %v3099 = vunpack.c.l.b16 %v2970
        %v3100 = vunpack.c.l.b16 %v2971
        %v3101 = vunpack.c.l.b16 %v2972
        %v3102 = vunpack.c.l.b16 %v2973
        %v3103 = vunpack.c.l.b16 %v2974
        %v3104 = vunpack.c.l.b16 %v2975
        %v3105 = vunpack.c.l.b16 %v2976
        %v3106 = vunpack.c.l.b16 %v2977
        %v3107 = vunpack.c.l.b16 %v2978
        %v3108 = vpack.c.b16 %v3045, %v3044
        %v3109 = vpack.c.b16 %v3047, %v3046
        %v3110 = vpack.c.b16 %v3049, %v3048
        %v3111 = vpack.c.b16 %v3051, %v3050
        %v3112 = vpack.c.b16 %v3053, %v3052
        %v3113 = vpack.c.b16 %v3055, %v3054
        %v3114 = vpack.c.b16 %v3057, %v3056
        %v3115 = vpack.c.b16 %v3059, %v3058
        %v3116 = vpack.c.b16 %v3061, %v3060
        %v3117 = vpack.c.b16 %v3063, %v3062
        %v3118 = vpack.c.b16 %v3065, %v3064
        %v3119 = vpack.c.b16 %v3067, %v3066
        %v3120 = vpack.c.b16 %v3069, %v3068
        %v3121 = vpack.c.b16 %v3071, %v3070
        %v3122 = vpack.c.b16 %v3073, %v3072
        %v3123 = vpack.c.b16 %v3075, %v3074
        %v3124 = vpack.c.b16 %v3077, %v3076
        %v3125 = vpack.c.b16 %v3079, %v3078
        %v3126 = vpack.c.b16 %v3081, %v3080
        %v3127 = vpack.c.b16 %v3083, %v3082
        %v3128 = vpack.c.b16 %v3085, %v3084
        %v3129 = vpack.c.b16 %v3087, %v3086
        %v3130 = vpack.c.b16 %v3089, %v3088
        %v3131 = vpack.c.b16 %v3091, %v3090
        %v3132 = vpack.c.b16 %v3093, %v3092
        %v3133 = vpack.c.b16 %v3095, %v3094
        %v3134 = vpack.c.b16 %v3097, %v3096
        %v3135 = vpack.c.b16 %v3099, %v3098
        %v3136 = vpack.c.b16 %v3101, %v3100
        %v3137 = vpack.c.b16 %v3103, %v3102
        %v3138 = vpack.c.b16 %v3105, %v3104
        %v3139 = vpack.c.b16 %v3107, %v3106
        %3172 = vmatprep.subr.bf16.mxu0 0
        %3173 = vmatpush1.bf16.msra.mxu0 %v3108
        %3174 = vmatprep.subr.bf16.mxu0 0
        %3175 = vmatpush1.bf16.msra.mxu0 %v3109
        %3176 = vmatprep.subr.bf16.mxu0 0
        %3177 = vmatpush1.bf16.msra.mxu0 %v3110
        %3178 = vmatprep.subr.bf16.mxu0 0
        %3179 = vmatpush1.bf16.msra.mxu0 %v3111
        %3180 = vmatprep.subr.bf16.mxu0 0
        %3181 = vmatpush1.bf16.msra.mxu0 %v3112
        %3182 = vmatprep.subr.bf16.mxu0 0
        %3183 = vmatpush1.bf16.msra.mxu0 %v3113
        %3184 = vmatprep.subr.bf16.mxu0 0
        %3185 = vmatpush1.bf16.msra.mxu0 %v3114
        %3186 = vmatprep.subr.bf16.mxu0 0
        %3187 = vmatpush1.bf16.msra.mxu0 %v3115
        %3188 = vmatprep.subr.bf16.mxu0 0
        %3189 = vmatpush1.bf16.msra.mxu0 %v3116
        %3190 = vmatprep.subr.bf16.mxu0 0
        %3191 = vmatpush1.bf16.msra.mxu0 %v3117
        %3192 = vmatprep.subr.bf16.mxu0 0
        %3193 = vmatpush1.bf16.msra.mxu0 %v3118
        %3194 = vmatprep.subr.bf16.mxu0 0
        %3195 = vmatpush1.bf16.msra.mxu0 %v3119
        %3196 = vmatprep.subr.bf16.mxu0 0
        %3197 = vmatpush1.bf16.msra.mxu0 %v3120
        %3198 = vmatprep.subr.bf16.mxu0 0
        %3199 = vmatpush1.bf16.msra.mxu0 %v3121
        %3200 = vmatprep.subr.bf16.mxu0 0
        %3201 = vmatpush1.bf16.msra.mxu0 %v3122
        %3202 = vmatprep.subr.bf16.mxu0 0
        %3203 = vmatpush1.bf16.msra.mxu0 %v3123
        %3204 = vmatprep.mubr.bf16.mxu0 %v2912
        %3205 = vmatmul.mubr.bf16.gmra.mrb[0].mxu0 %v2911
        %v3206 = vpop.f32.mrb[0].mxu0
        %v3207 = vadd.f32 %v2979, %v3206
        %v3208 = vpop.f32.mrb[0].mxu0
        %v3209 = vpop.f32.mrb[0].mxu0
        %v3210 = vpop.f32.mrb[0].mxu0
        %3211 = vdwg.mxu0
        %3212 = vmatprep.subr.bf16.mxu0 0
        %3213 = vmatpush1.bf16.msra.mxu0 %v3124
        %3214 = vmatprep.subr.bf16.mxu0 0
        %3215 = vmatpush1.bf16.msra.mxu0 %v3125
        %3216 = vmatprep.subr.bf16.mxu0 0
        %3217 = vmatpush1.bf16.msra.mxu0 %v3126
        %3218 = vmatprep.subr.bf16.mxu0 0
        %3219 = vmatpush1.bf16.msra.mxu0 %v3127
        %3220 = vmatprep.subr.bf16.mxu0 0
        %3221 = vmatpush1.bf16.msra.mxu0 %v3128
        %3222 = vmatprep.subr.bf16.mxu0 0
        %3223 = vmatpush1.bf16.msra.mxu0 %v3129
        %3224 = vmatprep.subr.bf16.mxu0 0
        %3225 = vmatpush1.bf16.msra.mxu0 %v3130
        %3226 = vmatprep.subr.bf16.mxu0 0
        %3227 = vmatpush1.bf16.msra.mxu0 %v3131
        %3228 = vmatprep.subr.bf16.mxu0 0
        %3229 = vmatpush1.bf16.msra.mxu0 %v3132
        %3230 = vmatprep.subr.bf16.mxu0 0
        %3231 = vmatpush1.bf16.msra.mxu0 %v3133
        %3232 = vmatprep.subr.bf16.mxu0 0
        %3233 = vmatpush1.bf16.msra.mxu0 %v3134
        %3234 = vmatprep.subr.bf16.mxu0 0
        %3235 = vmatpush1.bf16.msra.mxu0 %v3135
        %3236 = vmatprep.subr.bf16.mxu0 0
        %3237 = vmatpush1.bf16.msra.mxu0 %v3136
        %3238 = vmatprep.subr.bf16.mxu0 0
        %3239 = vmatpush1.bf16.msra.mxu0 %v3137
        %3240 = vmatprep.subr.bf16.mxu0 0
        %3241 = vmatpush1.bf16.msra.mxu0 %v3138
        %3242 = vmatprep.subr.bf16.mxu0 0
        %3243 = vmatpush1.bf16.msra.mxu0 %v3139
        %3244 = vmatprep.mubr.bf16.mxu0 %v2914
        %3245 = vmatmul.mubr.bf16.gmra.mrb[0].mxu0 %v2913
        %v3246 = vpop.f32.mrb[0].mxu0
        %v3247 = vadd.f32 %v3207, %v3246
        %v3248 = vpop.f32.mrb[0].mxu0
        %v3249 = vpop.f32.mrb[0].mxu0
        %v3250 = vpop.f32.mrb[0].mxu0
        %3251 = vdwg.mxu0
        %v3252 = vmax.f32 %v3247, 0.0
        %v3253 = vpack.c.bf16 %v3252, %v3252
        %v3254 = vld [vmem:[%s7] sm:$0xf]
        %v3255 = vld [vmem:[%s7 + $0x4] sm:$0xf]
        %v3256 = vld [vmem:[%s7 + $0x8] sm:$0xf]
        %v3257 = vld [vmem:[%s7 + $0xc] sm:$0xf]
        %v3258 = vld [vmem:[%s7 + $0x10] sm:$0xf]
        %v3259 = vld [vmem:[%s7 + $0x14] sm:$0xf]
        %v3260 = vld [vmem:[%s7 + $0x18] sm:$0xf]
        %v3261 = vld [vmem:[%s7 + $0x1c] sm:$0xf]
        %v3262 = vld [vmem:[%s7 + $0x20] sm:$0xf]
        %v3263 = vld [vmem:[%s7 + $0x24] sm:$0xf]
        %v3264 = vld [vmem:[%s7 + $0x28] sm:$0xf]
        %v3265 = vld [vmem:[%s7 + $0x2c] sm:$0xf]
        %v3266 = vld [vmem:[%s7 + $0x30] sm:$0xf]
        %v3267 = vld [vmem:[%s7 + $0x34] sm:$0xf]
        %v3268 = vld [vmem:[%s7 + $0x38] sm:$0xf]
        %v3269 = vld [vmem:[%s7 + $0x3c] sm:$0xf]
        %v3270 = vld [vmem:[%s8] sm:$0x1]
        %v3287 = vunpack.c.l.b16 %v3254
        %v3288 = vunpack.c.l.b16 %v3255
        %v3289 = vunpack.c.l.b16 %v3256
        %v3290 = vunpack.c.l.b16 %v3257
        %v3291 = vunpack.c.l.b16 %v3258
        %v3292 = vunpack.c.l.b16 %v3259
        %v3293 = vunpack.c.l.b16 %v3260
        %v3294 = vunpack.c.l.b16 %v3261
        %v3295 = vunpack.c.l.b16 %v3262
        %v3296 = vunpack.c.l.b16 %v3263
        %v3297 = vunpack.c.l.b16 %v3264
        %v3298 = vunpack.c.l.b16 %v3265
        %v3299 = vunpack.c.l.b16 %v3266
        %v3300 = vunpack.c.l.b16 %v3267
        %v3301 = vunpack.c.l.b16 %v3268
        %v3302 = vunpack.c.l.b16 %v3269
        %v3303 = vpack.c.b16 %v3288, %v3287
        %v3304 = vpack.c.b16 %v3290, %v3289
        %v3305 = vpack.c.b16 %v3292, %v3291
        %v3306 = vpack.c.b16 %v3294, %v3293
        %v3307 = vpack.c.b16 %v3296, %v3295
        %v3308 = vpack.c.b16 %v3298, %v3297
        %v3309 = vpack.c.b16 %v3300, %v3299
        %v3310 = vpack.c.b16 %v3302, %v3301
        %3319 = vmatprep.subr.bf16.mxu0 0
        %3320 = vmatpush1.bf16.msra.mxu0 %v3303
        %3321 = vmatprep.subr.bf16.mxu0 0
        %3322 = vmatpush1.bf16.msra.mxu0 %v3304
        %3323 = vmatprep.subr.bf16.mxu0 0
        %3324 = vmatpush1.bf16.msra.mxu0 %v3305
        %3325 = vmatprep.subr.bf16.mxu0 0
        %3326 = vmatpush1.bf16.msra.mxu0 %v3306
        %3327 = vmatprep.subr.bf16.mxu0 0
        %3328 = vmatpush1.bf16.msra.mxu0 %v3307
        %3329 = vmatprep.subr.bf16.mxu0 0
        %3330 = vmatpush1.bf16.msra.mxu0 %v3308
        %3331 = vmatprep.subr.bf16.mxu0 0
        %3332 = vmatpush1.bf16.msra.mxu0 %v3309
        %3333 = vmatprep.subr.bf16.mxu0 0
        %3334 = vmatpush1.bf16.msra.mxu0 %v3310
        %3335 = vmatprep.subr.bf16.mxu0 0
        %3336 = vmatpush1.bf16.msra.mxu0 0
        %3337 = vmatprep.subr.bf16.mxu0 0
        %3338 = vmatpush1.bf16.msra.mxu0 0
        %3339 = vmatprep.subr.bf16.mxu0 0
        %3340 = vmatpush1.bf16.msra.mxu0 0
        %3341 = vmatprep.subr.bf16.mxu0 0
        %3342 = vmatpush1.bf16.msra.mxu0 0
        %3343 = vmatprep.subr.bf16.mxu0 0
        %3344 = vmatpush1.bf16.msra.mxu0 0
        %3345 = vmatprep.subr.bf16.mxu0 0
        %3346 = vmatpush1.bf16.msra.mxu0 0
        %3347 = vmatprep.subr.bf16.mxu0 0
        %3348 = vmatpush1.bf16.msra.mxu0 0
        %3349 = vmatprep.subr.bf16.mxu0 0
        %3350 = vmatpush1.bf16.msra.mxu0 0
        %3351 = vmatprep.mubr.bf16.mxu0 0
        %3352 = vmatmul.mubr.bf16.gmra.mrb[0].mxu0 %v3253
        %v3353 = vpop.f32.mrb[0].mxu0
        %v3354 = vadd.f32 %v3270, %v3353
        %v3355 = vpop.f32.mrb[0].mxu0
        %v3356 = vpop.f32.mrb[0].mxu0
        %v3357 = vpop.f32.mrb[0].mxu0
        %3358 = vdwg.mxu0
        %vm3359 = vcmask 73728
        %3360 = vst.msk [vmem:[%s324] sm:$0x1] %vm3359, %v3354
        %s3361 = sand.u32 %s225, 1
        %s3362 = scalar_lea.sflag [#allocation7], %s3361
        %s3363 = sand.u32 %s225, 1
        %s3364 = scalar_lea.vmem [#allocation6], %s3363
        // Predicated region
        $region57: #{cnn_forward.1} parent=55 // pred_check
          %p3365 = pneg %p235
        $region58: #{cnn_forward.1} parent=55 // pred_check_branch
          %3367 = sbr.rel (%p3365) target = $region60
        $region59: #{cnn_forward.1} parent=55 // pred_region
          %s3369 = ssub.s32 16, 16
          %3370 = vsyncadd %s3362, %s3369
          %s3371 = smul.addr %s23, 16
          %s3372 = scalar_lea.hbm %s9, %s3371
          %s3374 = sshll.u32 %s3364, 4
          %s3375 = int_to_ptr.vmem [resolvable:$true] %s3374
          %3377 = dma.vmem_to_hbm [thread:$0]  %s3375, 16, %s3372, %s3362
        $region60: #{cnn_forward.1} parent=55 // pred_fallthru
          _
      $region56: #{cnn_forward.1} parent=5 // pred_fallthru
        _
      %p3378 = scmp.le.s32.totalorder 2, %s18
      // Predicated region
      $region61: #{cnn_forward.1} parent=5 // pred_check
        %p3379 = pneg %p3378
      $region62: #{cnn_forward.1} parent=5 // pred_check_branch
        %3381 = sbr.rel (%p3379) target = $region64
      $region63: #{cnn_forward.1} parent=5 // pred_region
        %s3382 = ssub.s32 %s18, 2
        // Predicated region
        $region65: #{cnn_forward.1} parent=63 // pred_check
          %p3383 = pneg %p241
        $region66: #{cnn_forward.1} parent=63 // pred_check_branch
          %3385 = sbr.rel (%p3383) target = $region68
        $region67: #{cnn_forward.1} parent=63 // pred_region
          %s3386 = sand.u32 %s226, 1
          %s3387 = scalar_lea.sflag [#allocation7], %s3386
          %s3388 = sand.u32 %s226, 1
          %s3389 = scalar_lea.vmem [#allocation6], %s3388
          %3390 = dma.done %s3387, 16
        $region68: #{cnn_forward.1} parent=63 // pred_fallthru
          _
      $region64: #{cnn_forward.1} parent=5 // pred_fallthru
        _
    $region6: #{cnn_forward.1} parent=1 // loop_footer
      %s22 = sadd.s32 1, %s18
    $region7: #{cnn_forward.1} parent=1 // loop_footer_branch
      %17 = sbr.rel target = $region3
    $region8: #{cnn_forward.1} parent=1 // loop_exit
      _
    %3391 = vsyncpa [#allocation7], 1
    %s3392 = scalar_lea.sflag [#allocation7], 1
    %3393 = vsyncpa %s3392, 1

</llo_original>
